<compile_context>
chip_gen: v5e
topology: v5e:2x2
jax: 0.10.0
libtpu: 0.0.40
codegen_flags: <defaults>
</compile_context>

<pallas_src>
import functools

import jax
import jax.numpy as jnp
from jax.experimental import pallas as pl
from jax.experimental.pallas import tpu as pltpu

_LN_EPS = 1e-5          # nn.LayerNorm default
_FF_CHUNK = 512         # FFN tiling along dim_feedforward


def _layernorm(h, gamma, beta):
    mu = jnp.mean(h, axis=-1, keepdims=True)
    var = jnp.mean(jnp.square(h - mu), axis=-1, keepdims=True)
    return (h - mu) * jax.lax.rsqrt(var + _LN_EPS) * gamma + beta


def _bdot(a, b):
    """bf16-operand matmul with f32 accumulation (single MXU pass)."""
    return jnp.dot(a.astype(jnp.bfloat16), b.astype(jnp.bfloat16),
                   preferred_element_type=jnp.float32)


def _transformer_kernel(x_ref,
                        wemb_ref, bemb_ref,
                        wqkv_ref, bqkv_ref,
                        wo_ref, bo_ref,
                        g1_ref, be1_ref,
                        w1_ref, b1_ref,
                        w2_ref, b2_ref,
                        g2_ref, be2_ref,
                        wout_ref, bout_ref,
                        o_ref):
    # One grid step == `nb` batch elements.
    # x_ref   : (nb, S, in_c_pad)                  f32
    # wemb    : (in_c_pad, d) bf16,  bemb : (1, d) f32
    # wqkv    : (d, 3d) bf16,        bqkv : (1, 3d) f32   (fused q/k/v)
    # wo      : (d, d) bf16,         bo   : (1, d) f32
    # g1/be1, g2/be2 : (1, d) f32                          (LayerNorm)
    # w1 : (d, ff) bf16, b1 : (1, ff) f32; w2 : (ff, d) bf16, b2 : (1, d) f32
    # wout : (d, out_pad) bf16, bout : (1, out_pad) f32
    # o_ref : (nb, S, out_pad) f32
    nb, s_len, in_c = x_ref.shape
    d = wemb_ref.shape[1]
    ff = w1_ref.shape[1]
    m = nb * s_len

    x = x_ref[...].reshape(m, in_c)                            # (M, in_c)

    # ---- embedding: Linear(in_c, d) ----
    h = _bdot(x, wemb_ref[...]) + bemb_ref[...]                # (M, d) f32

    # ---- single-head self-attention (fused QKV matmul) ----
    qkv = _bdot(h, wqkv_ref[...]) + bqkv_ref[...]              # (M, 3d)
    scale = 1.0 / (d ** 0.5)
    q = (qkv[:, 0:d] * scale).reshape(nb, s_len, d).astype(jnp.bfloat16)
    k = qkv[:, d:2 * d].reshape(nb, s_len, d).astype(jnp.bfloat16)
    v = qkv[:, 2 * d:3 * d].reshape(nb, s_len, d).astype(jnp.bfloat16)

    s = jnp.einsum('bqd,bkd->bqk', q, k,
                   preferred_element_type=jnp.float32)         # (nb, S, S)
    s = s - jnp.max(s, axis=-1, keepdims=True)
    p = jnp.exp(s)
    denom = jnp.sum(p, axis=-1, keepdims=True)
    p = p * pl.reciprocal(denom, approx=True)                  # EUP, ~free

    attn = jnp.einsum('bqk,bkd->bqd', p.astype(jnp.bfloat16), v,
                      preferred_element_type=jnp.float32)      # (nb, S, d)
    attn = attn.reshape(m, d)
    attn = _bdot(attn, wo_ref[...]) + bo_ref[...]

    # ---- residual + LayerNorm 1 (post-norm, PyTorch norm_first=False) ----
    # TODO(synk): dropout (p=0.1 in nn.TransformerEncoderLayer) omitted —
    # eval/inference forward where dropout is the identity.
    h = _layernorm(h + attn, g1_ref[...], be1_ref[...])

    # ---- feed-forward: Linear(d, ff) -> ReLU -> Linear(ff, d), tiled over ff ----
    cs = _FF_CHUNK if (ff % _FF_CHUNK == 0) else ff
    n_chunks = ff // cs
    h_bf = h.astype(jnp.bfloat16)
    acc = jnp.zeros((m, d), jnp.float32)
    for c in range(n_chunks):                                  # static unroll
        w1c = w1_ref[:, c * cs:(c + 1) * cs]
        b1c = b1_ref[:, c * cs:(c + 1) * cs]
        w2c = w2_ref[c * cs:(c + 1) * cs, :]
        f = jnp.maximum(
            jnp.dot(h_bf, w1c, preferred_element_type=jnp.float32) + b1c, 0.0)
        acc = acc + jnp.dot(f.astype(jnp.bfloat16), w2c,
                            preferred_element_type=jnp.float32)
    f = acc + b2_ref[...]

    # ---- residual + LayerNorm 2 ----
    h = _layernorm(h + f, g2_ref[...], be2_ref[...])

    # ---- output head: Linear(d, out_pad) (lane-dense, zero-padded cols) ----
    out = _bdot(h, wout_ref[...]) + bout_ref[...]              # (M, out_pad)
    o_ref[...] = out.reshape(nb, s_len, -1).astype(o_ref.dtype)


def _pad_last(a, new_size):
    pad = new_size - a.shape[-1]
    if pad <= 0:
        return a
    widths = [(0, 0)] * (a.ndim - 1) + [(0, pad)]
    return jnp.pad(a, widths)


def _pad_first(a, new_size):
    pad = new_size - a.shape[0]
    if pad <= 0:
        return a
    widths = [(0, pad)] + [(0, 0)] * (a.ndim - 1)
    return jnp.pad(a, widths)


@functools.partial(jax.jit, static_argnames=())
def transformer_forward(params, x):
    """x: (S, B, in_c) seq-first (nn.TransformerEncoderLayer default layout)."""
    s_len, batch, in_c = x.shape
    d = params["w_emb"].shape[1]
    ff = params["w1"].shape[1]
    out_c = params["w_out"].shape[1]

    # Lane-dense padding of the narrow dims (zero columns/rows -> same math).
    in_c_pad = in_c if in_c % 128 == 0 else ((in_c + 127) // 128) * 128
    out_pad = out_c if out_c % 128 == 0 else ((out_c + 127) // 128) * 128

    xb = jnp.transpose(x, (1, 0, 2))                 # (B, S, in_c)
    xb = _pad_last(xb, in_c_pad)                     # (B, S, in_c_pad)

    bf = jnp.bfloat16
    w_emb = _pad_first(params["w_emb"], in_c_pad).astype(bf)
    w_qkv = params["w_qkv"].astype(bf)
    w_o = params["w_o"].astype(bf)
    w1 = params["w1"].astype(bf)
    w2 = params["w2"].astype(bf)
    w_out = _pad_last(params["w_out"], out_pad).astype(bf)
    b_out = _pad_last(params["b_out"], out_pad)

    # Batch tile: 2 sequences per grid step (M=256) when it does not collapse
    # the grid below 2 steps (keeps both v7x TensorCores busy at small batch).
    nb = 2 if (batch % 2 == 0 and batch >= 4) else 1
    grid = (batch // nb,)

    flops = 2 * batch * s_len * (in_c_pad * d + 3 * d * d + 2 * s_len * d
                                 + d * d + 2 * d * ff + d * out_pad)
    weights = (w_emb, w_qkv, w_o, w1, w2, w_out)
    biases = (params["b_emb"], params["b_qkv"], params["b_o"],
              params["ln1_g"], params["ln1_b"], params["b1"], params["b2"],
              params["ln2_g"], params["ln2_b"], b_out)
    bytes_accessed = (4 * int(xb.size)
                      + 2 * sum(int(w.size) for w in weights)
                      + 4 * sum(int(b.size) for b in biases)
                      + 4 * batch * s_len * out_pad)
    cost = pl.CostEstimate(flops=int(flops),
                           transcendentals=int(batch * s_len * s_len),
                           bytes_accessed=int(bytes_accessed))

    def resident(shape):
        # Full array as one block, constant index_map: DMA'd once, stays
        # VMEM-resident across the batch grid.
        return pl.BlockSpec(shape, lambda b, _nd=len(shape): (0,) * _nd)

    out = pl.pallas_call(
        _transformer_kernel,
        out_shape=jax.ShapeDtypeStruct((batch, s_len, out_pad), jnp.float32),
        grid=grid,
        in_specs=[
            pl.BlockSpec((nb, s_len, in_c_pad), lambda b: (b, 0, 0)),
            resident((in_c_pad, d)), resident((1, d)),        # embedding
            resident((d, 3 * d)), resident((1, 3 * d)),       # fused qkv
            resident((d, d)), resident((1, d)),               # attn out proj
            resident((1, d)), resident((1, d)),               # layernorm 1
            resident((d, ff)), resident((1, ff)),             # ffn linear 1
            resident((ff, d)), resident((1, d)),              # ffn linear 2
            resident((1, d)), resident((1, d)),               # layernorm 2
            resident((d, out_pad)), resident((1, out_pad)),   # fc_out (padded)
        ],
        out_specs=pl.BlockSpec((nb, s_len, out_pad), lambda b: (b, 0, 0)),
        compiler_params=pltpu.CompilerParams(
            dimension_semantics=("parallel",)),               # v7x dual-TC
        cost_estimate=cost,
    )(xb,
      w_emb, params["b_emb"],
      w_qkv, params["b_qkv"],
      w_o, params["b_o"],
      params["ln1_g"], params["ln1_b"],
      w1, params["b1"],
      w2, params["b2"],
      params["ln2_g"], params["ln2_b"],
      w_out, b_out)

    out = out[:, :, :out_c]                    # drop zero-padded columns
    return jnp.transpose(out, (1, 0, 2))       # back to (S, B, out_c)


def transformer_reference(params, x):
    """Pure-JAX reference with matching bf16-operand / f32-accumulate matmuls."""
    d = params["w_emb"].shape[1]
    xb = jnp.transpose(x, (1, 0, 2))

    def one_seq(xs):
        h = _bdot(xs, params["w_emb"]) + params["b_emb"]
        qkv = _bdot(h, params["w_qkv"]) + params["b_qkv"]
        scale = 1.0 / (d ** 0.5)
        q, k, v = qkv[:, :d] * scale, qkv[:, d:2 * d], qkv[:, 2 * d:]
        s = jnp.dot(q.astype(jnp.bfloat16), k.astype(jnp.bfloat16).T,
                    preferred_element_type=jnp.float32)
        p = jax.nn.softmax(s, axis=-1)
        a = jnp.dot(p.astype(jnp.bfloat16), v.astype(jnp.bfloat16),
                    preferred_element_type=jnp.float32)
        a = _bdot(a, params["w_o"]) + params["b_o"]
        h = _layernorm(h + a, params["ln1_g"], params["ln1_b"])
        f = jnp.maximum(_bdot(h, params["w1"]) + params["b1"], 0.0)
        f = _bdot(f, params["w2"]) + params["b2"]
        h = _layernorm(h + f, params["ln2_g"], params["ln2_b"])
        return _bdot(h, params["w_out"]) + params["b_out"]

    out = jax.vmap(one_seq)(xb)
    return jnp.transpose(out, (1, 0, 2))


def init_params(key, in_c, d, ff, out_c):
    ks = jax.random.split(key, 12)

    def lin(k, fan_in, shape):
        bound = 1.0 / float(fan_in) ** 0.5
        return jax.random.uniform(k, shape, jnp.float32, -bound, bound)

    return {
        "w_emb": lin(ks[0], in_c, (in_c, d)),
        "b_emb": lin(ks[1], in_c, (1, d)),
        "w_qkv": lin(ks[2], d, (d, 3 * d)),
        "b_qkv": lin(ks[3], d, (1, 3 * d)),
        "w_o":   lin(ks[4], d, (d, d)),
        "b_o":   lin(ks[5], d, (1, d)),
        "ln1_g": jnp.ones((1, d), jnp.float32),
        "ln1_b": jnp.zeros((1, d), jnp.float32),
        "w1":    lin(ks[6], d, (d, ff)),
        "b1":    lin(ks[7], d, (1, ff)),
        "w2":    lin(ks[8], ff, (ff, d)),
        "b2":    lin(ks[9], ff, (1, d)),
        "ln2_g": jnp.ones((1, d), jnp.float32),
        "ln2_b": jnp.zeros((1, d), jnp.float32),
        "w_out": lin(ks[10], d, (d, out_c)),
        "b_out": lin(ks[11], d, (1, out_c)),
    }


if __name__ == "__main__":
    key = jax.random.PRNGKey(0)
    k_x, k_p = jax.random.split(key)

    # Small but lane-friendly shapes: seq=128, batch=2, in_c=32,
    # hid_c1 (d_model)=128, out_c=16, dim_feedforward=2048 (PyTorch default).
    seq_len, batch = 128, 2
    in_c, hid_c1, out_c = 32, 128, 16
    dim_ff = 2048

    x = jax.random.normal(k_x, (seq_len, batch, in_c), jnp.float32)
    params = init_params(k_p, in_c, hid_c1, dim_ff, out_c)

    out = transformer_forward(params, x)
    out = jax.block_until_ready(out)

    ref = transformer_reference(params, x)
    assert out.shape == (seq_len, batch, out_c)
    assert jnp.allclose(out, ref, atol=2e-2, rtol=2e-2), \
        "mismatch vs JAX reference"

    print("KERNEL_OK")
</pallas_src>

<mosaic_0001>
module attributes {stable_mosaic.version = 11 : i64} {
  func.func @_transformer_kernel(%arg0: i32, %arg1: memref<1x128x128xf32, #tpu.memory_space<vmem>>, %arg2: memref<128x128xbf16, #tpu.memory_space<vmem>>, %arg3: memref<1x128xf32, #tpu.memory_space<vmem>>, %arg4: memref<128x384xbf16, #tpu.memory_space<vmem>>, %arg5: memref<1x384xf32, #tpu.memory_space<vmem>>, %arg6: memref<128x128xbf16, #tpu.memory_space<vmem>>, %arg7: memref<1x128xf32, #tpu.memory_space<vmem>>, %arg8: memref<1x128xf32, #tpu.memory_space<vmem>>, %arg9: memref<1x128xf32, #tpu.memory_space<vmem>>, %arg10: memref<128x2048xbf16, #tpu.memory_space<vmem>>, %arg11: memref<1x2048xf32, #tpu.memory_space<vmem>>, %arg12: memref<2048x128xbf16, #tpu.memory_space<vmem>>, %arg13: memref<1x128xf32, #tpu.memory_space<vmem>>, %arg14: memref<1x128xf32, #tpu.memory_space<vmem>>, %arg15: memref<1x128xf32, #tpu.memory_space<vmem>>, %arg16: memref<128x128xbf16, #tpu.memory_space<vmem>>, %arg17: memref<1x128xf32, #tpu.memory_space<vmem>>, %arg18: memref<1x128x128xf32, #tpu.memory_space<vmem>>) attributes {dimension_semantics = [#tpu.dimension_semantics<parallel>], iteration_bounds = array<i64: 2>, scalar_prefetch = 0 : i64, scratch_operands = 0 : i64, tpu.core_type = #tpu.core_type<tc>, window_params = [{transform_indices = @transform_0, window_bounds = array<i64: 1, 128, 128>}, {pipeline_mode = #tpu.pipeline_mode<synchronous>, transform_indices = @transform_1, window_bounds = array<i64: 128, 128>}, {pipeline_mode = #tpu.pipeline_mode<synchronous>, transform_indices = @transform_2, window_bounds = array<i64: 1, 128>}, {pipeline_mode = #tpu.pipeline_mode<synchronous>, transform_indices = @transform_3, window_bounds = array<i64: 128, 384>}, {pipeline_mode = #tpu.pipeline_mode<synchronous>, transform_indices = @transform_4, window_bounds = array<i64: 1, 384>}, {pipeline_mode = #tpu.pipeline_mode<synchronous>, transform_indices = @transform_5, window_bounds = array<i64: 128, 128>}, {pipeline_mode = #tpu.pipeline_mode<synchronous>, transform_indices = @transform_6, window_bounds = array<i64: 1, 128>}, {pipeline_mode = #tpu.pipeline_mode<synchronous>, transform_indices = @transform_7, window_bounds = array<i64: 1, 128>}, {pipeline_mode = #tpu.pipeline_mode<synchronous>, transform_indices = @transform_8, window_bounds = array<i64: 1, 128>}, {pipeline_mode = #tpu.pipeline_mode<synchronous>, transform_indices = @transform_9, window_bounds = array<i64: 128, 2048>}, {pipeline_mode = #tpu.pipeline_mode<synchronous>, transform_indices = @transform_10, window_bounds = array<i64: 1, 2048>}, {pipeline_mode = #tpu.pipeline_mode<synchronous>, transform_indices = @transform_11, window_bounds = array<i64: 2048, 128>}, {pipeline_mode = #tpu.pipeline_mode<synchronous>, transform_indices = @transform_12, window_bounds = array<i64: 1, 128>}, {pipeline_mode = #tpu.pipeline_mode<synchronous>, transform_indices = @transform_13, window_bounds = array<i64: 1, 128>}, {pipeline_mode = #tpu.pipeline_mode<synchronous>, transform_indices = @transform_14, window_bounds = array<i64: 1, 128>}, {pipeline_mode = #tpu.pipeline_mode<synchronous>, transform_indices = @transform_15, window_bounds = array<i64: 128, 128>}, {pipeline_mode = #tpu.pipeline_mode<synchronous>, transform_indices = @transform_16, window_bounds = array<i64: 1, 128>}, {transform_indices = @transform_17, window_bounds = array<i64: 1, 128, 128>}]} {
    %c0 = arith.constant 0 : index
    %c0_0 = arith.constant 0 : index
    %c0_1 = arith.constant 0 : index
    %0 = vector.load %arg1[%c0, %c0_0, %c0_1] : memref<1x128x128xf32, #tpu.memory_space<vmem>>, vector<1x128x128xf32>
    %1 = vector.shape_cast %0 : vector<1x128x128xf32> to vector<128x128xf32>
    %c0_2 = arith.constant 0 : index
    %c0_3 = arith.constant 0 : index
    %2 = vector.load %arg2[%c0_2, %c0_3] : memref<128x128xbf16, #tpu.memory_space<vmem>>, vector<128x128xbf16>
    %3 = arith.truncf %1 : vector<128x128xf32> to vector<128x128xbf16>
    %cst = arith.constant dense<0.000000e+00> : vector<128x128xf32>
    %4 = tpu.matmul %3, %2, %cst {dimension_numbers = #tpu.dot_dimension_numbers<[1], [0], [0], [1], [0, 0, 1, 1], [], []>} : vector<128x128xbf16>, vector<128x128xbf16>, vector<128x128xf32> -> vector<128x128xf32>
    %c0_4 = arith.constant 0 : index
    %c0_5 = arith.constant 0 : index
    %5 = vector.load %arg3[%c0_4, %c0_5] : memref<1x128xf32, #tpu.memory_space<vmem>>, vector<1x128xf32>
    %6 = vector.broadcast %5 : vector<1x128xf32> to vector<128x128xf32>
    %7 = arith.addf %4, %6 : vector<128x128xf32>
    %c0_6 = arith.constant 0 : index
    %c0_7 = arith.constant 0 : index
    %8 = vector.load %arg4[%c0_6, %c0_7] : memref<128x384xbf16, #tpu.memory_space<vmem>>, vector<128x384xbf16>
    %9 = arith.truncf %7 : vector<128x128xf32> to vector<128x128xbf16>
    %cst_8 = arith.constant dense<0.000000e+00> : vector<128x384xf32>
    %10 = tpu.matmul %9, %8, %cst_8 {dimension_numbers = #tpu.dot_dimension_numbers<[1], [0], [0], [1], [0, 0, 1, 1], [], []>} : vector<128x128xbf16>, vector<128x384xbf16>, vector<128x384xf32> -> vector<128x384xf32>
    %c0_9 = arith.constant 0 : index
    %c0_10 = arith.constant 0 : index
    %11 = vector.load %arg5[%c0_9, %c0_10] : memref<1x384xf32, #tpu.memory_space<vmem>>, vector<1x384xf32>
    %12 = vector.broadcast %11 : vector<1x384xf32> to vector<128x384xf32>
    %13 = arith.addf %10, %12 : vector<128x384xf32>
    %14 = vector.extract_strided_slice %13 {offsets = [0, 0], sizes = [128, 128], strides = [1, 1]} : vector<128x384xf32> to vector<128x128xf32>
    %cst_11 = arith.constant 0.0883883461 : f32
    %15 = vector.broadcast %cst_11 : f32 to vector<128x128xf32>
    %16 = arith.mulf %14, %15 : vector<128x128xf32>
    %17 = vector.shape_cast %16 : vector<128x128xf32> to vector<1x128x128xf32>
    %18 = arith.truncf %17 : vector<1x128x128xf32> to vector<1x128x128xbf16>
    %19 = vector.extract_strided_slice %13 {offsets = [0, 128], sizes = [128, 128], strides = [1, 1]} : vector<128x384xf32> to vector<128x128xf32>
    %20 = vector.shape_cast %19 : vector<128x128xf32> to vector<1x128x128xf32>
    %21 = arith.truncf %20 : vector<1x128x128xf32> to vector<1x128x128xbf16>
    %22 = vector.extract_strided_slice %13 {offsets = [0, 256], sizes = [128, 128], strides = [1, 1]} : vector<128x384xf32> to vector<128x128xf32>
    %23 = vector.shape_cast %22 : vector<128x128xf32> to vector<1x128x128xf32>
    %24 = arith.truncf %23 : vector<1x128x128xf32> to vector<1x128x128xbf16>
    "tpu.trace_start"() <{level = 10 : i32, message = "bqd,bkd->bqk"}> : () -> ()
    %cst_12 = arith.constant dense<0.000000e+00> : vector<1x128x128xf32>
    %25 = tpu.matmul %18, %21, %cst_12 {dimension_numbers = #tpu.dot_dimension_numbers<[2], [2], [1], [1], [0, 0, 0, 1, 1, 1], [0], [0]>} : vector<1x128x128xbf16>, vector<1x128x128xbf16>, vector<1x128x128xf32> -> vector<1x128x128xf32>
    "tpu.trace_stop"() : () -> ()
    %cst_13 = arith.constant dense<0xFF800000> : vector<1x128xf32>
    %26 = vector.multi_reduction <maximumf>, %25, %cst_13 [2] : vector<1x128x128xf32> to vector<1x128xf32>
    %27 = vector.shape_cast %26 : vector<1x128xf32> to vector<1x128x1xf32>
    %28 = vector.broadcast %27 : vector<1x128x1xf32> to vector<1x128x128xf32>
    %29 = arith.subf %25, %28 : vector<1x128x128xf32>
    %30 = math.exp %29 : vector<1x128x128xf32>
    %cst_14 = arith.constant dense<0.000000e+00> : vector<1x128xf32>
    %31 = vector.multi_reduction <add>, %30, %cst_14 [2] : vector<1x128x128xf32> to vector<1x128xf32>
    %32 = vector.shape_cast %31 : vector<1x128xf32> to vector<1x128x1xf32>
    %33 = tpu.reciprocal %32 {approx = true} : vector<1x128x1xf32> -> vector<1x128x1xf32>
    %34 = vector.broadcast %33 : vector<1x128x1xf32> to vector<1x128x128xf32>
    %35 = arith.mulf %30, %34 : vector<1x128x128xf32>
    %36 = arith.truncf %35 : vector<1x128x128xf32> to vector<1x128x128xbf16>
    "tpu.trace_start"() <{level = 10 : i32, message = "bqk,bkd->bqd"}> : () -> ()
    %cst_15 = arith.constant dense<0.000000e+00> : vector<1x128x128xf32>
    %37 = tpu.matmul %36, %24, %cst_15 {dimension_numbers = #tpu.dot_dimension_numbers<[2], [1], [1], [2], [0, 0, 0, 1, 1, 2], [0], [0]>} : vector<1x128x128xbf16>, vector<1x128x128xbf16>, vector<1x128x128xf32> -> vector<1x128x128xf32>
    "tpu.trace_stop"() : () -> ()
    %38 = vector.shape_cast %37 : vector<1x128x128xf32> to vector<128x128xf32>
    %c0_16 = arith.constant 0 : index
    %c0_17 = arith.constant 0 : index
    %39 = vector.load %arg6[%c0_16, %c0_17] : memref<128x128xbf16, #tpu.memory_space<vmem>>, vector<128x128xbf16>
    %40 = arith.truncf %38 : vector<128x128xf32> to vector<128x128xbf16>
    %cst_18 = arith.constant dense<0.000000e+00> : vector<128x128xf32>
    %41 = tpu.matmul %40, %39, %cst_18 {dimension_numbers = #tpu.dot_dimension_numbers<[1], [0], [0], [1], [0, 0, 1, 1], [], []>} : vector<128x128xbf16>, vector<128x128xbf16>, vector<128x128xf32> -> vector<128x128xf32>
    %c0_19 = arith.constant 0 : index
    %c0_20 = arith.constant 0 : index
    %42 = vector.load %arg7[%c0_19, %c0_20] : memref<1x128xf32, #tpu.memory_space<vmem>>, vector<1x128xf32>
    %43 = vector.broadcast %42 : vector<1x128xf32> to vector<128x128xf32>
    %44 = arith.addf %41, %43 : vector<128x128xf32>
    %45 = arith.addf %7, %44 : vector<128x128xf32>
    %c0_21 = arith.constant 0 : index
    %c0_22 = arith.constant 0 : index
    %46 = vector.load %arg8[%c0_21, %c0_22] : memref<1x128xf32, #tpu.memory_space<vmem>>, vector<1x128xf32>
    %c0_23 = arith.constant 0 : index
    %c0_24 = arith.constant 0 : index
    %47 = vector.load %arg9[%c0_23, %c0_24] : memref<1x128xf32, #tpu.memory_space<vmem>>, vector<1x128xf32>
    %cst_25 = arith.constant dense<0.000000e+00> : vector<128xf32>
    %48 = vector.multi_reduction <add>, %45, %cst_25 [1] : vector<128x128xf32> to vector<128xf32>
    %49 = vector.shape_cast %48 : vector<128xf32> to vector<128x1xf32>
    %cst_26 = arith.constant 1.280000e+02 : f32
    %50 = vector.broadcast %cst_26 : f32 to vector<128x1xf32>
    %51 = arith.divf %49, %50 : vector<128x1xf32>
    %52 = vector.broadcast %51 : vector<128x1xf32> to vector<128x128xf32>
    %53 = arith.subf %45, %52 : vector<128x128xf32>
    %54 = arith.mulf %53, %53 : vector<128x128xf32>
    %cst_27 = arith.constant dense<0.000000e+00> : vector<128xf32>
    %55 = vector.multi_reduction <add>, %54, %cst_27 [1] : vector<128x128xf32> to vector<128xf32>
    %56 = vector.shape_cast %55 : vector<128xf32> to vector<128x1xf32>
    %cst_28 = arith.constant 1.280000e+02 : f32
    %57 = vector.broadcast %cst_28 : f32 to vector<128x1xf32>
    %58 = arith.divf %56, %57 : vector<128x1xf32>
    %59 = vector.broadcast %51 : vector<128x1xf32> to vector<128x128xf32>
    %60 = arith.subf %45, %59 : vector<128x128xf32>
    %cst_29 = arith.constant 9.99999974E-6 : f32
    %61 = vector.broadcast %cst_29 : f32 to vector<128x1xf32>
    %62 = arith.addf %58, %61 : vector<128x1xf32>
    %63 = math.rsqrt %62 : vector<128x1xf32>
    %64 = vector.broadcast %63 : vector<128x1xf32> to vector<128x128xf32>
    %65 = arith.mulf %60, %64 : vector<128x128xf32>
    %66 = vector.broadcast %46 : vector<1x128xf32> to vector<128x128xf32>
    %67 = arith.mulf %65, %66 : vector<128x128xf32>
    %68 = vector.broadcast %47 : vector<1x128xf32> to vector<128x128xf32>
    %69 = arith.addf %67, %68 : vector<128x128xf32>
    %70 = arith.truncf %69 : vector<128x128xf32> to vector<128x128xbf16>
    %cst_30 = arith.constant 0.000000e+00 : f32
    %71 = vector.broadcast %cst_30 : f32 to vector<128x128xf32>
    %c0_31 = arith.constant 0 : index
    %c0_32 = arith.constant 0 : index
    %72 = vector.load %arg10[%c0_31, %c0_32] : memref<128x2048xbf16, #tpu.memory_space<vmem>>, vector<128x512xbf16>
    %c0_33 = arith.constant 0 : index
    %c0_34 = arith.constant 0 : index
    %73 = vector.load %arg11[%c0_33, %c0_34] : memref<1x2048xf32, #tpu.memory_space<vmem>>, vector<1x512xf32>
    %c0_35 = arith.constant 0 : index
    %c0_36 = arith.constant 0 : index
    %74 = vector.load %arg12[%c0_35, %c0_36] : memref<2048x128xbf16, #tpu.memory_space<vmem>>, vector<512x128xbf16>
    %cst_37 = arith.constant dense<0.000000e+00> : vector<128x512xf32>
    %75 = tpu.matmul %70, %72, %cst_37 {dimension_numbers = #tpu.dot_dimension_numbers<[1], [0], [0], [1], [0, 0, 1, 1], [], []>} : vector<128x128xbf16>, vector<128x512xbf16>, vector<128x512xf32> -> vector<128x512xf32>
    %76 = vector.broadcast %73 : vector<1x512xf32> to vector<128x512xf32>
    %77 = arith.addf %75, %76 : vector<128x512xf32>
    %cst_38 = arith.constant 0.000000e+00 : f32
    %78 = vector.broadcast %cst_38 : f32 to vector<128x512xf32>
    %79 = arith.maximumf %77, %78 : vector<128x512xf32>
    %80 = arith.truncf %79 : vector<128x512xf32> to vector<128x512xbf16>
    %cst_39 = arith.constant dense<0.000000e+00> : vector<128x128xf32>
    %81 = tpu.matmul %80, %74, %cst_39 {dimension_numbers = #tpu.dot_dimension_numbers<[1], [0], [0], [1], [0, 0, 1, 1], [], []>} : vector<128x512xbf16>, vector<512x128xbf16>, vector<128x128xf32> -> vector<128x128xf32>
    %82 = arith.addf %71, %81 : vector<128x128xf32>
    %c0_40 = arith.constant 0 : index
    %c512 = arith.constant 512 : index
    %83 = vector.load %arg10[%c0_40, %c512] : memref<128x2048xbf16, #tpu.memory_space<vmem>>, vector<128x512xbf16>
    %c0_41 = arith.constant 0 : index
    %c512_42 = arith.constant 512 : index
    %84 = vector.load %arg11[%c0_41, %c512_42] : memref<1x2048xf32, #tpu.memory_space<vmem>>, vector<1x512xf32>
    %c512_43 = arith.constant 512 : index
    %c0_44 = arith.constant 0 : index
    %85 = vector.load %arg12[%c512_43, %c0_44] : memref<2048x128xbf16, #tpu.memory_space<vmem>>, vector<512x128xbf16>
    %cst_45 = arith.constant dense<0.000000e+00> : vector<128x512xf32>
    %86 = tpu.matmul %70, %83, %cst_45 {dimension_numbers = #tpu.dot_dimension_numbers<[1], [0], [0], [1], [0, 0, 1, 1], [], []>} : vector<128x128xbf16>, vector<128x512xbf16>, vector<128x512xf32> -> vector<128x512xf32>
    %87 = vector.broadcast %84 : vector<1x512xf32> to vector<128x512xf32>
    %88 = arith.addf %86, %87 : vector<128x512xf32>
    %cst_46 = arith.constant 0.000000e+00 : f32
    %89 = vector.broadcast %cst_46 : f32 to vector<128x512xf32>
    %90 = arith.maximumf %88, %89 : vector<128x512xf32>
    %91 = arith.truncf %90 : vector<128x512xf32> to vector<128x512xbf16>
    %cst_47 = arith.constant dense<0.000000e+00> : vector<128x128xf32>
    %92 = tpu.matmul %91, %85, %cst_47 {dimension_numbers = #tpu.dot_dimension_numbers<[1], [0], [0], [1], [0, 0, 1, 1], [], []>} : vector<128x512xbf16>, vector<512x128xbf16>, vector<128x128xf32> -> vector<128x128xf32>
    %93 = arith.addf %82, %92 : vector<128x128xf32>
    %c0_48 = arith.constant 0 : index
    %c1024 = arith.constant 1024 : index
    %94 = vector.load %arg10[%c0_48, %c1024] : memref<128x2048xbf16, #tpu.memory_space<vmem>>, vector<128x512xbf16>
    %c0_49 = arith.constant 0 : index
    %c1024_50 = arith.constant 1024 : index
    %95 = vector.load %arg11[%c0_49, %c1024_50] : memref<1x2048xf32, #tpu.memory_space<vmem>>, vector<1x512xf32>
    %c1024_51 = arith.constant 1024 : index
    %c0_52 = arith.constant 0 : index
    %96 = vector.load %arg12[%c1024_51, %c0_52] : memref<2048x128xbf16, #tpu.memory_space<vmem>>, vector<512x128xbf16>
    %cst_53 = arith.constant dense<0.000000e+00> : vector<128x512xf32>
    %97 = tpu.matmul %70, %94, %cst_53 {dimension_numbers = #tpu.dot_dimension_numbers<[1], [0], [0], [1], [0, 0, 1, 1], [], []>} : vector<128x128xbf16>, vector<128x512xbf16>, vector<128x512xf32> -> vector<128x512xf32>
    %98 = vector.broadcast %95 : vector<1x512xf32> to vector<128x512xf32>
    %99 = arith.addf %97, %98 : vector<128x512xf32>
    %cst_54 = arith.constant 0.000000e+00 : f32
    %100 = vector.broadcast %cst_54 : f32 to vector<128x512xf32>
    %101 = arith.maximumf %99, %100 : vector<128x512xf32>
    %102 = arith.truncf %101 : vector<128x512xf32> to vector<128x512xbf16>
    %cst_55 = arith.constant dense<0.000000e+00> : vector<128x128xf32>
    %103 = tpu.matmul %102, %96, %cst_55 {dimension_numbers = #tpu.dot_dimension_numbers<[1], [0], [0], [1], [0, 0, 1, 1], [], []>} : vector<128x512xbf16>, vector<512x128xbf16>, vector<128x128xf32> -> vector<128x128xf32>
    %104 = arith.addf %93, %103 : vector<128x128xf32>
    %c0_56 = arith.constant 0 : index
    %c1536 = arith.constant 1536 : index
    %105 = vector.load %arg10[%c0_56, %c1536] : memref<128x2048xbf16, #tpu.memory_space<vmem>>, vector<128x512xbf16>
    %c0_57 = arith.constant 0 : index
    %c1536_58 = arith.constant 1536 : index
    %106 = vector.load %arg11[%c0_57, %c1536_58] : memref<1x2048xf32, #tpu.memory_space<vmem>>, vector<1x512xf32>
    %c1536_59 = arith.constant 1536 : index
    %c0_60 = arith.constant 0 : index
    %107 = vector.load %arg12[%c1536_59, %c0_60] : memref<2048x128xbf16, #tpu.memory_space<vmem>>, vector<512x128xbf16>
    %cst_61 = arith.constant dense<0.000000e+00> : vector<128x512xf32>
    %108 = tpu.matmul %70, %105, %cst_61 {dimension_numbers = #tpu.dot_dimension_numbers<[1], [0], [0], [1], [0, 0, 1, 1], [], []>} : vector<128x128xbf16>, vector<128x512xbf16>, vector<128x512xf32> -> vector<128x512xf32>
    %109 = vector.broadcast %106 : vector<1x512xf32> to vector<128x512xf32>
    %110 = arith.addf %108, %109 : vector<128x512xf32>
    %cst_62 = arith.constant 0.000000e+00 : f32
    %111 = vector.broadcast %cst_62 : f32 to vector<128x512xf32>
    %112 = arith.maximumf %110, %111 : vector<128x512xf32>
    %113 = arith.truncf %112 : vector<128x512xf32> to vector<128x512xbf16>
    %cst_63 = arith.constant dense<0.000000e+00> : vector<128x128xf32>
    %114 = tpu.matmul %113, %107, %cst_63 {dimension_numbers = #tpu.dot_dimension_numbers<[1], [0], [0], [1], [0, 0, 1, 1], [], []>} : vector<128x512xbf16>, vector<512x128xbf16>, vector<128x128xf32> -> vector<128x128xf32>
    %115 = arith.addf %104, %114 : vector<128x128xf32>
    %c0_64 = arith.constant 0 : index
    %c0_65 = arith.constant 0 : index
    %116 = vector.load %arg13[%c0_64, %c0_65] : memref<1x128xf32, #tpu.memory_space<vmem>>, vector<1x128xf32>
    %117 = vector.broadcast %116 : vector<1x128xf32> to vector<128x128xf32>
    %118 = arith.addf %115, %117 : vector<128x128xf32>
    %119 = arith.addf %69, %118 : vector<128x128xf32>
    %c0_66 = arith.constant 0 : index
    %c0_67 = arith.constant 0 : index
    %120 = vector.load %arg14[%c0_66, %c0_67] : memref<1x128xf32, #tpu.memory_space<vmem>>, vector<1x128xf32>
    %c0_68 = arith.constant 0 : index
    %c0_69 = arith.constant 0 : index
    %121 = vector.load %arg15[%c0_68, %c0_69] : memref<1x128xf32, #tpu.memory_space<vmem>>, vector<1x128xf32>
    %cst_70 = arith.constant dense<0.000000e+00> : vector<128xf32>
    %122 = vector.multi_reduction <add>, %119, %cst_70 [1] : vector<128x128xf32> to vector<128xf32>
    %123 = vector.shape_cast %122 : vector<128xf32> to vector<128x1xf32>
    %cst_71 = arith.constant 1.280000e+02 : f32
    %124 = vector.broadcast %cst_71 : f32 to vector<128x1xf32>
    %125 = arith.divf %123, %124 : vector<128x1xf32>
    %126 = vector.broadcast %125 : vector<128x1xf32> to vector<128x128xf32>
    %127 = arith.subf %119, %126 : vector<128x128xf32>
    %128 = arith.mulf %127, %127 : vector<128x128xf32>
    %cst_72 = arith.constant dense<0.000000e+00> : vector<128xf32>
    %129 = vector.multi_reduction <add>, %128, %cst_72 [1] : vector<128x128xf32> to vector<128xf32>
    %130 = vector.shape_cast %129 : vector<128xf32> to vector<128x1xf32>
    %cst_73 = arith.constant 1.280000e+02 : f32
    %131 = vector.broadcast %cst_73 : f32 to vector<128x1xf32>
    %132 = arith.divf %130, %131 : vector<128x1xf32>
    %133 = vector.broadcast %125 : vector<128x1xf32> to vector<128x128xf32>
    %134 = arith.subf %119, %133 : vector<128x128xf32>
    %cst_74 = arith.constant 9.99999974E-6 : f32
    %135 = vector.broadcast %cst_74 : f32 to vector<128x1xf32>
    %136 = arith.addf %132, %135 : vector<128x1xf32>
    %137 = math.rsqrt %136 : vector<128x1xf32>
    %138 = vector.broadcast %137 : vector<128x1xf32> to vector<128x128xf32>
    %139 = arith.mulf %134, %138 : vector<128x128xf32>
    %140 = vector.broadcast %120 : vector<1x128xf32> to vector<128x128xf32>
    %141 = arith.mulf %139, %140 : vector<128x128xf32>
    %142 = vector.broadcast %121 : vector<1x128xf32> to vector<128x128xf32>
    %143 = arith.addf %141, %142 : vector<128x128xf32>
    %c0_75 = arith.constant 0 : index
    %c0_76 = arith.constant 0 : index
    %144 = vector.load %arg16[%c0_75, %c0_76] : memref<128x128xbf16, #tpu.memory_space<vmem>>, vector<128x128xbf16>
    %145 = arith.truncf %143 : vector<128x128xf32> to vector<128x128xbf16>
    %cst_77 = arith.constant dense<0.000000e+00> : vector<128x128xf32>
    %146 = tpu.matmul %145, %144, %cst_77 {dimension_numbers = #tpu.dot_dimension_numbers<[1], [0], [0], [1], [0, 0, 1, 1], [], []>} : vector<128x128xbf16>, vector<128x128xbf16>, vector<128x128xf32> -> vector<128x128xf32>
    %c0_78 = arith.constant 0 : index
    %c0_79 = arith.constant 0 : index
    %147 = vector.load %arg17[%c0_78, %c0_79] : memref<1x128xf32, #tpu.memory_space<vmem>>, vector<1x128xf32>
    %148 = vector.broadcast %147 : vector<1x128xf32> to vector<128x128xf32>
    %149 = arith.addf %146, %148 : vector<128x128xf32>
    %150 = vector.shape_cast %149 : vector<128x128xf32> to vector<1x128x128xf32>
    %c0_80 = arith.constant 0 : index
    %c0_81 = arith.constant 0 : index
    %c0_82 = arith.constant 0 : index
    %151 = vector.load %arg18[%c0_80, %c0_81, %c0_82] : memref<1x128x128xf32, #tpu.memory_space<vmem>>, vector<1x128x128xf32>
    tpu.vector_store %arg18[%c0_80, %c0_81, %c0_82], %150 {strides = array<i32>} : memref<1x128x128xf32, #tpu.memory_space<vmem>>, vector<1x128x128xf32>,
    return
  }
  func.func @transform_0(%arg0: i32) -> (i32, i32, i32) {
    %c0_i32 = arith.constant 0 : i32
    %c0_i32_0 = arith.constant 0 : i32
    %c0_i32_1 = arith.constant 0 : i32
    return %arg0, %c0_i32, %c0_i32_0 : i32, i32, i32
  }
  func.func @transform_1(%arg0: i32) -> (i32, i32) {
    %c0_i32 = arith.constant 0 : i32
    %c0_i32_0 = arith.constant 0 : i32
    %c0_i32_1 = arith.constant 0 : i32
    return %c0_i32, %c0_i32_0 : i32, i32
  }
  func.func @transform_2(%arg0: i32) -> (i32, i32) {
    %c0_i32 = arith.constant 0 : i32
    %c0_i32_0 = arith.constant 0 : i32
    %c0_i32_1 = arith.constant 0 : i32
    return %c0_i32, %c0_i32_0 : i32, i32
  }
  func.func @transform_3(%arg0: i32) -> (i32, i32) {
    %c0_i32 = arith.constant 0 : i32
    %c0_i32_0 = arith.constant 0 : i32
    %c0_i32_1 = arith.constant 0 : i32
    return %c0_i32, %c0_i32_0 : i32, i32
  }
  func.func @transform_4(%arg0: i32) -> (i32, i32) {
    %c0_i32 = arith.constant 0 : i32
    %c0_i32_0 = arith.constant 0 : i32
    %c0_i32_1 = arith.constant 0 : i32
    return %c0_i32, %c0_i32_0 : i32, i32
  }
  func.func @transform_5(%arg0: i32) -> (i32, i32) {
    %c0_i32 = arith.constant 0 : i32
    %c0_i32_0 = arith.constant 0 : i32
    %c0_i32_1 = arith.constant 0 : i32
    return %c0_i32, %c0_i32_0 : i32, i32
  }
  func.func @transform_6(%arg0: i32) -> (i32, i32) {
    %c0_i32 = arith.constant 0 : i32
    %c0_i32_0 = arith.constant 0 : i32
    %c0_i32_1 = arith.constant 0 : i32
    return %c0_i32, %c0_i32_0 : i32, i32
  }
  func.func @transform_7(%arg0: i32) -> (i32, i32) {
    %c0_i32 = arith.constant 0 : i32
    %c0_i32_0 = arith.constant 0 : i32
    %c0_i32_1 = arith.constant 0 : i32
    return %c0_i32, %c0_i32_0 : i32, i32
  }
  func.func @transform_8(%arg0: i32) -> (i32, i32) {
    %c0_i32 = arith.constant 0 : i32
    %c0_i32_0 = arith.constant 0 : i32
    %c0_i32_1 = arith.constant 0 : i32
    return %c0_i32, %c0_i32_0 : i32, i32
  }
  func.func @transform_9(%arg0: i32) -> (i32, i32) {
    %c0_i32 = arith.constant 0 : i32
    %c0_i32_0 = arith.constant 0 : i32
    %c0_i32_1 = arith.constant 0 : i32
    return %c0_i32, %c0_i32_0 : i32, i32
  }
  func.func @transform_10(%arg0: i32) -> (i32, i32) {
    %c0_i32 = arith.constant 0 : i32
    %c0_i32_0 = arith.constant 0 : i32
    %c0_i32_1 = arith.constant 0 : i32
    return %c0_i32, %c0_i32_0 : i32, i32
  }
  func.func @transform_11(%arg0: i32) -> (i32, i32) {
    %c0_i32 = arith.constant 0 : i32
    %c0_i32_0 = arith.constant 0 : i32
    %c0_i32_1 = arith.constant 0 : i32
    return %c0_i32, %c0_i32_0 : i32, i32
  }
  func.func @transform_12(%arg0: i32) -> (i32, i32) {
    %c0_i32 = arith.constant 0 : i32
    %c0_i32_0 = arith.constant 0 : i32
    %c0_i32_1 = arith.constant 0 : i32
    return %c0_i32, %c0_i32_0 : i32, i32
  }
  func.func @transform_13(%arg0: i32) -> (i32, i32) {
    %c0_i32 = arith.constant 0 : i32
    %c0_i32_0 = arith.constant 0 : i32
    %c0_i32_1 = arith.constant 0 : i32
    return %c0_i32, %c0_i32_0 : i32, i32
  }
  func.func @transform_14(%arg0: i32) -> (i32, i32) {
    %c0_i32 = arith.constant 0 : i32
    %c0_i32_0 = arith.constant 0 : i32
    %c0_i32_1 = arith.constant 0 : i32
    return %c0_i32, %c0_i32_0 : i32, i32
  }
  func.func @transform_15(%arg0: i32) -> (i32, i32) {
    %c0_i32 = arith.constant 0 : i32
    %c0_i32_0 = arith.constant 0 : i32
    %c0_i32_1 = arith.constant 0 : i32
    return %c0_i32, %c0_i32_0 : i32, i32
  }
  func.func @transform_16(%arg0: i32) -> (i32, i32) {
    %c0_i32 = arith.constant 0 : i32
    %c0_i32_0 = arith.constant 0 : i32
    %c0_i32_1 = arith.constant 0 : i32
    return %c0_i32, %c0_i32_0 : i32, i32
  }
  func.func @transform_17(%arg0: i32) -> (i32, i32, i32) {
    %c0_i32 = arith.constant 0 : i32
    %c0_i32_0 = arith.constant 0 : i32
    %c0_i32_1 = arith.constant 0 : i32
    return %arg0, %c0_i32, %c0_i32_0 : i32, i32, i32
  }
}

</mosaic_0001>

<llo_original>
// kernel: transformer_forward.1
$region0: #{transformer_forward.1}
  #allocation0 [shape = 'u32[]', space=smem, size = 0x4, offset = 0x4, fixed_abs, tag = 'smem constant byte address 0x4 - core index']
  #allocation1 [shape = 'u32[72,128]{1,0:T(1,128)}', space=vmem, size = 0x9000, scoped, tag = 'internal scratch']
  %s0 = inlined_call_operand.vmem [shape: f32[2,128,128], index: 0, kind: input, shape index: {}]
  %s1 = inlined_call_operand.vmem [shape: bf16[128,128], index: 1, kind: input, shape index: {}]
  %s2 = inlined_call_operand.vmem [shape: f32[1,128], index: 2, kind: input, shape index: {}]
  %s3 = inlined_call_operand.vmem [shape: bf16[128,384], index: 3, kind: input, shape index: {}]
  %s4 = inlined_call_operand.vmem [shape: f32[1,384], index: 4, kind: input, shape index: {}]
  %s5 = inlined_call_operand.vmem [shape: bf16[128,128], index: 5, kind: input, shape index: {}]
  %s6 = inlined_call_operand.vmem [shape: f32[1,128], index: 6, kind: input, shape index: {}]
  %s7 = inlined_call_operand.vmem [shape: f32[1,128], index: 7, kind: input, shape index: {}]
  %s8 = inlined_call_operand.vmem [shape: f32[1,128], index: 8, kind: input, shape index: {}]
  %s9 = inlined_call_operand.vmem [shape: bf16[128,2048], index: 9, kind: input, shape index: {}]
  %s10 = inlined_call_operand.vmem [shape: f32[1,2048], index: 10, kind: input, shape index: {}]
  %s11 = inlined_call_operand.vmem [shape: bf16[2048,128], index: 11, kind: input, shape index: {}]
  %s12 = inlined_call_operand.vmem [shape: f32[1,128], index: 12, kind: input, shape index: {}]
  %s13 = inlined_call_operand.vmem [shape: f32[1,128], index: 13, kind: input, shape index: {}]
  %s14 = inlined_call_operand.vmem [shape: f32[1,128], index: 14, kind: input, shape index: {}]
  %s15 = inlined_call_operand.vmem [shape: bf16[128,128], index: 15, kind: input, shape index: {}]
  %s16 = inlined_call_operand.vmem [shape: f32[1,128], index: 16, kind: input, shape index: {}]
  %s17 = inlined_call_operand.vmem [shape: f32[2,128,128], index: 17, kind: output, shape index: {}]
  %s18 = sld [smem:[#allocation0]]
  $region101: #{transformer_forward.1} parent=0
    _
  %s20 = ssub.s32 1, %s18
  %s21 = scalar_select 0, %s20, %s18
  loop: start=0, step=1, limit=4
  $region2: #{transformer_forward.1} parent=0 // loop_pre_header
    _
  $region3: #{transformer_forward.1} parent=0 // loop_header
    %s23 = sphi 0, %s27
    %p24 = scmp.ge.s32.totalorder %s23, 4
    %s33 = sphi 0, %s35
    %s36 = sphi 0, %s33
    %s37 = sphi 0, %s36
    %s53 = sphi 0, %s37
    %s57 = sphi 0, %s57
    %s59 = sphi 0, %s57
    %s60 = sphi 0, %s59
    %s74 = sphi 0, %s60
    %s78 = sphi 0, %s78
    %s80 = sphi 0, %s78
    %s81 = sphi 0, %s80
    %s95 = sphi 0, %s81
    %s99 = sphi 0, %s99
    %s101 = sphi 0, %s99
    %s102 = sphi 0, %s101
    %s116 = sphi 0, %s102
    %s120 = sphi 0, %s120
    %s122 = sphi 0, %s120
    %s123 = sphi 0, %s122
    %s137 = sphi 0, %s123
    %s141 = sphi 0, %s141
    %s143 = sphi 0, %s141
    %s144 = sphi 0, %s143
    %s158 = sphi 0, %s144
    %s162 = sphi 0, %s162
    %s164 = sphi 0, %s162
    %s165 = sphi 0, %s164
    %s179 = sphi 0, %s165
    %s183 = sphi 0, %s183
    %s185 = sphi 0, %s183
    %s186 = sphi 0, %s185
    %s200 = sphi 0, %s186
    %s204 = sphi 0, %s204
    %s206 = sphi 0, %s204
    %s207 = sphi 0, %s206
    %s221 = sphi 0, %s207
    %s225 = sphi 0, %s225
    %s227 = sphi 0, %s225
    %s228 = sphi 0, %s227
    %s242 = sphi 0, %s228
    %s246 = sphi 0, %s246
    %s248 = sphi 0, %s246
    %s249 = sphi 0, %s248
    %s263 = sphi 0, %s249
    %s267 = sphi 0, %s267
    %s269 = sphi 0, %s267
    %s270 = sphi 0, %s269
    %s284 = sphi 0, %s270
    %s288 = sphi 0, %s288
    %s290 = sphi 0, %s288
    %s291 = sphi 0, %s290
    %s305 = sphi 0, %s291
    %s309 = sphi 0, %s309
    %s311 = sphi 0, %s309
    %s312 = sphi 0, %s311
    %s326 = sphi 0, %s312
    %s330 = sphi 0, %s330
    %s332 = sphi 0, %s330
    %s333 = sphi 0, %s332
    %s347 = sphi 0, %s333
    %s351 = sphi 0, %s351
    %s353 = sphi 0, %s351
    %s354 = sphi 0, %s353
    %s368 = sphi 0, %s354
    %s372 = sphi 0, %s372
    %s374 = sphi 0, %s372
    %s375 = sphi 0, %s374
    %s389 = sphi 0, %s375
    %s395 = sphi 0, %s397
    %s398 = sphi 0, %s395
    %s399 = sphi 0, %s398
    %s415 = sphi 0, %s399
  $region4: #{transformer_forward.1} parent=0 // loop_header_branch
    %26 = sbr.rel (%p24) target = $region8
  $region5: #{transformer_forward.1} parent=0 // loop_body
    %s28 = ssub.s32 %s23, 1
    %s29 = ssub.s32 %s23, 2
    %s30 = sadd.s32 %s23, 1
    %s31 = ssub.s32 %s23, %s30
    %p32 = scmp.eq.s32.totalorder %s31, 0
    %s34 = sadd.s32 %s33, 1
    %s35 = scalar_select %p32, %s33, %s34
    %p38 = pneg %p32
    %p39 = scmp.eq.s32.totalorder %s23, 1
    %p40 = por %p38, %p39
    %p41 = scmp.ne.s32.totalorder %s33, %s36
    %p42 = scmp.eq.s32.totalorder %s23, 0
    %p43 = por %p41, %p42
    %p44 = scmp.ne.s32.totalorder %s33, %s36
    %p45 = scmp.eq.s32.totalorder %s28, 1
    %p46 = por %p44, %p45
    %p47 = scmp.ne.s32.totalorder %s36, %s37
    %p48 = scmp.eq.s32.totalorder %s28, 0
    %p49 = por %p47, %p48
    %p50 = scmp.ne.s32.totalorder %s36, %s37
    %p51 = scmp.eq.s32.totalorder %s29, 1
    %p52 = por %p50, %p51
    %p54 = scmp.ne.s32.totalorder %s37, %s53
    %p55 = scmp.eq.s32.totalorder %s29, 0
    %p56 = por %p54, %p55
    %s58 = sadd.s32 %s57, 1
    %p61 = scmp.eq.s32.totalorder %s23, 1
    %p62 = scmp.ne.s32.totalorder %s57, %s59
    %p63 = scmp.eq.s32.totalorder %s23, 0
    %p64 = por %p62, %p63
    %p65 = scmp.ne.s32.totalorder %s57, %s59
    %p66 = scmp.eq.s32.totalorder %s28, 1
    %p67 = por %p65, %p66
    %p68 = scmp.ne.s32.totalorder %s59, %s60
    %p69 = scmp.eq.s32.totalorder %s28, 0
    %p70 = por %p68, %p69
    %p71 = scmp.ne.s32.totalorder %s59, %s60
    %p72 = scmp.eq.s32.totalorder %s29, 1
    %p73 = por %p71, %p72
    %p75 = scmp.ne.s32.totalorder %s60, %s74
    %p76 = scmp.eq.s32.totalorder %s29, 0
    %p77 = por %p75, %p76
    %s79 = sadd.s32 %s78, 1
    %p82 = scmp.eq.s32.totalorder %s23, 1
    %p83 = scmp.ne.s32.totalorder %s78, %s80
    %p84 = scmp.eq.s32.totalorder %s23, 0
    %p85 = por %p83, %p84
    %p86 = scmp.ne.s32.totalorder %s78, %s80
    %p87 = scmp.eq.s32.totalorder %s28, 1
    %p88 = por %p86, %p87
    %p89 = scmp.ne.s32.totalorder %s80, %s81
    %p90 = scmp.eq.s32.totalorder %s28, 0
    %p91 = por %p89, %p90
    %p92 = scmp.ne.s32.totalorder %s80, %s81
    %p93 = scmp.eq.s32.totalorder %s29, 1
    %p94 = por %p92, %p93
    %p96 = scmp.ne.s32.totalorder %s81, %s95
    %p97 = scmp.eq.s32.totalorder %s29, 0
    %p98 = por %p96, %p97
    %s100 = sadd.s32 %s99, 1
    %p103 = scmp.eq.s32.totalorder %s23, 1
    %p104 = scmp.ne.s32.totalorder %s99, %s101
    %p105 = scmp.eq.s32.totalorder %s23, 0
    %p106 = por %p104, %p105
    %p107 = scmp.ne.s32.totalorder %s99, %s101
    %p108 = scmp.eq.s32.totalorder %s28, 1
    %p109 = por %p107, %p108
    %p110 = scmp.ne.s32.totalorder %s101, %s102
    %p111 = scmp.eq.s32.totalorder %s28, 0
    %p112 = por %p110, %p111
    %p113 = scmp.ne.s32.totalorder %s101, %s102
    %p114 = scmp.eq.s32.totalorder %s29, 1
    %p115 = por %p113, %p114
    %p117 = scmp.ne.s32.totalorder %s102, %s116
    %p118 = scmp.eq.s32.totalorder %s29, 0
    %p119 = por %p117, %p118
    %s121 = sadd.s32 %s120, 1
    %p124 = scmp.eq.s32.totalorder %s23, 1
    %p125 = scmp.ne.s32.totalorder %s120, %s122
    %p126 = scmp.eq.s32.totalorder %s23, 0
    %p127 = por %p125, %p126
    %p128 = scmp.ne.s32.totalorder %s120, %s122
    %p129 = scmp.eq.s32.totalorder %s28, 1
    %p130 = por %p128, %p129
    %p131 = scmp.ne.s32.totalorder %s122, %s123
    %p132 = scmp.eq.s32.totalorder %s28, 0
    %p133 = por %p131, %p132
    %p134 = scmp.ne.s32.totalorder %s122, %s123
    %p135 = scmp.eq.s32.totalorder %s29, 1
    %p136 = por %p134, %p135
    %p138 = scmp.ne.s32.totalorder %s123, %s137
    %p139 = scmp.eq.s32.totalorder %s29, 0
    %p140 = por %p138, %p139
    %s142 = sadd.s32 %s141, 1
    %p145 = scmp.eq.s32.totalorder %s23, 1
    %p146 = scmp.ne.s32.totalorder %s141, %s143
    %p147 = scmp.eq.s32.totalorder %s23, 0
    %p148 = por %p146, %p147
    %p149 = scmp.ne.s32.totalorder %s141, %s143
    %p150 = scmp.eq.s32.totalorder %s28, 1
    %p151 = por %p149, %p150
    %p152 = scmp.ne.s32.totalorder %s143, %s144
    %p153 = scmp.eq.s32.totalorder %s28, 0
    %p154 = por %p152, %p153
    %p155 = scmp.ne.s32.totalorder %s143, %s144
    %p156 = scmp.eq.s32.totalorder %s29, 1
    %p157 = por %p155, %p156
    %p159 = scmp.ne.s32.totalorder %s144, %s158
    %p160 = scmp.eq.s32.totalorder %s29, 0
    %p161 = por %p159, %p160
    %s163 = sadd.s32 %s162, 1
    %p166 = scmp.eq.s32.totalorder %s23, 1
    %p167 = scmp.ne.s32.totalorder %s162, %s164
    %p168 = scmp.eq.s32.totalorder %s23, 0
    %p169 = por %p167, %p168
    %p170 = scmp.ne.s32.totalorder %s162, %s164
    %p171 = scmp.eq.s32.totalorder %s28, 1
    %p172 = por %p170, %p171
    %p173 = scmp.ne.s32.totalorder %s164, %s165
    %p174 = scmp.eq.s32.totalorder %s28, 0
    %p175 = por %p173, %p174
    %p176 = scmp.ne.s32.totalorder %s164, %s165
    %p177 = scmp.eq.s32.totalorder %s29, 1
    %p178 = por %p176, %p177
    %p180 = scmp.ne.s32.totalorder %s165, %s179
    %p181 = scmp.eq.s32.totalorder %s29, 0
    %p182 = por %p180, %p181
    %s184 = sadd.s32 %s183, 1
    %p187 = scmp.eq.s32.totalorder %s23, 1
    %p188 = scmp.ne.s32.totalorder %s183, %s185
    %p189 = scmp.eq.s32.totalorder %s23, 0
    %p190 = por %p188, %p189
    %p191 = scmp.ne.s32.totalorder %s183, %s185
    %p192 = scmp.eq.s32.totalorder %s28, 1
    %p193 = por %p191, %p192
    %p194 = scmp.ne.s32.totalorder %s185, %s186
    %p195 = scmp.eq.s32.totalorder %s28, 0
    %p196 = por %p194, %p195
    %p197 = scmp.ne.s32.totalorder %s185, %s186
    %p198 = scmp.eq.s32.totalorder %s29, 1
    %p199 = por %p197, %p198
    %p201 = scmp.ne.s32.totalorder %s186, %s200
    %p202 = scmp.eq.s32.totalorder %s29, 0
    %p203 = por %p201, %p202
    %s205 = sadd.s32 %s204, 1
    %p208 = scmp.eq.s32.totalorder %s23, 1
    %p209 = scmp.ne.s32.totalorder %s204, %s206
    %p210 = scmp.eq.s32.totalorder %s23, 0
    %p211 = por %p209, %p210
    %p212 = scmp.ne.s32.totalorder %s204, %s206
    %p213 = scmp.eq.s32.totalorder %s28, 1
    %p214 = por %p212, %p213
    %p215 = scmp.ne.s32.totalorder %s206, %s207
    %p216 = scmp.eq.s32.totalorder %s28, 0
    %p217 = por %p215, %p216
    %p218 = scmp.ne.s32.totalorder %s206, %s207
    %p219 = scmp.eq.s32.totalorder %s29, 1
    %p220 = por %p218, %p219
    %p222 = scmp.ne.s32.totalorder %s207, %s221
    %p223 = scmp.eq.s32.totalorder %s29, 0
    %p224 = por %p222, %p223
    %s226 = sadd.s32 %s225, 1
    %p229 = scmp.eq.s32.totalorder %s23, 1
    %p230 = scmp.ne.s32.totalorder %s225, %s227
    %p231 = scmp.eq.s32.totalorder %s23, 0
    %p232 = por %p230, %p231
    %p233 = scmp.ne.s32.totalorder %s225, %s227
    %p234 = scmp.eq.s32.totalorder %s28, 1
    %p235 = por %p233, %p234
    %p236 = scmp.ne.s32.totalorder %s227, %s228
    %p237 = scmp.eq.s32.totalorder %s28, 0
    %p238 = por %p236, %p237
    %p239 = scmp.ne.s32.totalorder %s227, %s228
    %p240 = scmp.eq.s32.totalorder %s29, 1
    %p241 = por %p239, %p240
    %p243 = scmp.ne.s32.totalorder %s228, %s242
    %p244 = scmp.eq.s32.totalorder %s29, 0
    %p245 = por %p243, %p244
    %s247 = sadd.s32 %s246, 1
    %p250 = scmp.eq.s32.totalorder %s23, 1
    %p251 = scmp.ne.s32.totalorder %s246, %s248
    %p252 = scmp.eq.s32.totalorder %s23, 0
    %p253 = por %p251, %p252
    %p254 = scmp.ne.s32.totalorder %s246, %s248
    %p255 = scmp.eq.s32.totalorder %s28, 1
    %p256 = por %p254, %p255
    %p257 = scmp.ne.s32.totalorder %s248, %s249
    %p258 = scmp.eq.s32.totalorder %s28, 0
    %p259 = por %p257, %p258
    %p260 = scmp.ne.s32.totalorder %s248, %s249
    %p261 = scmp.eq.s32.totalorder %s29, 1
    %p262 = por %p260, %p261
    %p264 = scmp.ne.s32.totalorder %s249, %s263
    %p265 = scmp.eq.s32.totalorder %s29, 0
    %p266 = por %p264, %p265
    %s268 = sadd.s32 %s267, 1
    %p271 = scmp.eq.s32.totalorder %s23, 1
    %p272 = scmp.ne.s32.totalorder %s267, %s269
    %p273 = scmp.eq.s32.totalorder %s23, 0
    %p274 = por %p272, %p273
    %p275 = scmp.ne.s32.totalorder %s267, %s269
    %p276 = scmp.eq.s32.totalorder %s28, 1
    %p277 = por %p275, %p276
    %p278 = scmp.ne.s32.totalorder %s269, %s270
    %p279 = scmp.eq.s32.totalorder %s28, 0
    %p280 = por %p278, %p279
    %p281 = scmp.ne.s32.totalorder %s269, %s270
    %p282 = scmp.eq.s32.totalorder %s29, 1
    %p283 = por %p281, %p282
    %p285 = scmp.ne.s32.totalorder %s270, %s284
    %p286 = scmp.eq.s32.totalorder %s29, 0
    %p287 = por %p285, %p286
    %s289 = sadd.s32 %s288, 1
    %p292 = scmp.eq.s32.totalorder %s23, 1
    %p293 = scmp.ne.s32.totalorder %s288, %s290
    %p294 = scmp.eq.s32.totalorder %s23, 0
    %p295 = por %p293, %p294
    %p296 = scmp.ne.s32.totalorder %s288, %s290
    %p297 = scmp.eq.s32.totalorder %s28, 1
    %p298 = por %p296, %p297
    %p299 = scmp.ne.s32.totalorder %s290, %s291
    %p300 = scmp.eq.s32.totalorder %s28, 0
    %p301 = por %p299, %p300
    %p302 = scmp.ne.s32.totalorder %s290, %s291
    %p303 = scmp.eq.s32.totalorder %s29, 1
    %p304 = por %p302, %p303
    %p306 = scmp.ne.s32.totalorder %s291, %s305
    %p307 = scmp.eq.s32.totalorder %s29, 0
    %p308 = por %p306, %p307
    %s310 = sadd.s32 %s309, 1
    %p313 = scmp.eq.s32.totalorder %s23, 1
    %p314 = scmp.ne.s32.totalorder %s309, %s311
    %p315 = scmp.eq.s32.totalorder %s23, 0
    %p316 = por %p314, %p315
    %p317 = scmp.ne.s32.totalorder %s309, %s311
    %p318 = scmp.eq.s32.totalorder %s28, 1
    %p319 = por %p317, %p318
    %p320 = scmp.ne.s32.totalorder %s311, %s312
    %p321 = scmp.eq.s32.totalorder %s28, 0
    %p322 = por %p320, %p321
    %p323 = scmp.ne.s32.totalorder %s311, %s312
    %p324 = scmp.eq.s32.totalorder %s29, 1
    %p325 = por %p323, %p324
    %p327 = scmp.ne.s32.totalorder %s312, %s326
    %p328 = scmp.eq.s32.totalorder %s29, 0
    %p329 = por %p327, %p328
    %s331 = sadd.s32 %s330, 1
    %p334 = scmp.eq.s32.totalorder %s23, 1
    %p335 = scmp.ne.s32.totalorder %s330, %s332
    %p336 = scmp.eq.s32.totalorder %s23, 0
    %p337 = por %p335, %p336
    %p338 = scmp.ne.s32.totalorder %s330, %s332
    %p339 = scmp.eq.s32.totalorder %s28, 1
    %p340 = por %p338, %p339
    %p341 = scmp.ne.s32.totalorder %s332, %s333
    %p342 = scmp.eq.s32.totalorder %s28, 0
    %p343 = por %p341, %p342
    %p344 = scmp.ne.s32.totalorder %s332, %s333
    %p345 = scmp.eq.s32.totalorder %s29, 1
    %p346 = por %p344, %p345
    %p348 = scmp.ne.s32.totalorder %s333, %s347
    %p349 = scmp.eq.s32.totalorder %s29, 0
    %p350 = por %p348, %p349
    %s352 = sadd.s32 %s351, 1
    %p355 = scmp.eq.s32.totalorder %s23, 1
    %p356 = scmp.ne.s32.totalorder %s351, %s353
    %p357 = scmp.eq.s32.totalorder %s23, 0
    %p358 = por %p356, %p357
    %p359 = scmp.ne.s32.totalorder %s351, %s353
    %p360 = scmp.eq.s32.totalorder %s28, 1
    %p361 = por %p359, %p360
    %p362 = scmp.ne.s32.totalorder %s353, %s354
    %p363 = scmp.eq.s32.totalorder %s28, 0
    %p364 = por %p362, %p363
    %p365 = scmp.ne.s32.totalorder %s353, %s354
    %p366 = scmp.eq.s32.totalorder %s29, 1
    %p367 = por %p365, %p366
    %p369 = scmp.ne.s32.totalorder %s354, %s368
    %p370 = scmp.eq.s32.totalorder %s29, 0
    %p371 = por %p369, %p370
    %s373 = sadd.s32 %s372, 1
    %p376 = scmp.eq.s32.totalorder %s23, 1
    %p377 = scmp.ne.s32.totalorder %s372, %s374
    %p378 = scmp.eq.s32.totalorder %s23, 0
    %p379 = por %p377, %p378
    %p380 = scmp.ne.s32.totalorder %s372, %s374
    %p381 = scmp.eq.s32.totalorder %s28, 1
    %p382 = por %p380, %p381
    %p383 = scmp.ne.s32.totalorder %s374, %s375
    %p384 = scmp.eq.s32.totalorder %s28, 0
    %p385 = por %p383, %p384
    %p386 = scmp.ne.s32.totalorder %s374, %s375
    %p387 = scmp.eq.s32.totalorder %s29, 1
    %p388 = por %p386, %p387
    %p390 = scmp.ne.s32.totalorder %s375, %s389
    %p391 = scmp.eq.s32.totalorder %s29, 0
    %p392 = por %p390, %p391
    %s393 = ssub.s32 %s23, %s30
    %p394 = scmp.eq.s32.totalorder %s393, 0
    %s396 = sadd.s32 %s395, 1
    %s397 = scalar_select %p394, %s395, %s396
    %p400 = pneg %p394
    %p401 = scmp.eq.s32.totalorder %s23, 1
    %p402 = por %p400, %p401
    %p403 = scmp.ne.s32.totalorder %s395, %s398
    %p404 = scmp.eq.s32.totalorder %s23, 0
    %p405 = por %p403, %p404
    %p406 = scmp.ne.s32.totalorder %s395, %s398
    %p407 = scmp.eq.s32.totalorder %s28, 1
    %p408 = por %p406, %p407
    %p409 = scmp.ne.s32.totalorder %s398, %s399
    %p410 = scmp.eq.s32.totalorder %s28, 0
    %p411 = por %p409, %p410
    %p412 = scmp.ne.s32.totalorder %s398, %s399
    %p413 = scmp.eq.s32.totalorder %s29, 1
    %p414 = por %p412, %p413
    %p416 = scmp.ne.s32.totalorder %s399, %s415
    %p417 = scmp.eq.s32.totalorder %s29, 0
    %p418 = por %p416, %p417
    %p419 = scmp.le.s32.totalorder 1, %s23
    %p420 = scmp.lt.s32.totalorder %s23, 3
    %p421 = pnand %p419, %p420
    %p422 = pneg %p421
    // Predicated region
    $region9: #{transformer_forward.1} parent=5 // pred_check
      _
    $region10: #{transformer_forward.1} parent=5 // pred_check_branch
      %424 = sbr.rel (%p421) target = $region12
    $region11: #{transformer_forward.1} parent=5 // pred_region
      %s425 = ssub.s32 %s23, 1
      // Predicated region
      $region13: #{transformer_forward.1} parent=11 // pred_check
        %p426 = pneg %p70
      $region14: #{transformer_forward.1} parent=11 // pred_check_branch
        %428 = sbr.rel (%p426) target = $region16
      $region15: #{transformer_forward.1} parent=11 // pred_region
        _
      $region16: #{transformer_forward.1} parent=11 // pred_fallthru
        _
      // Predicated region
      $region17: #{transformer_forward.1} parent=11 // pred_check
        %p429 = pneg %p91
      $region18: #{transformer_forward.1} parent=11 // pred_check_branch
        %431 = sbr.rel (%p429) target = $region20
      $region19: #{transformer_forward.1} parent=11 // pred_region
        _
      $region20: #{transformer_forward.1} parent=11 // pred_fallthru
        _
      // Predicated region
      $region21: #{transformer_forward.1} parent=11 // pred_check
        %p432 = pneg %p112
      $region22: #{transformer_forward.1} parent=11 // pred_check_branch
        %434 = sbr.rel (%p432) target = $region24
      $region23: #{transformer_forward.1} parent=11 // pred_region
        _
      $region24: #{transformer_forward.1} parent=11 // pred_fallthru
        _
      // Predicated region
      $region25: #{transformer_forward.1} parent=11 // pred_check
        %p435 = pneg %p133
      $region26: #{transformer_forward.1} parent=11 // pred_check_branch
        %437 = sbr.rel (%p435) target = $region28
      $region27: #{transformer_forward.1} parent=11 // pred_region
        _
      $region28: #{transformer_forward.1} parent=11 // pred_fallthru
        _
      // Predicated region
      $region29: #{transformer_forward.1} parent=11 // pred_check
        %p438 = pneg %p154
      $region30: #{transformer_forward.1} parent=11 // pred_check_branch
        %440 = sbr.rel (%p438) target = $region32
      $region31: #{transformer_forward.1} parent=11 // pred_region
        _
      $region32: #{transformer_forward.1} parent=11 // pred_fallthru
        _
      // Predicated region
      $region33: #{transformer_forward.1} parent=11 // pred_check
        %p441 = pneg %p175
      $region34: #{transformer_forward.1} parent=11 // pred_check_branch
        %443 = sbr.rel (%p441) target = $region36
      $region35: #{transformer_forward.1} parent=11 // pred_region
        _
      $region36: #{transformer_forward.1} parent=11 // pred_fallthru
        _
      // Predicated region
      $region37: #{transformer_forward.1} parent=11 // pred_check
        %p444 = pneg %p196
      $region38: #{transformer_forward.1} parent=11 // pred_check_branch
        %446 = sbr.rel (%p444) target = $region40
      $region39: #{transformer_forward.1} parent=11 // pred_region
        _
      $region40: #{transformer_forward.1} parent=11 // pred_fallthru
        _
      // Predicated region
      $region41: #{transformer_forward.1} parent=11 // pred_check
        %p447 = pneg %p217
      $region42: #{transformer_forward.1} parent=11 // pred_check_branch
        %449 = sbr.rel (%p447) target = $region44
      $region43: #{transformer_forward.1} parent=11 // pred_region
        _
      $region44: #{transformer_forward.1} parent=11 // pred_fallthru
        _
      // Predicated region
      $region45: #{transformer_forward.1} parent=11 // pred_check
        %p450 = pneg %p238
      $region46: #{transformer_forward.1} parent=11 // pred_check_branch
        %452 = sbr.rel (%p450) target = $region48
      $region47: #{transformer_forward.1} parent=11 // pred_region
        _
      $region48: #{transformer_forward.1} parent=11 // pred_fallthru
        _
      // Predicated region
      $region49: #{transformer_forward.1} parent=11 // pred_check
        %p453 = pneg %p259
      $region50: #{transformer_forward.1} parent=11 // pred_check_branch
        %455 = sbr.rel (%p453) target = $region52
      $region51: #{transformer_forward.1} parent=11 // pred_region
        _
      $region52: #{transformer_forward.1} parent=11 // pred_fallthru
        _
      // Predicated region
      $region53: #{transformer_forward.1} parent=11 // pred_check
        %p456 = pneg %p280
      $region54: #{transformer_forward.1} parent=11 // pred_check_branch
        %458 = sbr.rel (%p456) target = $region56
      $region55: #{transformer_forward.1} parent=11 // pred_region
        _
      $region56: #{transformer_forward.1} parent=11 // pred_fallthru
        _
      // Predicated region
      $region57: #{transformer_forward.1} parent=11 // pred_check
        %p459 = pneg %p301
      $region58: #{transformer_forward.1} parent=11 // pred_check_branch
        %461 = sbr.rel (%p459) target = $region60
      $region59: #{transformer_forward.1} parent=11 // pred_region
        _
      $region60: #{transformer_forward.1} parent=11 // pred_fallthru
        _
      // Predicated region
      $region61: #{transformer_forward.1} parent=11 // pred_check
        %p462 = pneg %p322
      $region62: #{transformer_forward.1} parent=11 // pred_check_branch
        %464 = sbr.rel (%p462) target = $region64
      $region63: #{transformer_forward.1} parent=11 // pred_region
        _
      $region64: #{transformer_forward.1} parent=11 // pred_fallthru
        _
      // Predicated region
      $region65: #{transformer_forward.1} parent=11 // pred_check
        %p465 = pneg %p343
      $region66: #{transformer_forward.1} parent=11 // pred_check_branch
        %467 = sbr.rel (%p465) target = $region68
      $region67: #{transformer_forward.1} parent=11 // pred_region
        _
      $region68: #{transformer_forward.1} parent=11 // pred_fallthru
        _
      // Predicated region
      $region69: #{transformer_forward.1} parent=11 // pred_check
        %p468 = pneg %p364
      $region70: #{transformer_forward.1} parent=11 // pred_check_branch
        %470 = sbr.rel (%p468) target = $region72
      $region71: #{transformer_forward.1} parent=11 // pred_region
        _
      $region72: #{transformer_forward.1} parent=11 // pred_fallthru
        _
      // Predicated region
      $region73: #{transformer_forward.1} parent=11 // pred_check
        %p471 = pneg %p385
      $region74: #{transformer_forward.1} parent=11 // pred_check_branch
        %473 = sbr.rel (%p471) target = $region76
      $region75: #{transformer_forward.1} parent=11 // pred_region
        _
      $region76: #{transformer_forward.1} parent=11 // pred_fallthru
        _
    $region12: #{transformer_forward.1} parent=5 // pred_fallthru
      _
    %p474 = scmp.lt.s32.totalorder %s23, 2
    // Predicated region
    $region77: #{transformer_forward.1} parent=5 // pred_check
      %p475 = pneg %p474
    $region78: #{transformer_forward.1} parent=5 // pred_check_branch
      %477 = sbr.rel (%p475) target = $region80
    $region79: #{transformer_forward.1} parent=5 // pred_region
      // Predicated region
      $region81: #{transformer_forward.1} parent=79 // pred_check
        %p478 = pneg %p43
      $region82: #{transformer_forward.1} parent=79 // pred_check_branch
        %480 = sbr.rel (%p478) target = $region84
      $region83: #{transformer_forward.1} parent=79 // pred_region
        %p481 = scmp.lt.s32.totalorder %s23, 1
        %s482 = scalar_select %p481, %s23, 1
        %s483 = smul.addr %s482, 16
        %s484 = smul.addr %s483, 8
        %s485 = scalar_lea.vmem %s0, %s484
      $region84: #{transformer_forward.1} parent=79 // pred_fallthru
        _
    $region80: #{transformer_forward.1} parent=5 // pred_fallthru
      _
    %p486 = scmp.le.s32.totalorder 1, %s23
    %p487 = scmp.lt.s32.totalorder %s23, 3
    %p488 = pnand %p486, %p487
    %p489 = pneg %p488
    // Predicated region
    $region85: #{transformer_forward.1} parent=5 // pred_check
      _
    $region86: #{transformer_forward.1} parent=5 // pred_check_branch
      %491 = sbr.rel (%p488) target = $region88
    $region87: #{transformer_forward.1} parent=5 // pred_region
      %s492 = ssub.s32 %s23, 1
      %p493 = scmp.lt.s32.totalorder %s28, 1
      %s494 = scalar_select %p493, %s28, 1
      %s495 = smul.addr %s494, 16
      %s496 = smul.addr %s495, 8
      %s497 = scalar_lea.vmem %s0, %s496
      %p498 = pneg %p49
      %p499 = pneg %p46
      %p500 = pneg %p70
      %p501 = pneg %p67
      %p502 = pneg %p91
      %p503 = pneg %p88
      %p504 = pneg %p112
      %p505 = pneg %p109
      %p506 = pneg %p133
      %p507 = pneg %p130
      %p508 = pneg %p154
      %p509 = pneg %p151
      %p510 = pneg %p175
      %p511 = pneg %p172
      %p512 = pneg %p196
      %p513 = pneg %p193
      %p514 = pneg %p217
      %p515 = pneg %p214
      %p516 = pneg %p238
      %p517 = pneg %p235
      %p518 = pneg %p259
      %p519 = pneg %p256
      %p520 = pneg %p280
      %p521 = pneg %p277
      %p522 = pneg %p301
      %p523 = pneg %p298
      %p524 = pneg %p322
      %p525 = pneg %p319
      %p526 = pneg %p343
      %p527 = pneg %p340
      %p528 = pneg %p364
      %p529 = pneg %p361
      %p530 = pneg %p385
      %p531 = pneg %p382
      %p532 = pneg %p411
      %p533 = pneg %p408
      %p534 = scmp.lt.s32.totalorder %s28, 1
      %s535 = scalar_select %p534, %s28, 1
      %s536 = smul.addr %s535, 16
      %s537 = smul.addr %s536, 8
      %s538 = scalar_lea.vmem %s17, %s537
      %p539 = scmp.lt.s32.totalorder %s28, 1
      %s540 = scalar_select %p539, %s28, 1
      %s541 = smul.addr %s540, 16
      %s542 = smul.addr %s541, 8
      %s543 = scalar_lea.vmem %s0, %s542
      %p544 = scmp.lt.s32.totalorder %s28, 1
      %s545 = scalar_select %p544, %s28, 1
      %s546 = smul.addr %s545, 16
      %s547 = smul.addr %s546, 8
      %s548 = scalar_lea.vmem %s17, %s547
      %v549 = vld [vmem:[%s543] sm:$0xff]
      %v550 = vld [vmem:[%s543 + $0x8] sm:$0xff]
      %v551 = vld [vmem:[%s543 + $0x10] sm:$0xff]
      %v552 = vld [vmem:[%s543 + $0x18] sm:$0xff]
      %v553 = vld [vmem:[%s543 + $0x20] sm:$0xff]
      %v554 = vld [vmem:[%s543 + $0x28] sm:$0xff]
      %v555 = vld [vmem:[%s543 + $0x30] sm:$0xff]
      %v556 = vld [vmem:[%s543 + $0x38] sm:$0xff]
      %v557 = vld [vmem:[%s543 + $0x40] sm:$0xff]
      %v558 = vld [vmem:[%s543 + $0x48] sm:$0xff]
      %v559 = vld [vmem:[%s543 + $0x50] sm:$0xff]
      %v560 = vld [vmem:[%s543 + $0x58] sm:$0xff]
      %v561 = vld [vmem:[%s543 + $0x60] sm:$0xff]
      %v562 = vld [vmem:[%s543 + $0x68] sm:$0xff]
      %v563 = vld [vmem:[%s543 + $0x70] sm:$0xff]
      %v564 = vld [vmem:[%s543 + $0x78] sm:$0xff]
      %v565 = vld [vmem:[%s1] sm:$0xf]
      %v566 = vld [vmem:[%s1 + $0x4] sm:$0xf]
      %v567 = vld [vmem:[%s1 + $0x8] sm:$0xf]
      %v568 = vld [vmem:[%s1 + $0xc] sm:$0xf]
      %v569 = vld [vmem:[%s1 + $0x10] sm:$0xf]
      %v570 = vld [vmem:[%s1 + $0x14] sm:$0xf]
      %v571 = vld [vmem:[%s1 + $0x18] sm:$0xf]
      %v572 = vld [vmem:[%s1 + $0x1c] sm:$0xf]
      %v573 = vld [vmem:[%s1 + $0x20] sm:$0xf]
      %v574 = vld [vmem:[%s1 + $0x24] sm:$0xf]
      %v575 = vld [vmem:[%s1 + $0x28] sm:$0xf]
      %v576 = vld [vmem:[%s1 + $0x2c] sm:$0xf]
      %v577 = vld [vmem:[%s1 + $0x30] sm:$0xf]
      %v578 = vld [vmem:[%s1 + $0x34] sm:$0xf]
      %v579 = vld [vmem:[%s1 + $0x38] sm:$0xf]
      %v580 = vld [vmem:[%s1 + $0x3c] sm:$0xf]
      %v581 = vpack.c.bf16 %v550, %v549
      %v582 = vpack.c.bf16 %v552, %v551
      %v583 = vpack.c.bf16 %v554, %v553
      %v584 = vpack.c.bf16 %v556, %v555
      %v585 = vpack.c.bf16 %v558, %v557
      %v586 = vpack.c.bf16 %v560, %v559
      %v587 = vpack.c.bf16 %v562, %v561
      %v588 = vpack.c.bf16 %v564, %v563
      %v589 = vld [vmem:[%s2] sm:$0x1]
      %v591 = vperm.slane %v589, 0
      %v609 = vunpack.c.l.b16 %v565
      %v610 = vunpack.c.l.b16 %v566
      %v611 = vunpack.c.l.b16 %v567
      %v612 = vunpack.c.l.b16 %v568
      %v613 = vunpack.c.l.b16 %v569
      %v614 = vunpack.c.l.b16 %v570
      %v615 = vunpack.c.l.b16 %v571
      %v616 = vunpack.c.l.b16 %v572
      %v617 = vunpack.c.l.b16 %v573
      %v618 = vunpack.c.l.b16 %v574
      %v619 = vunpack.c.l.b16 %v575
      %v620 = vunpack.c.l.b16 %v576
      %v621 = vunpack.c.l.b16 %v577
      %v622 = vunpack.c.l.b16 %v578
      %v623 = vunpack.c.l.b16 %v579
      %v624 = vunpack.c.l.b16 %v580
      %v625 = vpack.c.b16 %v610, %v609
      %v626 = vpack.c.b16 %v612, %v611
      %v627 = vpack.c.b16 %v614, %v613
      %v628 = vpack.c.b16 %v616, %v615
      %v629 = vpack.c.b16 %v618, %v617
      %v630 = vpack.c.b16 %v620, %v619
      %v631 = vpack.c.b16 %v622, %v621
      %v632 = vpack.c.b16 %v624, %v623
      %641 = vmatpush.bf16.msra.mxu0 %v632
      %642 = vmatpush.bf16.msra.mxu0 %v631
      %643 = vmatpush.bf16.msra.mxu0 %v630
      %644 = vmatpush.bf16.msra.mxu0 %v629
      %645 = vmatpush.bf16.msra.mxu0 %v628
      %646 = vmatpush.bf16.msra.mxu0 %v627
      %647 = vmatpush.bf16.msra.mxu0 %v626
      %648 = vmatpush.bf16.msra.mxu0 %v625
      %649 = vmatmul.bf16.gmra.mxu0 %v581
      %v650 = vpop.f32.mrf.mxu0
      %v651 = vadd.f32 %v591, %v650
      %v652 = vpop.f32.mrf.mxu0
      %v653 = vadd.f32 %v591, %v652
      %654 = vmatmul.bf16.gmra.mxu0 %v582
      %v655 = vpop.f32.mrf.mxu0
      %v656 = vadd.f32 %v591, %v655
      %v657 = vpop.f32.mrf.mxu0
      %v658 = vadd.f32 %v591, %v657
      %659 = vmatmul.bf16.gmra.mxu0 %v583
      %v660 = vpop.f32.mrf.mxu0
      %v661 = vadd.f32 %v591, %v660
      %v662 = vpop.f32.mrf.mxu0
      %v663 = vadd.f32 %v591, %v662
      %664 = vmatmul.bf16.gmra.mxu0 %v584
      %v665 = vpop.f32.mrf.mxu0
      %v666 = vadd.f32 %v591, %v665
      %v667 = vpop.f32.mrf.mxu0
      %v668 = vadd.f32 %v591, %v667
      %669 = vmatmul.bf16.gmra.mxu0 %v585
      %v670 = vpop.f32.mrf.mxu0
      %v671 = vadd.f32 %v591, %v670
      %v672 = vpop.f32.mrf.mxu0
      %v673 = vadd.f32 %v591, %v672
      %674 = vmatmul.bf16.gmra.mxu0 %v586
      %v675 = vpop.f32.mrf.mxu0
      %v676 = vadd.f32 %v591, %v675
      %v677 = vpop.f32.mrf.mxu0
      %v678 = vadd.f32 %v591, %v677
      %679 = vmatmul.bf16.gmra.mxu0 %v587
      %v680 = vpop.f32.mrf.mxu0
      %v681 = vadd.f32 %v591, %v680
      %v682 = vpop.f32.mrf.mxu0
      %v683 = vadd.f32 %v591, %v682
      %684 = vmatmul.bf16.gmra.mxu0 %v588
      %v685 = vpop.f32.mrf.mxu0
      %v686 = vadd.f32 %v591, %v685
      %v687 = vpop.f32.mrf.mxu0
      %v688 = vadd.f32 %v591, %v687
      %689 = vdwg.mxu0
      %v690 = vld [vmem:[%s3] sm:$0xff]
      %v691 = vld [vmem:[%s3 + $0x8] sm:$0xf]
      %v692 = vld [vmem:[%s3 + $0xc] sm:$0xff]
      %v693 = vld [vmem:[%s3 + $0x14] sm:$0xf]
      %v694 = vld [vmem:[%s3 + $0x18] sm:$0xff]
      %v695 = vld [vmem:[%s3 + $0x20] sm:$0xf]
      %v696 = vld [vmem:[%s3 + $0x24] sm:$0xff]
      %v697 = vld [vmem:[%s3 + $0x2c] sm:$0xf]
      %v698 = vld [vmem:[%s3 + $0x30] sm:$0xff]
      %v699 = vld [vmem:[%s3 + $0x38] sm:$0xf]
      %v700 = vld [vmem:[%s3 + $0x3c] sm:$0xff]
      %v701 = vld [vmem:[%s3 + $0x44] sm:$0xf]
      %v702 = vld [vmem:[%s3 + $0x48] sm:$0xff]
      %v703 = vld [vmem:[%s3 + $0x50] sm:$0xf]
      %v704 = vld [vmem:[%s3 + $0x54] sm:$0xff]
      %v705 = vld [vmem:[%s3 + $0x5c] sm:$0xf]
      %v706 = vld [vmem:[%s3 + $0x60] sm:$0xff]
      %v707 = vld [vmem:[%s3 + $0x68] sm:$0xf]
      %v708 = vld [vmem:[%s3 + $0x6c] sm:$0xff]
      %v709 = vld [vmem:[%s3 + $0x74] sm:$0xf]
      %v710 = vld [vmem:[%s3 + $0x78] sm:$0xff]
      %v711 = vld [vmem:[%s3 + $0x80] sm:$0xf]
      %v712 = vld [vmem:[%s3 + $0x84] sm:$0xff]
      %v713 = vld [vmem:[%s3 + $0x8c] sm:$0xf]
      %v714 = vld [vmem:[%s3 + $0x90] sm:$0xff]
      %v715 = vld [vmem:[%s3 + $0x98] sm:$0xf]
      %v716 = vld [vmem:[%s3 + $0x9c] sm:$0xff]
      %v717 = vld [vmem:[%s3 + $0xa4] sm:$0xf]
      %v718 = vld [vmem:[%s3 + $0xa8] sm:$0xff]
      %v719 = vld [vmem:[%s3 + $0xb0] sm:$0xf]
      %v720 = vld [vmem:[%s3 + $0xb4] sm:$0xff]
      %v721 = vld [vmem:[%s3 + $0xbc] sm:$0xf]
      %v722 = vpack.c.bf16 %v653, %v651
      %v723 = vpack.c.bf16 %v658, %v656
      %v724 = vpack.c.bf16 %v663, %v661
      %v725 = vpack.c.bf16 %v668, %v666
      %v726 = vpack.c.bf16 %v673, %v671
      %v727 = vpack.c.bf16 %v678, %v676
      %v728 = vpack.c.bf16 %v683, %v681
      %v729 = vpack.c.bf16 %v688, %v686
      %v730 = vld [vmem:[%s4] sm:$0x7]
      %v732 = vperm.slane %v730, 0
      %v733 = vperm.slane %v730, 1
      %v734 = vperm.slane %v730, 2
      %v770 = vunpack.c.l.b16 %v690
      %v771 = vunpack.c.h.b16 %v690
      %v772 = vunpack.c.l.b16 %v691
      %v773 = vunpack.c.l.b16 %v692
      %v774 = vunpack.c.h.b16 %v692
      %v775 = vunpack.c.l.b16 %v693
      %v776 = vunpack.c.l.b16 %v694
      %v777 = vunpack.c.h.b16 %v694
      %v778 = vunpack.c.l.b16 %v695
      %v779 = vunpack.c.l.b16 %v696
      %v780 = vunpack.c.h.b16 %v696
      %v781 = vunpack.c.l.b16 %v697
      %v782 = vunpack.c.l.b16 %v698
      %v783 = vunpack.c.h.b16 %v698
      %v784 = vunpack.c.l.b16 %v699
      %v785 = vunpack.c.l.b16 %v700
      %v786 = vunpack.c.h.b16 %v700
      %v787 = vunpack.c.l.b16 %v701
      %v788 = vunpack.c.l.b16 %v702
      %v789 = vunpack.c.h.b16 %v702
      %v790 = vunpack.c.l.b16 %v703
      %v791 = vunpack.c.l.b16 %v704
      %v792 = vunpack.c.h.b16 %v704
      %v793 = vunpack.c.l.b16 %v705
      %v794 = vunpack.c.l.b16 %v706
      %v795 = vunpack.c.h.b16 %v706
      %v796 = vunpack.c.l.b16 %v707
      %v797 = vunpack.c.l.b16 %v708
      %v798 = vunpack.c.h.b16 %v708
      %v799 = vunpack.c.l.b16 %v709
      %v800 = vunpack.c.l.b16 %v710
      %v801 = vunpack.c.h.b16 %v710
      %v802 = vunpack.c.l.b16 %v711
      %v803 = vunpack.c.l.b16 %v712
      %v804 = vunpack.c.h.b16 %v712
      %v805 = vunpack.c.l.b16 %v713
      %v806 = vunpack.c.l.b16 %v714
      %v807 = vunpack.c.h.b16 %v714
      %v808 = vunpack.c.l.b16 %v715
      %v809 = vunpack.c.l.b16 %v716
      %v810 = vunpack.c.h.b16 %v716
      %v811 = vunpack.c.l.b16 %v717
      %v812 = vunpack.c.l.b16 %v718
      %v813 = vunpack.c.h.b16 %v718
      %v814 = vunpack.c.l.b16 %v719
      %v815 = vunpack.c.l.b16 %v720
      %v816 = vunpack.c.h.b16 %v720
      %v817 = vunpack.c.l.b16 %v721
      %v818 = vpack.c.b16 %v773, %v770
      %v819 = vpack.c.b16 %v774, %v771
      %v820 = vpack.c.b16 %v775, %v772
      %v821 = vpack.c.b16 %v779, %v776
      %v822 = vpack.c.b16 %v780, %v777
      %v823 = vpack.c.b16 %v781, %v778
      %v824 = vpack.c.b16 %v785, %v782
      %v825 = vpack.c.b16 %v786, %v783
      %v826 = vpack.c.b16 %v787, %v784
      %v827 = vpack.c.b16 %v791, %v788
      %v828 = vpack.c.b16 %v792, %v789
      %v829 = vpack.c.b16 %v793, %v790
      %v830 = vpack.c.b16 %v797, %v794
      %v831 = vpack.c.b16 %v798, %v795
      %v832 = vpack.c.b16 %v799, %v796
      %v833 = vpack.c.b16 %v803, %v800
      %v834 = vpack.c.b16 %v804, %v801
      %v835 = vpack.c.b16 %v805, %v802
      %v836 = vpack.c.b16 %v809, %v806
      %v837 = vpack.c.b16 %v810, %v807
      %v838 = vpack.c.b16 %v811, %v808
      %v839 = vpack.c.b16 %v815, %v812
      %v840 = vpack.c.b16 %v816, %v813
      %v841 = vpack.c.b16 %v817, %v814
      %866 = vmatpush.bf16.msra.mxu0 %v839
      %867 = vmatpush.bf16.msra.mxu0 %v836
      %868 = vmatpush.bf16.msra.mxu0 %v833
      %869 = vmatpush.bf16.msra.mxu0 %v830
      %870 = vmatpush.bf16.msra.mxu0 %v827
      %871 = vmatpush.bf16.msra.mxu0 %v824
      %872 = vmatpush.bf16.msra.mxu0 %v821
      %873 = vmatpush.bf16.msra.mxu0 %v818
      %874 = vmatmul.bf16.gmra.mxu0 %v722
      %v875 = vpop.f32.mrf.mxu0
      %v876 = vadd.f32 %v732, %v875
      %v877 = vpop.f32.mrf.mxu0
      %v878 = vadd.f32 %v732, %v877
      %879 = vmatmul.bf16.gmra.mxu0 %v723
      %v880 = vpop.f32.mrf.mxu0
      %v881 = vadd.f32 %v732, %v880
      %v882 = vpop.f32.mrf.mxu0
      %v883 = vadd.f32 %v732, %v882
      %884 = vmatmul.bf16.gmra.mxu0 %v724
      %v885 = vpop.f32.mrf.mxu0
      %v886 = vadd.f32 %v732, %v885
      %v887 = vpop.f32.mrf.mxu0
      %v888 = vadd.f32 %v732, %v887
      %889 = vmatmul.bf16.gmra.mxu0 %v725
      %v890 = vpop.f32.mrf.mxu0
      %v891 = vadd.f32 %v732, %v890
      %v892 = vpop.f32.mrf.mxu0
      %v893 = vadd.f32 %v732, %v892
      %894 = vmatmul.bf16.gmra.mxu0 %v726
      %v895 = vpop.f32.mrf.mxu0
      %v896 = vadd.f32 %v732, %v895
      %v897 = vpop.f32.mrf.mxu0
      %v898 = vadd.f32 %v732, %v897
      %899 = vmatmul.bf16.gmra.mxu0 %v727
      %v900 = vpop.f32.mrf.mxu0
      %v901 = vadd.f32 %v732, %v900
      %v902 = vpop.f32.mrf.mxu0
      %v903 = vadd.f32 %v732, %v902
      %904 = vmatmul.bf16.gmra.mxu0 %v728
      %v905 = vpop.f32.mrf.mxu0
      %v906 = vadd.f32 %v732, %v905
      %v907 = vpop.f32.mrf.mxu0
      %v908 = vadd.f32 %v732, %v907
      %909 = vmatmul.bf16.gmra.mxu0 %v729
      %v910 = vpop.f32.mrf.mxu0
      %v911 = vadd.f32 %v732, %v910
      %v912 = vpop.f32.mrf.mxu0
      %v913 = vadd.f32 %v732, %v912
      %914 = vdwg.mxu0
      %915 = vmatpush.bf16.msra.mxu0 %v840
      %916 = vmatpush.bf16.msra.mxu0 %v837
      %917 = vmatpush.bf16.msra.mxu0 %v834
      %918 = vmatpush.bf16.msra.mxu0 %v831
      %919 = vmatpush.bf16.msra.mxu0 %v828
      %920 = vmatpush.bf16.msra.mxu0 %v825
      %921 = vmatpush.bf16.msra.mxu0 %v822
      %922 = vmatpush.bf16.msra.mxu0 %v819
      %923 = vmatmul.bf16.gmra.mxu0 %v722
      %v924 = vpop.f32.mrf.mxu0
      %v925 = vadd.f32 %v733, %v924
      %v926 = vpop.f32.mrf.mxu0
      %v927 = vadd.f32 %v733, %v926
      %928 = vmatmul.bf16.gmra.mxu0 %v723
      %v929 = vpop.f32.mrf.mxu0
      %v930 = vadd.f32 %v733, %v929
      %v931 = vpop.f32.mrf.mxu0
      %v932 = vadd.f32 %v733, %v931
      %933 = vmatmul.bf16.gmra.mxu0 %v724
      %v934 = vpop.f32.mrf.mxu0
      %v935 = vadd.f32 %v733, %v934
      %v936 = vpop.f32.mrf.mxu0
      %v937 = vadd.f32 %v733, %v936
      %938 = vmatmul.bf16.gmra.mxu0 %v725
      %v939 = vpop.f32.mrf.mxu0
      %v940 = vadd.f32 %v733, %v939
      %v941 = vpop.f32.mrf.mxu0
      %v942 = vadd.f32 %v733, %v941
      %943 = vmatmul.bf16.gmra.mxu0 %v726
      %v944 = vpop.f32.mrf.mxu0
      %v945 = vadd.f32 %v733, %v944
      %v946 = vpop.f32.mrf.mxu0
      %v947 = vadd.f32 %v733, %v946
      %948 = vmatmul.bf16.gmra.mxu0 %v727
      %v949 = vpop.f32.mrf.mxu0
      %v950 = vadd.f32 %v733, %v949
      %v951 = vpop.f32.mrf.mxu0
      %v952 = vadd.f32 %v733, %v951
      %953 = vmatmul.bf16.gmra.mxu0 %v728
      %v954 = vpop.f32.mrf.mxu0
      %v955 = vadd.f32 %v733, %v954
      %v956 = vpop.f32.mrf.mxu0
      %v957 = vadd.f32 %v733, %v956
      %958 = vmatmul.bf16.gmra.mxu0 %v729
      %v959 = vpop.f32.mrf.mxu0
      %v960 = vadd.f32 %v733, %v959
      %v961 = vpop.f32.mrf.mxu0
      %v962 = vadd.f32 %v733, %v961
      %963 = vdwg.mxu0
      %964 = vmatpush.bf16.msra.mxu0 %v841
      %965 = vmatpush.bf16.msra.mxu0 %v838
      %966 = vmatpush.bf16.msra.mxu0 %v835
      %967 = vmatpush.bf16.msra.mxu0 %v832
      %968 = vmatpush.bf16.msra.mxu0 %v829
      %969 = vmatpush.bf16.msra.mxu0 %v826
      %970 = vmatpush.bf16.msra.mxu0 %v823
      %971 = vmatpush.bf16.msra.mxu0 %v820
      %972 = vmatmul.bf16.gmra.mxu0 %v722
      %v973 = vpop.f32.mrf.mxu0
      %v974 = vadd.f32 %v734, %v973
      %v975 = vpop.f32.mrf.mxu0
      %v976 = vadd.f32 %v734, %v975
      %977 = vmatmul.bf16.gmra.mxu0 %v723
      %v978 = vpop.f32.mrf.mxu0
      %v979 = vadd.f32 %v734, %v978
      %v980 = vpop.f32.mrf.mxu0
      %v981 = vadd.f32 %v734, %v980
      %982 = vmatmul.bf16.gmra.mxu0 %v724
      %v983 = vpop.f32.mrf.mxu0
      %v984 = vadd.f32 %v734, %v983
      %v985 = vpop.f32.mrf.mxu0
      %v986 = vadd.f32 %v734, %v985
      %987 = vmatmul.bf16.gmra.mxu0 %v725
      %v988 = vpop.f32.mrf.mxu0
      %v989 = vadd.f32 %v734, %v988
      %v990 = vpop.f32.mrf.mxu0
      %v991 = vadd.f32 %v734, %v990
      %992 = vmatmul.bf16.gmra.mxu0 %v726
      %v993 = vpop.f32.mrf.mxu0
      %v994 = vadd.f32 %v734, %v993
      %v995 = vpop.f32.mrf.mxu0
      %v996 = vadd.f32 %v734, %v995
      %997 = vmatmul.bf16.gmra.mxu0 %v727
      %v998 = vpop.f32.mrf.mxu0
      %v999 = vadd.f32 %v734, %v998
      %v1000 = vpop.f32.mrf.mxu0
      %v1001 = vadd.f32 %v734, %v1000
      %1002 = vmatmul.bf16.gmra.mxu0 %v728
      %v1003 = vpop.f32.mrf.mxu0
      %v1004 = vadd.f32 %v734, %v1003
      %v1005 = vpop.f32.mrf.mxu0
      %v1006 = vadd.f32 %v734, %v1005
      %1007 = vmatmul.bf16.gmra.mxu0 %v729
      %v1008 = vpop.f32.mrf.mxu0
      %v1009 = vadd.f32 %v734, %v1008
      %v1010 = vpop.f32.mrf.mxu0
      %v1011 = vadd.f32 %v734, %v1010
      %1012 = vdwg.mxu0
      %v1013 = vmul.f32 %v876, 0.088388346
      %v1014 = vmul.f32 %v878, 0.088388346
      %v1015 = vmul.f32 %v881, 0.088388346
      %v1016 = vmul.f32 %v883, 0.088388346
      %v1017 = vmul.f32 %v886, 0.088388346
      %v1018 = vmul.f32 %v888, 0.088388346
      %v1019 = vmul.f32 %v891, 0.088388346
      %v1020 = vmul.f32 %v893, 0.088388346
      %v1021 = vmul.f32 %v896, 0.088388346
      %v1022 = vmul.f32 %v898, 0.088388346
      %v1023 = vmul.f32 %v901, 0.088388346
      %v1024 = vmul.f32 %v903, 0.088388346
      %v1025 = vmul.f32 %v906, 0.088388346
      %v1026 = vmul.f32 %v908, 0.088388346
      %v1027 = vmul.f32 %v911, 0.088388346
      %v1028 = vmul.f32 %v913, 0.088388346
      %v1029 = vpack.c.bf16 %v1013, %v1013
      %v1030 = vpack.c.bf16 %v1014, %v1014
      %v1031 = vpack.c.bf16 %v1015, %v1015
      %v1032 = vpack.c.bf16 %v1016, %v1016
      %v1033 = vpack.c.bf16 %v1017, %v1017
      %v1034 = vpack.c.bf16 %v1018, %v1018
      %v1035 = vpack.c.bf16 %v1019, %v1019
      %v1036 = vpack.c.bf16 %v1020, %v1020
      %v1037 = vpack.c.bf16 %v1021, %v1021
      %v1038 = vpack.c.bf16 %v1022, %v1022
      %v1039 = vpack.c.bf16 %v1023, %v1023
      %v1040 = vpack.c.bf16 %v1024, %v1024
      %v1041 = vpack.c.bf16 %v1025, %v1025
      %v1042 = vpack.c.bf16 %v1026, %v1026
      %v1043 = vpack.c.bf16 %v1027, %v1027
      %v1044 = vpack.c.bf16 %v1028, %v1028
      %v1045 = vpack.c.bf16 %v925, %v925
      %v1046 = vpack.c.bf16 %v927, %v927
      %v1047 = vpack.c.bf16 %v930, %v930
      %v1048 = vpack.c.bf16 %v932, %v932
      %v1049 = vpack.c.bf16 %v935, %v935
      %v1050 = vpack.c.bf16 %v937, %v937
      %v1051 = vpack.c.bf16 %v940, %v940
      %v1052 = vpack.c.bf16 %v942, %v942
      %v1053 = vpack.c.bf16 %v945, %v945
      %v1054 = vpack.c.bf16 %v947, %v947
      %v1055 = vpack.c.bf16 %v950, %v950
      %v1056 = vpack.c.bf16 %v952, %v952
      %v1057 = vpack.c.bf16 %v955, %v955
      %v1058 = vpack.c.bf16 %v957, %v957
      %v1059 = vpack.c.bf16 %v960, %v960
      %v1060 = vpack.c.bf16 %v962, %v962
      %v1061 = vpack.c.bf16 %v974, %v974
      %v1062 = vpack.c.bf16 %v976, %v976
      %v1063 = vpack.c.bf16 %v979, %v979
      %v1064 = vpack.c.bf16 %v981, %v981
      %v1065 = vpack.c.bf16 %v984, %v984
      %v1066 = vpack.c.bf16 %v986, %v986
      %v1067 = vpack.c.bf16 %v989, %v989
      %v1068 = vpack.c.bf16 %v991, %v991
      %v1069 = vpack.c.bf16 %v994, %v994
      %v1070 = vpack.c.bf16 %v996, %v996
      %v1071 = vpack.c.bf16 %v999, %v999
      %v1072 = vpack.c.bf16 %v1001, %v1001
      %v1073 = vpack.c.bf16 %v1004, %v1004
      %v1074 = vpack.c.bf16 %v1006, %v1006
      %v1075 = vpack.c.bf16 %v1009, %v1009
      %v1076 = vpack.c.bf16 %v1011, %v1011
      %v1093 = vunpack.c.l.b16 %v1029
      %v1094 = vunpack.c.l.b16 %v1030
      %v1095 = vunpack.c.l.b16 %v1031
      %v1096 = vunpack.c.l.b16 %v1032
      %v1097 = vunpack.c.l.b16 %v1033
      %v1098 = vunpack.c.l.b16 %v1034
      %v1099 = vunpack.c.l.b16 %v1035
      %v1100 = vunpack.c.l.b16 %v1036
      %v1101 = vunpack.c.l.b16 %v1037
      %v1102 = vunpack.c.l.b16 %v1038
      %v1103 = vunpack.c.l.b16 %v1039
      %v1104 = vunpack.c.l.b16 %v1040
      %v1105 = vunpack.c.l.b16 %v1041
      %v1106 = vunpack.c.l.b16 %v1042
      %v1107 = vunpack.c.l.b16 %v1043
      %v1108 = vunpack.c.l.b16 %v1044
      %v1109 = vpack.c.b16 %v1094, %v1093
      %v1110 = vpack.c.b16 %v1096, %v1095
      %v1111 = vpack.c.b16 %v1098, %v1097
      %v1112 = vpack.c.b16 %v1100, %v1099
      %v1113 = vpack.c.b16 %v1102, %v1101
      %v1114 = vpack.c.b16 %v1104, %v1103
      %v1115 = vpack.c.b16 %v1106, %v1105
      %v1116 = vpack.c.b16 %v1108, %v1107
      %v1141 = vunpack.c.l.b16 %v1045
      %v1142 = vunpack.c.l.b16 %v1046
      %v1143 = vunpack.c.l.b16 %v1047
      %v1144 = vunpack.c.l.b16 %v1048
      %v1145 = vunpack.c.l.b16 %v1049
      %v1146 = vunpack.c.l.b16 %v1050
      %v1147 = vunpack.c.l.b16 %v1051
      %v1148 = vunpack.c.l.b16 %v1052
      %v1149 = vunpack.c.l.b16 %v1053
      %v1150 = vunpack.c.l.b16 %v1054
      %v1151 = vunpack.c.l.b16 %v1055
      %v1152 = vunpack.c.l.b16 %v1056
      %v1153 = vunpack.c.l.b16 %v1057
      %v1154 = vunpack.c.l.b16 %v1058
      %v1155 = vunpack.c.l.b16 %v1059
      %v1156 = vunpack.c.l.b16 %v1060
      %v1157 = vpack.c.b16 %v1142, %v1141
      %v1158 = vpack.c.b16 %v1144, %v1143
      %v1159 = vpack.c.b16 %v1146, %v1145
      %v1160 = vpack.c.b16 %v1148, %v1147
      %v1161 = vpack.c.b16 %v1150, %v1149
      %v1162 = vpack.c.b16 %v1152, %v1151
      %v1163 = vpack.c.b16 %v1154, %v1153
      %v1164 = vpack.c.b16 %v1156, %v1155
      %1173 = vmatpush.bf16.xpose.msra.mxu0 %v1164
      %1174 = vmatpush.bf16.xpose.msra.mxu0 %v1163
      %1175 = vmatpush.bf16.xpose.msra.mxu0 %v1162
      %1176 = vmatpush.bf16.xpose.msra.mxu0 %v1161
      %1177 = vmatpush.bf16.xpose.msra.mxu0 %v1160
      %1178 = vmatpush.bf16.xpose.msra.mxu0 %v1159
      %1179 = vmatpush.bf16.xpose.msra.mxu0 %v1158
      %1180 = vmatpush.bf16.xpose.msra.mxu0 %v1157
      %1181 = vmatmul.bf16.gmra.mxu0 %v1109
      %v1182 = vpop.f32.mrf.mxu0
      %v1183 = vadd.f32 0.0, %v1182
      %v1184 = vpop.f32.mrf.mxu0
      %v1185 = vadd.f32 0.0, %v1184
      %1186 = vmatmul.bf16.gmra.mxu0 %v1110
      %v1187 = vpop.f32.mrf.mxu0
      %v1188 = vadd.f32 0.0, %v1187
      %v1189 = vpop.f32.mrf.mxu0
      %v1190 = vadd.f32 0.0, %v1189
      %1191 = vmatmul.bf16.gmra.mxu0 %v1111
      %v1192 = vpop.f32.mrf.mxu0
      %v1193 = vadd.f32 0.0, %v1192
      %v1194 = vpop.f32.mrf.mxu0
      %v1195 = vadd.f32 0.0, %v1194
      %1196 = vmatmul.bf16.gmra.mxu0 %v1112
      %v1197 = vpop.f32.mrf.mxu0
      %v1198 = vadd.f32 0.0, %v1197
      %v1199 = vpop.f32.mrf.mxu0
      %v1200 = vadd.f32 0.0, %v1199
      %1201 = vmatmul.bf16.gmra.mxu0 %v1113
      %v1202 = vpop.f32.mrf.mxu0
      %v1203 = vadd.f32 0.0, %v1202
      %v1204 = vpop.f32.mrf.mxu0
      %v1205 = vadd.f32 0.0, %v1204
      %1206 = vmatmul.bf16.gmra.mxu0 %v1114
      %v1207 = vpop.f32.mrf.mxu0
      %v1208 = vadd.f32 0.0, %v1207
      %v1209 = vpop.f32.mrf.mxu0
      %v1210 = vadd.f32 0.0, %v1209
      %1211 = vmatmul.bf16.gmra.mxu0 %v1115
      %v1212 = vpop.f32.mrf.mxu0
      %v1213 = vadd.f32 0.0, %v1212
      %v1214 = vpop.f32.mrf.mxu0
      %v1215 = vadd.f32 0.0, %v1214
      %1216 = vmatmul.bf16.gmra.mxu0 %v1116
      %v1217 = vpop.f32.mrf.mxu0
      %v1218 = vadd.f32 0.0, %v1217
      %v1219 = vpop.f32.mrf.mxu0
      %v1220 = vadd.f32 0.0, %v1219
      %1221 = vdwg.mxu0
      %1222 = vmax.xlane.f32.xlu0 %v1183
      %v1223 = vpop.xlane.xlu0 %1222
      %1224 = vmax.xlane.f32.xlu0 %v1185
      %v1225 = vpop.xlane.xlu0 %1224
      %1226 = vmax.xlane.f32.xlu0 %v1188
      %v1227 = vpop.xlane.xlu0 %1226
      %1228 = vmax.xlane.f32.xlu0 %v1190
      %v1229 = vpop.xlane.xlu0 %1228
      %1230 = vmax.xlane.f32.xlu0 %v1193
      %v1231 = vpop.xlane.xlu0 %1230
      %1232 = vmax.xlane.f32.xlu0 %v1195
      %v1233 = vpop.xlane.xlu0 %1232
      %1234 = vmax.xlane.f32.xlu0 %v1198
      %v1235 = vpop.xlane.xlu0 %1234
      %1236 = vmax.xlane.f32.xlu0 %v1200
      %v1237 = vpop.xlane.xlu0 %1236
      %1238 = vmax.xlane.f32.xlu0 %v1203
      %v1239 = vpop.xlane.xlu0 %1238
      %1240 = vmax.xlane.f32.xlu0 %v1205
      %v1241 = vpop.xlane.xlu0 %1240
      %1242 = vmax.xlane.f32.xlu0 %v1208
      %v1243 = vpop.xlane.xlu0 %1242
      %1244 = vmax.xlane.f32.xlu0 %v1210
      %v1245 = vpop.xlane.xlu0 %1244
      %1246 = vmax.xlane.f32.xlu0 %v1213
      %v1247 = vpop.xlane.xlu0 %1246
      %1248 = vmax.xlane.f32.xlu0 %v1215
      %v1249 = vpop.xlane.xlu0 %1248
      %1250 = vmax.xlane.f32.xlu0 %v1218
      %v1251 = vpop.xlane.xlu0 %1250
      %1252 = vmax.xlane.f32.xlu0 %v1220
      %v1253 = vpop.xlane.xlu0 %1252
      %v1254 = vsub.f32 %v1183, %v1223
      %v1255 = vsub.f32 %v1185, %v1225
      %v1256 = vsub.f32 %v1188, %v1227
      %v1257 = vsub.f32 %v1190, %v1229
      %v1258 = vsub.f32 %v1193, %v1231
      %v1259 = vsub.f32 %v1195, %v1233
      %v1260 = vsub.f32 %v1198, %v1235
      %v1261 = vsub.f32 %v1200, %v1237
      %v1262 = vsub.f32 %v1203, %v1239
      %v1263 = vsub.f32 %v1205, %v1241
      %v1264 = vsub.f32 %v1208, %v1243
      %v1265 = vsub.f32 %v1210, %v1245
      %v1266 = vsub.f32 %v1213, %v1247
      %v1267 = vsub.f32 %v1215, %v1249
      %v1268 = vsub.f32 %v1218, %v1251
      %v1269 = vsub.f32 %v1220, %v1253
      %v1270 = vmul.f32 %v1254, 1.442695
      %v1271 = vpow.pop %v1270
      %v1272 = vmul.f32 %v1255, 1.442695
      %v1273 = vpow.pop %v1272
      %v1274 = vmul.f32 %v1256, 1.442695
      %v1275 = vpow.pop %v1274
      %v1276 = vmul.f32 %v1257, 1.442695
      %v1277 = vpow.pop %v1276
      %v1278 = vmul.f32 %v1258, 1.442695
      %v1279 = vpow.pop %v1278
      %v1280 = vmul.f32 %v1259, 1.442695
      %v1281 = vpow.pop %v1280
      %v1282 = vmul.f32 %v1260, 1.442695
      %v1283 = vpow.pop %v1282
      %v1284 = vmul.f32 %v1261, 1.442695
      %v1285 = vpow.pop %v1284
      %v1286 = vmul.f32 %v1262, 1.442695
      %v1287 = vpow.pop %v1286
      %v1288 = vmul.f32 %v1263, 1.442695
      %v1289 = vpow.pop %v1288
      %v1290 = vmul.f32 %v1264, 1.442695
      %v1291 = vpow.pop %v1290
      %v1292 = vmul.f32 %v1265, 1.442695
      %v1293 = vpow.pop %v1292
      %v1294 = vmul.f32 %v1266, 1.442695
      %v1295 = vpow.pop %v1294
      %v1296 = vmul.f32 %v1267, 1.442695
      %v1297 = vpow.pop %v1296
      %v1298 = vmul.f32 %v1268, 1.442695
      %v1299 = vpow.pop %v1298
      %v1300 = vmul.f32 %v1269, 1.442695
      %v1301 = vpow.pop %v1300
      %1302 = vadd.xlane.f32.xlu0 %v1271
      %v1303 = vpop.xlane.xlu0 %1302
      %1304 = vadd.xlane.f32.xlu0 %v1273
      %v1305 = vpop.xlane.xlu0 %1304
      %1306 = vadd.xlane.f32.xlu0 %v1275
      %v1307 = vpop.xlane.xlu0 %1306
      %1308 = vadd.xlane.f32.xlu0 %v1277
      %v1309 = vpop.xlane.xlu0 %1308
      %1310 = vadd.xlane.f32.xlu0 %v1279
      %v1311 = vpop.xlane.xlu0 %1310
      %1312 = vadd.xlane.f32.xlu0 %v1281
      %v1313 = vpop.xlane.xlu0 %1312
      %1314 = vadd.xlane.f32.xlu0 %v1283
      %v1315 = vpop.xlane.xlu0 %1314
      %1316 = vadd.xlane.f32.xlu0 %v1285
      %v1317 = vpop.xlane.xlu0 %1316
      %1318 = vadd.xlane.f32.xlu0 %v1287
      %v1319 = vpop.xlane.xlu0 %1318
      %1320 = vadd.xlane.f32.xlu0 %v1289
      %v1321 = vpop.xlane.xlu0 %1320
      %1322 = vadd.xlane.f32.xlu0 %v1291
      %v1323 = vpop.xlane.xlu0 %1322
      %1324 = vadd.xlane.f32.xlu0 %v1293
      %v1325 = vpop.xlane.xlu0 %1324
      %1326 = vadd.xlane.f32.xlu0 %v1295
      %v1327 = vpop.xlane.xlu0 %1326
      %1328 = vadd.xlane.f32.xlu0 %v1297
      %v1329 = vpop.xlane.xlu0 %1328
      %1330 = vadd.xlane.f32.xlu0 %v1299
      %v1331 = vpop.xlane.xlu0 %1330
      %1332 = vadd.xlane.f32.xlu0 %v1301
      %v1333 = vpop.xlane.xlu0 %1332
      %v1334 = vrcp.pop %v1303
      %v1335 = vrcp.pop %v1305
      %v1336 = vrcp.pop %v1307
      %v1337 = vrcp.pop %v1309
      %v1338 = vrcp.pop %v1311
      %v1339 = vrcp.pop %v1313
      %v1340 = vrcp.pop %v1315
      %v1341 = vrcp.pop %v1317
      %v1342 = vrcp.pop %v1319
      %v1343 = vrcp.pop %v1321
      %v1344 = vrcp.pop %v1323
      %v1345 = vrcp.pop %v1325
      %v1346 = vrcp.pop %v1327
      %v1347 = vrcp.pop %v1329
      %v1348 = vrcp.pop %v1331
      %v1349 = vrcp.pop %v1333
      %v1350 = vmul.f32 %v1271, %v1334
      %v1351 = vmul.f32 %v1273, %v1335
      %v1352 = vmul.f32 %v1275, %v1336
      %v1353 = vmul.f32 %v1277, %v1337
      %v1354 = vmul.f32 %v1279, %v1338
      %v1355 = vmul.f32 %v1281, %v1339
      %v1356 = vmul.f32 %v1283, %v1340
      %v1357 = vmul.f32 %v1285, %v1341
      %v1358 = vmul.f32 %v1287, %v1342
      %v1359 = vmul.f32 %v1289, %v1343
      %v1360 = vmul.f32 %v1291, %v1344
      %v1361 = vmul.f32 %v1293, %v1345
      %v1362 = vmul.f32 %v1295, %v1346
      %v1363 = vmul.f32 %v1297, %v1347
      %v1364 = vmul.f32 %v1299, %v1348
      %v1365 = vmul.f32 %v1301, %v1349
      %v1366 = vpack.c.bf16 %v1350, %v1350
      %v1367 = vpack.c.bf16 %v1351, %v1351
      %v1368 = vpack.c.bf16 %v1352, %v1352
      %v1369 = vpack.c.bf16 %v1353, %v1353
      %v1370 = vpack.c.bf16 %v1354, %v1354
      %v1371 = vpack.c.bf16 %v1355, %v1355
      %v1372 = vpack.c.bf16 %v1356, %v1356
      %v1373 = vpack.c.bf16 %v1357, %v1357
      %v1374 = vpack.c.bf16 %v1358, %v1358
      %v1375 = vpack.c.bf16 %v1359, %v1359
      %v1376 = vpack.c.bf16 %v1360, %v1360
      %v1377 = vpack.c.bf16 %v1361, %v1361
      %v1378 = vpack.c.bf16 %v1362, %v1362
      %v1379 = vpack.c.bf16 %v1363, %v1363
      %v1380 = vpack.c.bf16 %v1364, %v1364
      %v1381 = vpack.c.bf16 %v1365, %v1365
      %v1398 = vunpack.c.l.b16 %v1366
      %v1399 = vunpack.c.l.b16 %v1367
      %v1400 = vunpack.c.l.b16 %v1368
      %v1401 = vunpack.c.l.b16 %v1369
      %v1402 = vunpack.c.l.b16 %v1370
      %v1403 = vunpack.c.l.b16 %v1371
      %v1404 = vunpack.c.l.b16 %v1372
      %v1405 = vunpack.c.l.b16 %v1373
      %v1406 = vunpack.c.l.b16 %v1374
      %v1407 = vunpack.c.l.b16 %v1375
      %v1408 = vunpack.c.l.b16 %v1376
      %v1409 = vunpack.c.l.b16 %v1377
      %v1410 = vunpack.c.l.b16 %v1378
      %v1411 = vunpack.c.l.b16 %v1379
      %v1412 = vunpack.c.l.b16 %v1380
      %v1413 = vunpack.c.l.b16 %v1381
      %v1414 = vpack.c.b16 %v1399, %v1398
      %v1415 = vpack.c.b16 %v1401, %v1400
      %v1416 = vpack.c.b16 %v1403, %v1402
      %v1417 = vpack.c.b16 %v1405, %v1404
      %v1418 = vpack.c.b16 %v1407, %v1406
      %v1419 = vpack.c.b16 %v1409, %v1408
      %v1420 = vpack.c.b16 %v1411, %v1410
      %v1421 = vpack.c.b16 %v1413, %v1412
      %v1446 = vunpack.c.l.b16 %v1061
      %v1447 = vunpack.c.l.b16 %v1062
      %v1448 = vunpack.c.l.b16 %v1063
      %v1449 = vunpack.c.l.b16 %v1064
      %v1450 = vunpack.c.l.b16 %v1065
      %v1451 = vunpack.c.l.b16 %v1066
      %v1452 = vunpack.c.l.b16 %v1067
      %v1453 = vunpack.c.l.b16 %v1068
      %v1454 = vunpack.c.l.b16 %v1069
      %v1455 = vunpack.c.l.b16 %v1070
      %v1456 = vunpack.c.l.b16 %v1071
      %v1457 = vunpack.c.l.b16 %v1072
      %v1458 = vunpack.c.l.b16 %v1073
      %v1459 = vunpack.c.l.b16 %v1074
      %v1460 = vunpack.c.l.b16 %v1075
      %v1461 = vunpack.c.l.b16 %v1076
      %v1462 = vpack.c.b16 %v1447, %v1446
      %v1463 = vpack.c.b16 %v1449, %v1448
      %v1464 = vpack.c.b16 %v1451, %v1450
      %v1465 = vpack.c.b16 %v1453, %v1452
      %v1466 = vpack.c.b16 %v1455, %v1454
      %v1467 = vpack.c.b16 %v1457, %v1456
      %v1468 = vpack.c.b16 %v1459, %v1458
      %v1469 = vpack.c.b16 %v1461, %v1460
      %1478 = vmatpush.bf16.msra.mxu0 %v1469
      %1479 = vmatpush.bf16.msra.mxu0 %v1468
      %1480 = vmatpush.bf16.msra.mxu0 %v1467
      %1481 = vmatpush.bf16.msra.mxu0 %v1466
      %1482 = vmatpush.bf16.msra.mxu0 %v1465
      %1483 = vmatpush.bf16.msra.mxu0 %v1464
      %1484 = vmatpush.bf16.msra.mxu0 %v1463
      %1485 = vmatpush.bf16.msra.mxu0 %v1462
      %1486 = vmatmul.bf16.gmra.mxu0 %v1414
      %v1487 = vpop.f32.mrf.mxu0
      %v1488 = vadd.f32 0.0, %v1487
      %v1489 = vpop.f32.mrf.mxu0
      %v1490 = vadd.f32 0.0, %v1489
      %1491 = vmatmul.bf16.gmra.mxu0 %v1415
      %v1492 = vpop.f32.mrf.mxu0
      %v1493 = vadd.f32 0.0, %v1492
      %v1494 = vpop.f32.mrf.mxu0
      %v1495 = vadd.f32 0.0, %v1494
      %1496 = vmatmul.bf16.gmra.mxu0 %v1416
      %v1497 = vpop.f32.mrf.mxu0
      %v1498 = vadd.f32 0.0, %v1497
      %v1499 = vpop.f32.mrf.mxu0
      %v1500 = vadd.f32 0.0, %v1499
      %1501 = vmatmul.bf16.gmra.mxu0 %v1417
      %v1502 = vpop.f32.mrf.mxu0
      %v1503 = vadd.f32 0.0, %v1502
      %v1504 = vpop.f32.mrf.mxu0
      %v1505 = vadd.f32 0.0, %v1504
      %1506 = vmatmul.bf16.gmra.mxu0 %v1418
      %v1507 = vpop.f32.mrf.mxu0
      %v1508 = vadd.f32 0.0, %v1507
      %v1509 = vpop.f32.mrf.mxu0
      %v1510 = vadd.f32 0.0, %v1509
      %1511 = vmatmul.bf16.gmra.mxu0 %v1419
      %v1512 = vpop.f32.mrf.mxu0
      %v1513 = vadd.f32 0.0, %v1512
      %v1514 = vpop.f32.mrf.mxu0
      %v1515 = vadd.f32 0.0, %v1514
      %1516 = vmatmul.bf16.gmra.mxu0 %v1420
      %v1517 = vpop.f32.mrf.mxu0
      %v1518 = vadd.f32 0.0, %v1517
      %v1519 = vpop.f32.mrf.mxu0
      %v1520 = vadd.f32 0.0, %v1519
      %1521 = vmatmul.bf16.gmra.mxu0 %v1421
      %v1522 = vpop.f32.mrf.mxu0
      %v1523 = vadd.f32 0.0, %v1522
      %v1524 = vpop.f32.mrf.mxu0
      %v1525 = vadd.f32 0.0, %v1524
      %1526 = vdwg.mxu0
      %v1527 = vld [vmem:[%s5] sm:$0xf]
      %v1528 = vld [vmem:[%s5 + $0x4] sm:$0xf]
      %v1529 = vld [vmem:[%s5 + $0x8] sm:$0xf]
      %v1530 = vld [vmem:[%s5 + $0xc] sm:$0xf]
      %v1531 = vld [vmem:[%s5 + $0x10] sm:$0xf]
      %v1532 = vld [vmem:[%s5 + $0x14] sm:$0xf]
      %v1533 = vld [vmem:[%s5 + $0x18] sm:$0xf]
      %v1534 = vld [vmem:[%s5 + $0x1c] sm:$0xf]
      %v1535 = vld [vmem:[%s5 + $0x20] sm:$0xf]
      %v1536 = vld [vmem:[%s5 + $0x24] sm:$0xf]
      %v1537 = vld [vmem:[%s5 + $0x28] sm:$0xf]
      %v1538 = vld [vmem:[%s5 + $0x2c] sm:$0xf]
      %v1539 = vld [vmem:[%s5 + $0x30] sm:$0xf]
      %v1540 = vld [vmem:[%s5 + $0x34] sm:$0xf]
      %v1541 = vld [vmem:[%s5 + $0x38] sm:$0xf]
      %v1542 = vld [vmem:[%s5 + $0x3c] sm:$0xf]
      %v1543 = vpack.c.bf16 %v1490, %v1488
      %v1544 = vpack.c.bf16 %v1495, %v1493
      %v1545 = vpack.c.bf16 %v1500, %v1498
      %v1546 = vpack.c.bf16 %v1505, %v1503
      %v1547 = vpack.c.bf16 %v1510, %v1508
      %v1548 = vpack.c.bf16 %v1515, %v1513
      %v1549 = vpack.c.bf16 %v1520, %v1518
      %v1550 = vpack.c.bf16 %v1525, %v1523
      %v1551 = vld [vmem:[%s6] sm:$0x1]
      %v1553 = vperm.slane %v1551, 0
      %v1571 = vunpack.c.l.b16 %v1527
      %v1572 = vunpack.c.l.b16 %v1528
      %v1573 = vunpack.c.l.b16 %v1529
      %v1574 = vunpack.c.l.b16 %v1530
      %v1575 = vunpack.c.l.b16 %v1531
      %v1576 = vunpack.c.l.b16 %v1532
      %v1577 = vunpack.c.l.b16 %v1533
      %v1578 = vunpack.c.l.b16 %v1534
      %v1579 = vunpack.c.l.b16 %v1535
      %v1580 = vunpack.c.l.b16 %v1536
      %v1581 = vunpack.c.l.b16 %v1537
      %v1582 = vunpack.c.l.b16 %v1538
      %v1583 = vunpack.c.l.b16 %v1539
      %v1584 = vunpack.c.l.b16 %v1540
      %v1585 = vunpack.c.l.b16 %v1541
      %v1586 = vunpack.c.l.b16 %v1542
      %v1587 = vpack.c.b16 %v1572, %v1571
      %v1588 = vpack.c.b16 %v1574, %v1573
      %v1589 = vpack.c.b16 %v1576, %v1575
      %v1590 = vpack.c.b16 %v1578, %v1577
      %v1591 = vpack.c.b16 %v1580, %v1579
      %v1592 = vpack.c.b16 %v1582, %v1581
      %v1593 = vpack.c.b16 %v1584, %v1583
      %v1594 = vpack.c.b16 %v1586, %v1585
      %1603 = vmatpush.bf16.msra.mxu0 %v1594
      %1604 = vmatpush.bf16.msra.mxu0 %v1593
      %1605 = vmatpush.bf16.msra.mxu0 %v1592
      %1606 = vmatpush.bf16.msra.mxu0 %v1591
      %1607 = vmatpush.bf16.msra.mxu0 %v1590
      %1608 = vmatpush.bf16.msra.mxu0 %v1589
      %1609 = vmatpush.bf16.msra.mxu0 %v1588
      %1610 = vmatpush.bf16.msra.mxu0 %v1587
      %1611 = vmatmul.bf16.gmra.mxu0 %v1543
      %v1612 = vpop.f32.mrf.mxu0
      %v1613 = vadd.f32 %v1553, %v1612
      %v1614 = vpop.f32.mrf.mxu0
      %v1615 = vadd.f32 %v1553, %v1614
      %1616 = vmatmul.bf16.gmra.mxu0 %v1544
      %v1617 = vpop.f32.mrf.mxu0
      %v1618 = vadd.f32 %v1553, %v1617
      %v1619 = vpop.f32.mrf.mxu0
      %v1620 = vadd.f32 %v1553, %v1619
      %1621 = vmatmul.bf16.gmra.mxu0 %v1545
      %v1622 = vpop.f32.mrf.mxu0
      %v1623 = vadd.f32 %v1553, %v1622
      %v1624 = vpop.f32.mrf.mxu0
      %v1625 = vadd.f32 %v1553, %v1624
      %1626 = vmatmul.bf16.gmra.mxu0 %v1546
      %v1627 = vpop.f32.mrf.mxu0
      %v1628 = vadd.f32 %v1553, %v1627
      %v1629 = vpop.f32.mrf.mxu0
      %v1630 = vadd.f32 %v1553, %v1629
      %1631 = vmatmul.bf16.gmra.mxu0 %v1547
      %v1632 = vpop.f32.mrf.mxu0
      %v1633 = vadd.f32 %v1553, %v1632
      %v1634 = vpop.f32.mrf.mxu0
      %v1635 = vadd.f32 %v1553, %v1634
      %1636 = vmatmul.bf16.gmra.mxu0 %v1548
      %v1637 = vpop.f32.mrf.mxu0
      %v1638 = vadd.f32 %v1553, %v1637
      %v1639 = vpop.f32.mrf.mxu0
      %v1640 = vadd.f32 %v1553, %v1639
      %1641 = vmatmul.bf16.gmra.mxu0 %v1549
      %v1642 = vpop.f32.mrf.mxu0
      %v1643 = vadd.f32 %v1553, %v1642
      %v1644 = vpop.f32.mrf.mxu0
      %v1645 = vadd.f32 %v1553, %v1644
      %1646 = vmatmul.bf16.gmra.mxu0 %v1550
      %v1647 = vpop.f32.mrf.mxu0
      %v1648 = vadd.f32 %v1553, %v1647
      %v1649 = vpop.f32.mrf.mxu0
      %v1650 = vadd.f32 %v1553, %v1649
      %1651 = vdwg.mxu0
      %v1652 = vadd.f32 %v651, %v1613
      %v1653 = vadd.f32 %v653, %v1615
      %v1654 = vadd.f32 %v656, %v1618
      %v1655 = vadd.f32 %v658, %v1620
      %v1656 = vadd.f32 %v661, %v1623
      %v1657 = vadd.f32 %v663, %v1625
      %v1658 = vadd.f32 %v666, %v1628
      %v1659 = vadd.f32 %v668, %v1630
      %v1660 = vadd.f32 %v671, %v1633
      %v1661 = vadd.f32 %v673, %v1635
      %v1662 = vadd.f32 %v676, %v1638
      %v1663 = vadd.f32 %v678, %v1640
      %v1664 = vadd.f32 %v681, %v1643
      %v1665 = vadd.f32 %v683, %v1645
      %v1666 = vadd.f32 %v686, %v1648
      %v1667 = vadd.f32 %v688, %v1650
      %v1668 = vld [vmem:[%s7] sm:$0x1]
      %v1669 = vld [vmem:[%s8] sm:$0x1]
      %1670 = vadd.xlane.f32.xlu0 %v1652
      %v1671 = vpop.xlane.xlu0 %1670
      %1672 = vadd.xlane.f32.xlu0 %v1653
      %v1673 = vpop.xlane.xlu0 %1672
      %1674 = vadd.xlane.f32.xlu0 %v1654
      %v1675 = vpop.xlane.xlu0 %1674
      %1676 = vadd.xlane.f32.xlu0 %v1655
      %v1677 = vpop.xlane.xlu0 %1676
      %1678 = vadd.xlane.f32.xlu0 %v1656
      %v1679 = vpop.xlane.xlu0 %1678
      %1680 = vadd.xlane.f32.xlu0 %v1657
      %v1681 = vpop.xlane.xlu0 %1680
      %1682 = vadd.xlane.f32.xlu0 %v1658
      %v1683 = vpop.xlane.xlu0 %1682
      %1684 = vadd.xlane.f32.xlu0 %v1659
      %v1685 = vpop.xlane.xlu0 %1684
      %1686 = vadd.xlane.f32.xlu0 %v1660
      %v1687 = vpop.xlane.xlu0 %1686
      %1688 = vadd.xlane.f32.xlu0 %v1661
      %v1689 = vpop.xlane.xlu0 %1688
      %1690 = vadd.xlane.f32.xlu0 %v1662
      %v1691 = vpop.xlane.xlu0 %1690
      %1692 = vadd.xlane.f32.xlu0 %v1663
      %v1693 = vpop.xlane.xlu0 %1692
      %1694 = vadd.xlane.f32.xlu0 %v1664
      %v1695 = vpop.xlane.xlu0 %1694
      %1696 = vadd.xlane.f32.xlu0 %v1665
      %v1697 = vpop.xlane.xlu0 %1696
      %1698 = vadd.xlane.f32.xlu0 %v1666
      %v1699 = vpop.xlane.xlu0 %1698
      %1700 = vadd.xlane.f32.xlu0 %v1667
      %v1701 = vpop.xlane.xlu0 %1700
      %v1702 = vrcp.pop 128.0
      %v1703 = vmul.f32 128.0, %v1702
      %v1704 = vsub.f32 1.0, %v1703
      %v1705 = vmul.f32 %v1702, %v1704
      %v1706 = vadd.f32 %v1702, %v1705
      %vm1707 = vweird.f32 %v1702
      %v1708 = vsel %vm1707, %v1702, %v1706
      %v1709 = vmul.f32 %v1671, %v1708
      %v1710 = vmul.f32 %v1673, %v1708
      %v1711 = vmul.f32 %v1675, %v1708
      %v1712 = vmul.f32 %v1677, %v1708
      %v1713 = vmul.f32 %v1679, %v1708
      %v1714 = vmul.f32 %v1681, %v1708
      %v1715 = vmul.f32 %v1683, %v1708
      %v1716 = vmul.f32 %v1685, %v1708
      %v1717 = vmul.f32 %v1687, %v1708
      %v1718 = vmul.f32 %v1689, %v1708
      %v1719 = vmul.f32 %v1691, %v1708
      %v1720 = vmul.f32 %v1693, %v1708
      %v1721 = vmul.f32 %v1695, %v1708
      %v1722 = vmul.f32 %v1697, %v1708
      %v1723 = vmul.f32 %v1699, %v1708
      %v1724 = vmul.f32 %v1701, %v1708
      %v1725 = vsub.f32 %v1652, %v1709
      %v1726 = vsub.f32 %v1653, %v1710
      %v1727 = vsub.f32 %v1654, %v1711
      %v1728 = vsub.f32 %v1655, %v1712
      %v1729 = vsub.f32 %v1656, %v1713
      %v1730 = vsub.f32 %v1657, %v1714
      %v1731 = vsub.f32 %v1658, %v1715
      %v1732 = vsub.f32 %v1659, %v1716
      %v1733 = vsub.f32 %v1660, %v1717
      %v1734 = vsub.f32 %v1661, %v1718
      %v1735 = vsub.f32 %v1662, %v1719
      %v1736 = vsub.f32 %v1663, %v1720
      %v1737 = vsub.f32 %v1664, %v1721
      %v1738 = vsub.f32 %v1665, %v1722
      %v1739 = vsub.f32 %v1666, %v1723
      %v1740 = vsub.f32 %v1667, %v1724
      %v1741 = vmul.f32 %v1725, %v1725
      %v1742 = vmul.f32 %v1726, %v1726
      %v1743 = vmul.f32 %v1727, %v1727
      %v1744 = vmul.f32 %v1728, %v1728
      %v1745 = vmul.f32 %v1729, %v1729
      %v1746 = vmul.f32 %v1730, %v1730
      %v1747 = vmul.f32 %v1731, %v1731
      %v1748 = vmul.f32 %v1732, %v1732
      %v1749 = vmul.f32 %v1733, %v1733
      %v1750 = vmul.f32 %v1734, %v1734
      %v1751 = vmul.f32 %v1735, %v1735
      %v1752 = vmul.f32 %v1736, %v1736
      %v1753 = vmul.f32 %v1737, %v1737
      %v1754 = vmul.f32 %v1738, %v1738
      %v1755 = vmul.f32 %v1739, %v1739
      %v1756 = vmul.f32 %v1740, %v1740
      %1757 = vadd.xlane.f32.xlu0 %v1741
      %v1758 = vpop.xlane.xlu0 %1757
      %1759 = vadd.xlane.f32.xlu0 %v1742
      %v1760 = vpop.xlane.xlu0 %1759
      %1761 = vadd.xlane.f32.xlu0 %v1743
      %v1762 = vpop.xlane.xlu0 %1761
      %1763 = vadd.xlane.f32.xlu0 %v1744
      %v1764 = vpop.xlane.xlu0 %1763
      %1765 = vadd.xlane.f32.xlu0 %v1745
      %v1766 = vpop.xlane.xlu0 %1765
      %1767 = vadd.xlane.f32.xlu0 %v1746
      %v1768 = vpop.xlane.xlu0 %1767
      %1769 = vadd.xlane.f32.xlu0 %v1747
      %v1770 = vpop.xlane.xlu0 %1769
      %1771 = vadd.xlane.f32.xlu0 %v1748
      %v1772 = vpop.xlane.xlu0 %1771
      %1773 = vadd.xlane.f32.xlu0 %v1749
      %v1774 = vpop.xlane.xlu0 %1773
      %1775 = vadd.xlane.f32.xlu0 %v1750
      %v1776 = vpop.xlane.xlu0 %1775
      %1777 = vadd.xlane.f32.xlu0 %v1751
      %v1778 = vpop.xlane.xlu0 %1777
      %1779 = vadd.xlane.f32.xlu0 %v1752
      %v1780 = vpop.xlane.xlu0 %1779
      %1781 = vadd.xlane.f32.xlu0 %v1753
      %v1782 = vpop.xlane.xlu0 %1781
      %1783 = vadd.xlane.f32.xlu0 %v1754
      %v1784 = vpop.xlane.xlu0 %1783
      %1785 = vadd.xlane.f32.xlu0 %v1755
      %v1786 = vpop.xlane.xlu0 %1785
      %1787 = vadd.xlane.f32.xlu0 %v1756
      %v1788 = vpop.xlane.xlu0 %1787
      %v1789 = vmul.f32 %v1758, %v1708
      %v1790 = vmul.f32 %v1760, %v1708
      %v1791 = vmul.f32 %v1762, %v1708
      %v1792 = vmul.f32 %v1764, %v1708
      %v1793 = vmul.f32 %v1766, %v1708
      %v1794 = vmul.f32 %v1768, %v1708
      %v1795 = vmul.f32 %v1770, %v1708
      %v1796 = vmul.f32 %v1772, %v1708
      %v1797 = vmul.f32 %v1774, %v1708
      %v1798 = vmul.f32 %v1776, %v1708
      %v1799 = vmul.f32 %v1778, %v1708
      %v1800 = vmul.f32 %v1780, %v1708
      %v1801 = vmul.f32 %v1782, %v1708
      %v1802 = vmul.f32 %v1784, %v1708
      %v1803 = vmul.f32 %v1786, %v1708
      %v1804 = vmul.f32 %v1788, %v1708
      %v1805 = vadd.f32 %v1789, 1e-05
      %v1806 = vadd.f32 %v1790, 1e-05
      %v1807 = vadd.f32 %v1791, 1e-05
      %v1808 = vadd.f32 %v1792, 1e-05
      %v1809 = vadd.f32 %v1793, 1e-05
      %v1810 = vadd.f32 %v1794, 1e-05
      %v1811 = vadd.f32 %v1795, 1e-05
      %v1812 = vadd.f32 %v1796, 1e-05
      %v1813 = vadd.f32 %v1797, 1e-05
      %v1814 = vadd.f32 %v1798, 1e-05
      %v1815 = vadd.f32 %v1799, 1e-05
      %v1816 = vadd.f32 %v1800, 1e-05
      %v1817 = vadd.f32 %v1801, 1e-05
      %v1818 = vadd.f32 %v1802, 1e-05
      %v1819 = vadd.f32 %v1803, 1e-05
      %v1820 = vadd.f32 %v1804, 1e-05
      %v1821 = vrsqrt.pop %v1805
      %v1822 = vmul.f32 %v1821, %v1805
      %v1823 = vmul.f32 %v1822, %v1821
      %v1824 = vmul.f32 0.5, %v1823
      %v1825 = vsub.f32 1.5, %v1824
      %v1826 = vmul.f32 %v1821, %v1825
      %vm1827 = vweird.f32 %v1805
      %vm1828 = vweird.f32 %v1821
      %vm1829 = vmor %vm1827, %vm1828
      %v1830 = vsel %vm1829, %v1821, %v1826
      %v1831 = vrsqrt.pop %v1806
      %v1832 = vmul.f32 %v1831, %v1806
      %v1833 = vmul.f32 %v1832, %v1831
      %v1834 = vmul.f32 0.5, %v1833
      %v1835 = vsub.f32 1.5, %v1834
      %v1836 = vmul.f32 %v1831, %v1835
      %vm1837 = vweird.f32 %v1806
      %vm1838 = vweird.f32 %v1831
      %vm1839 = vmor %vm1837, %vm1838
      %v1840 = vsel %vm1839, %v1831, %v1836
      %v1841 = vrsqrt.pop %v1807
      %v1842 = vmul.f32 %v1841, %v1807
      %v1843 = vmul.f32 %v1842, %v1841
      %v1844 = vmul.f32 0.5, %v1843
      %v1845 = vsub.f32 1.5, %v1844
      %v1846 = vmul.f32 %v1841, %v1845
      %vm1847 = vweird.f32 %v1807
      %vm1848 = vweird.f32 %v1841
      %vm1849 = vmor %vm1847, %vm1848
      %v1850 = vsel %vm1849, %v1841, %v1846
      %v1851 = vrsqrt.pop %v1808
      %v1852 = vmul.f32 %v1851, %v1808
      %v1853 = vmul.f32 %v1852, %v1851
      %v1854 = vmul.f32 0.5, %v1853
      %v1855 = vsub.f32 1.5, %v1854
      %v1856 = vmul.f32 %v1851, %v1855
      %vm1857 = vweird.f32 %v1808
      %vm1858 = vweird.f32 %v1851
      %vm1859 = vmor %vm1857, %vm1858
      %v1860 = vsel %vm1859, %v1851, %v1856
      %v1861 = vrsqrt.pop %v1809
      %v1862 = vmul.f32 %v1861, %v1809
      %v1863 = vmul.f32 %v1862, %v1861
      %v1864 = vmul.f32 0.5, %v1863
      %v1865 = vsub.f32 1.5, %v1864
      %v1866 = vmul.f32 %v1861, %v1865
      %vm1867 = vweird.f32 %v1809
      %vm1868 = vweird.f32 %v1861
      %vm1869 = vmor %vm1867, %vm1868
      %v1870 = vsel %vm1869, %v1861, %v1866
      %v1871 = vrsqrt.pop %v1810
      %v1872 = vmul.f32 %v1871, %v1810
      %v1873 = vmul.f32 %v1872, %v1871
      %v1874 = vmul.f32 0.5, %v1873
      %v1875 = vsub.f32 1.5, %v1874
      %v1876 = vmul.f32 %v1871, %v1875
      %vm1877 = vweird.f32 %v1810
      %vm1878 = vweird.f32 %v1871
      %vm1879 = vmor %vm1877, %vm1878
      %v1880 = vsel %vm1879, %v1871, %v1876
      %v1881 = vrsqrt.pop %v1811
      %v1882 = vmul.f32 %v1881, %v1811
      %v1883 = vmul.f32 %v1882, %v1881
      %v1884 = vmul.f32 0.5, %v1883
      %v1885 = vsub.f32 1.5, %v1884
      %v1886 = vmul.f32 %v1881, %v1885
      %vm1887 = vweird.f32 %v1811
      %vm1888 = vweird.f32 %v1881
      %vm1889 = vmor %vm1887, %vm1888
      %v1890 = vsel %vm1889, %v1881, %v1886
      %v1891 = vrsqrt.pop %v1812
      %v1892 = vmul.f32 %v1891, %v1812
      %v1893 = vmul.f32 %v1892, %v1891
      %v1894 = vmul.f32 0.5, %v1893
      %v1895 = vsub.f32 1.5, %v1894
      %v1896 = vmul.f32 %v1891, %v1895
      %vm1897 = vweird.f32 %v1812
      %vm1898 = vweird.f32 %v1891
      %vm1899 = vmor %vm1897, %vm1898
      %v1900 = vsel %vm1899, %v1891, %v1896
      %v1901 = vrsqrt.pop %v1813
      %v1902 = vmul.f32 %v1901, %v1813
      %v1903 = vmul.f32 %v1902, %v1901
      %v1904 = vmul.f32 0.5, %v1903
      %v1905 = vsub.f32 1.5, %v1904
      %v1906 = vmul.f32 %v1901, %v1905
      %vm1907 = vweird.f32 %v1813
      %vm1908 = vweird.f32 %v1901
      %vm1909 = vmor %vm1907, %vm1908
      %v1910 = vsel %vm1909, %v1901, %v1906
      %v1911 = vrsqrt.pop %v1814
      %v1912 = vmul.f32 %v1911, %v1814
      %v1913 = vmul.f32 %v1912, %v1911
      %v1914 = vmul.f32 0.5, %v1913
      %v1915 = vsub.f32 1.5, %v1914
      %v1916 = vmul.f32 %v1911, %v1915
      %vm1917 = vweird.f32 %v1814
      %vm1918 = vweird.f32 %v1911
      %vm1919 = vmor %vm1917, %vm1918
      %v1920 = vsel %vm1919, %v1911, %v1916
      %v1921 = vrsqrt.pop %v1815
      %v1922 = vmul.f32 %v1921, %v1815
      %v1923 = vmul.f32 %v1922, %v1921
      %v1924 = vmul.f32 0.5, %v1923
      %v1925 = vsub.f32 1.5, %v1924
      %v1926 = vmul.f32 %v1921, %v1925
      %vm1927 = vweird.f32 %v1815
      %vm1928 = vweird.f32 %v1921
      %vm1929 = vmor %vm1927, %vm1928
      %v1930 = vsel %vm1929, %v1921, %v1926
      %v1931 = vrsqrt.pop %v1816
      %v1932 = vmul.f32 %v1931, %v1816
      %v1933 = vmul.f32 %v1932, %v1931
      %v1934 = vmul.f32 0.5, %v1933
      %v1935 = vsub.f32 1.5, %v1934
      %v1936 = vmul.f32 %v1931, %v1935
      %vm1937 = vweird.f32 %v1816
      %vm1938 = vweird.f32 %v1931
      %vm1939 = vmor %vm1937, %vm1938
      %v1940 = vsel %vm1939, %v1931, %v1936
      %v1941 = vrsqrt.pop %v1817
      %v1942 = vmul.f32 %v1941, %v1817
      %v1943 = vmul.f32 %v1942, %v1941
      %v1944 = vmul.f32 0.5, %v1943
      %v1945 = vsub.f32 1.5, %v1944
      %v1946 = vmul.f32 %v1941, %v1945
      %vm1947 = vweird.f32 %v1817
      %vm1948 = vweird.f32 %v1941
      %vm1949 = vmor %vm1947, %vm1948
      %v1950 = vsel %vm1949, %v1941, %v1946
      %v1951 = vrsqrt.pop %v1818
      %v1952 = vmul.f32 %v1951, %v1818
      %v1953 = vmul.f32 %v1952, %v1951
      %v1954 = vmul.f32 0.5, %v1953
      %v1955 = vsub.f32 1.5, %v1954
      %v1956 = vmul.f32 %v1951, %v1955
      %vm1957 = vweird.f32 %v1818
      %vm1958 = vweird.f32 %v1951
      %vm1959 = vmor %vm1957, %vm1958
      %v1960 = vsel %vm1959, %v1951, %v1956
      %v1961 = vrsqrt.pop %v1819
      %v1962 = vmul.f32 %v1961, %v1819
      %v1963 = vmul.f32 %v1962, %v1961
      %v1964 = vmul.f32 0.5, %v1963
      %v1965 = vsub.f32 1.5, %v1964
      %v1966 = vmul.f32 %v1961, %v1965
      %vm1967 = vweird.f32 %v1819
      %vm1968 = vweird.f32 %v1961
      %vm1969 = vmor %vm1967, %vm1968
      %v1970 = vsel %vm1969, %v1961, %v1966
      %v1971 = vrsqrt.pop %v1820
      %v1972 = vmul.f32 %v1971, %v1820
      %v1973 = vmul.f32 %v1972, %v1971
      %v1974 = vmul.f32 0.5, %v1973
      %v1975 = vsub.f32 1.5, %v1974
      %v1976 = vmul.f32 %v1971, %v1975
      %vm1977 = vweird.f32 %v1820
      %vm1978 = vweird.f32 %v1971
      %vm1979 = vmor %vm1977, %vm1978
      %v1980 = vsel %vm1979, %v1971, %v1976
      %v1981 = vmul.f32 %v1725, %v1830
      %v1982 = vmul.f32 %v1726, %v1840
      %v1983 = vmul.f32 %v1727, %v1850
      %v1984 = vmul.f32 %v1728, %v1860
      %v1985 = vmul.f32 %v1729, %v1870
      %v1986 = vmul.f32 %v1730, %v1880
      %v1987 = vmul.f32 %v1731, %v1890
      %v1988 = vmul.f32 %v1732, %v1900
      %v1989 = vmul.f32 %v1733, %v1910
      %v1990 = vmul.f32 %v1734, %v1920
      %v1991 = vmul.f32 %v1735, %v1930
      %v1992 = vmul.f32 %v1736, %v1940
      %v1993 = vmul.f32 %v1737, %v1950
      %v1994 = vmul.f32 %v1738, %v1960
      %v1995 = vmul.f32 %v1739, %v1970
      %v1996 = vmul.f32 %v1740, %v1980
      %v1998 = vperm.slane %v1668, 0
      %v2000 = vmul.f32 %v1981, %v1998
      %v2001 = vmul.f32 %v1982, %v1998
      %v2002 = vmul.f32 %v1983, %v1998
      %v2003 = vmul.f32 %v1984, %v1998
      %v2004 = vmul.f32 %v1985, %v1998
      %v2005 = vmul.f32 %v1986, %v1998
      %v2006 = vmul.f32 %v1987, %v1998
      %v2007 = vmul.f32 %v1988, %v1998
      %v2008 = vmul.f32 %v1989, %v1998
      %v2009 = vmul.f32 %v1990, %v1998
      %v2010 = vmul.f32 %v1991, %v1998
      %v2011 = vmul.f32 %v1992, %v1998
      %v2012 = vmul.f32 %v1993, %v1998
      %v2013 = vmul.f32 %v1994, %v1998
      %v2014 = vmul.f32 %v1995, %v1998
      %v2015 = vmul.f32 %v1996, %v1998
      %v2017 = vperm.slane %v1669, 0
      %v2019 = vadd.f32 %v2000, %v2017
      %v2020 = vadd.f32 %v2001, %v2017
      %v2021 = vadd.f32 %v2002, %v2017
      %v2022 = vadd.f32 %v2003, %v2017
      %v2023 = vadd.f32 %v2004, %v2017
      %v2024 = vadd.f32 %v2005, %v2017
      %v2025 = vadd.f32 %v2006, %v2017
      %v2026 = vadd.f32 %v2007, %v2017
      %v2027 = vadd.f32 %v2008, %v2017
      %v2028 = vadd.f32 %v2009, %v2017
      %v2029 = vadd.f32 %v2010, %v2017
      %v2030 = vadd.f32 %v2011, %v2017
      %v2031 = vadd.f32 %v2012, %v2017
      %v2032 = vadd.f32 %v2013, %v2017
      %v2033 = vadd.f32 %v2014, %v2017
      %v2034 = vadd.f32 %v2015, %v2017
      %v2035 = vpack.c.bf16 %v2020, %v2019
      %v2036 = vpack.c.bf16 %v2022, %v2021
      %v2037 = vpack.c.bf16 %v2024, %v2023
      %v2038 = vpack.c.bf16 %v2026, %v2025
      %v2039 = vpack.c.bf16 %v2028, %v2027
      %v2040 = vpack.c.bf16 %v2030, %v2029
      %v2041 = vpack.c.bf16 %v2032, %v2031
      %v2042 = vpack.c.bf16 %v2034, %v2033
      %v2043 = vld [vmem:[%s9] sm:$0xff]
      %v2044 = vld [vmem:[%s9 + $0x8] sm:$0xff]
      %v2045 = vld [vmem:[%s9 + $0x40] sm:$0xff]
      %v2046 = vld [vmem:[%s9 + $0x48] sm:$0xff]
      %v2047 = vld [vmem:[%s9 + $0x80] sm:$0xff]
      %v2048 = vld [vmem:[%s9 + $0x88] sm:$0xff]
      %v2049 = vld [vmem:[%s9 + $0xc0] sm:$0xff]
      %v2050 = vld [vmem:[%s9 + $0xc8] sm:$0xff]
      %v2051 = vld [vmem:[%s9 + $0x100] sm:$0xff]
      %v2052 = vld [vmem:[%s9 + $0x108] sm:$0xff]
      %v2053 = vld [vmem:[%s9 + $0x140] sm:$0xff]
      %v2054 = vld [vmem:[%s9 + $0x148] sm:$0xff]
      %v2055 = vld [vmem:[%s9 + $0x180] sm:$0xff]
      %v2056 = vld [vmem:[%s9 + $0x188] sm:$0xff]
      %v2057 = vld [vmem:[%s9 + $0x1c0] sm:$0xff]
      %v2058 = vld [vmem:[%s9 + $0x1c8] sm:$0xff]
      %v2059 = vld [vmem:[%s9 + $0x200] sm:$0xff]
      %v2060 = vld [vmem:[%s9 + $0x208] sm:$0xff]
      %v2061 = vld [vmem:[%s9 + $0x240] sm:$0xff]
      %v2062 = vld [vmem:[%s9 + $0x248] sm:$0xff]
      %v2063 = vld [vmem:[%s9 + $0x280] sm:$0xff]
      %v2064 = vld [vmem:[%s9 + $0x288] sm:$0xff]
      %v2065 = vld [vmem:[%s9 + $0x2c0] sm:$0xff]
      %v2066 = vld [vmem:[%s9 + $0x2c8] sm:$0xff]
      %v2067 = vld [vmem:[%s9 + $0x300] sm:$0xff]
      %v2068 = vld [vmem:[%s9 + $0x308] sm:$0xff]
      %v2069 = vld [vmem:[%s9 + $0x340] sm:$0xff]
      %v2070 = vld [vmem:[%s9 + $0x348] sm:$0xff]
      %v2071 = vld [vmem:[%s9 + $0x380] sm:$0xff]
      %v2072 = vld [vmem:[%s9 + $0x388] sm:$0xff]
      %v2073 = vld [vmem:[%s9 + $0x3c0] sm:$0xff]
      %v2074 = vld [vmem:[%s9 + $0x3c8] sm:$0xff]
      %v2075 = vld [vmem:[%s10] sm:$0xf]
      %v2076 = vld [vmem:[%s11] sm:$0xf]
      %v2077 = vld [vmem:[%s11 + $0x4] sm:$0xf]
      %v2078 = vld [vmem:[%s11 + $0x8] sm:$0xf]
      %v2079 = vld [vmem:[%s11 + $0xc] sm:$0xf]
      %v2080 = vld [vmem:[%s11 + $0x10] sm:$0xf]
      %v2081 = vld [vmem:[%s11 + $0x14] sm:$0xf]
      %v2082 = vld [vmem:[%s11 + $0x18] sm:$0xf]
      %v2083 = vld [vmem:[%s11 + $0x1c] sm:$0xf]
      %v2084 = vld [vmem:[%s11 + $0x20] sm:$0xf]
      %v2085 = vld [vmem:[%s11 + $0x24] sm:$0xf]
      %v2086 = vld [vmem:[%s11 + $0x28] sm:$0xf]
      %v2087 = vld [vmem:[%s11 + $0x2c] sm:$0xf]
      %v2088 = vld [vmem:[%s11 + $0x30] sm:$0xf]
      %v2089 = vld [vmem:[%s11 + $0x34] sm:$0xf]
      %v2090 = vld [vmem:[%s11 + $0x38] sm:$0xf]
      %v2091 = vld [vmem:[%s11 + $0x3c] sm:$0xf]
      %v2092 = vld [vmem:[%s11 + $0x40] sm:$0xf]
      %v2093 = vld [vmem:[%s11 + $0x44] sm:$0xf]
      %v2094 = vld [vmem:[%s11 + $0x48] sm:$0xf]
      %v2095 = vld [vmem:[%s11 + $0x4c] sm:$0xf]
      %v2096 = vld [vmem:[%s11 + $0x50] sm:$0xf]
      %v2097 = vld [vmem:[%s11 + $0x54] sm:$0xf]
      %v2098 = vld [vmem:[%s11 + $0x58] sm:$0xf]
      %v2099 = vld [vmem:[%s11 + $0x5c] sm:$0xf]
      %v2100 = vld [vmem:[%s11 + $0x60] sm:$0xf]
      %v2101 = vld [vmem:[%s11 + $0x64] sm:$0xf]
      %v2102 = vld [vmem:[%s11 + $0x68] sm:$0xf]
      %v2103 = vld [vmem:[%s11 + $0x6c] sm:$0xf]
      %v2104 = vld [vmem:[%s11 + $0x70] sm:$0xf]
      %v2105 = vld [vmem:[%s11 + $0x74] sm:$0xf]
      %v2106 = vld [vmem:[%s11 + $0x78] sm:$0xf]
      %v2107 = vld [vmem:[%s11 + $0x7c] sm:$0xf]
      %v2108 = vld [vmem:[%s11 + $0x80] sm:$0xf]
      %v2109 = vld [vmem:[%s11 + $0x84] sm:$0xf]
      %v2110 = vld [vmem:[%s11 + $0x88] sm:$0xf]
      %v2111 = vld [vmem:[%s11 + $0x8c] sm:$0xf]
      %v2112 = vld [vmem:[%s11 + $0x90] sm:$0xf]
      %v2113 = vld [vmem:[%s11 + $0x94] sm:$0xf]
      %v2114 = vld [vmem:[%s11 + $0x98] sm:$0xf]
      %v2115 = vld [vmem:[%s11 + $0x9c] sm:$0xf]
      %v2116 = vld [vmem:[%s11 + $0xa0] sm:$0xf]
      %v2117 = vld [vmem:[%s11 + $0xa4] sm:$0xf]
      %v2118 = vld [vmem:[%s11 + $0xa8] sm:$0xf]
      %v2119 = vld [vmem:[%s11 + $0xac] sm:$0xf]
      %v2120 = vld [vmem:[%s11 + $0xb0] sm:$0xf]
      %v2121 = vld [vmem:[%s11 + $0xb4] sm:$0xf]
      %v2122 = vld [vmem:[%s11 + $0xb8] sm:$0xf]
      %v2123 = vld [vmem:[%s11 + $0xbc] sm:$0xf]
      %v2124 = vld [vmem:[%s11 + $0xc0] sm:$0xf]
      %v2125 = vld [vmem:[%s11 + $0xc4] sm:$0xf]
      %v2126 = vld [vmem:[%s11 + $0xc8] sm:$0xf]
      %v2127 = vld [vmem:[%s11 + $0xcc] sm:$0xf]
      %v2128 = vld [vmem:[%s11 + $0xd0] sm:$0xf]
      %v2129 = vld [vmem:[%s11 + $0xd4] sm:$0xf]
      %v2130 = vld [vmem:[%s11 + $0xd8] sm:$0xf]
      %v2131 = vld [vmem:[%s11 + $0xdc] sm:$0xf]
      %v2132 = vld [vmem:[%s11 + $0xe0] sm:$0xf]
      %v2133 = vld [vmem:[%s11 + $0xe4] sm:$0xf]
      %v2134 = vld [vmem:[%s11 + $0xe8] sm:$0xf]
      %v2135 = vld [vmem:[%s11 + $0xec] sm:$0xf]
      %v2136 = vld [vmem:[%s11 + $0xf0] sm:$0xf]
      %v2137 = vld [vmem:[%s11 + $0xf4] sm:$0xf]
      %v2138 = vld [vmem:[%s11 + $0xf8] sm:$0xf]
      %v2139 = vld [vmem:[%s11 + $0xfc] sm:$0xf]
      %v2141 = vperm.slane %v2075, 0
      %v2142 = vperm.slane %v2075, 1
      %v2143 = vperm.slane %v2075, 2
      %v2144 = vperm.slane %v2075, 3
      %v2181 = vunpack.c.l.b16 %v2043
      %v2182 = vunpack.c.h.b16 %v2043
      %v2183 = vunpack.c.l.b16 %v2044
      %v2184 = vunpack.c.h.b16 %v2044
      %v2185 = vunpack.c.l.b16 %v2045
      %v2186 = vunpack.c.h.b16 %v2045
      %v2187 = vunpack.c.l.b16 %v2046
      %v2188 = vunpack.c.h.b16 %v2046
      %v2189 = vunpack.c.l.b16 %v2047
      %v2190 = vunpack.c.h.b16 %v2047
      %v2191 = vunpack.c.l.b16 %v2048
      %v2192 = vunpack.c.h.b16 %v2048
      %v2193 = vunpack.c.l.b16 %v2049
      %v2194 = vunpack.c.h.b16 %v2049
      %v2195 = vunpack.c.l.b16 %v2050
      %v2196 = vunpack.c.h.b16 %v2050
      %v2197 = vunpack.c.l.b16 %v2051
      %v2198 = vunpack.c.h.b16 %v2051
      %v2199 = vunpack.c.l.b16 %v2052
      %v2200 = vunpack.c.h.b16 %v2052
      %v2201 = vunpack.c.l.b16 %v2053
      %v2202 = vunpack.c.h.b16 %v2053
      %v2203 = vunpack.c.l.b16 %v2054
      %v2204 = vunpack.c.h.b16 %v2054
      %v2205 = vunpack.c.l.b16 %v2055
      %v2206 = vunpack.c.h.b16 %v2055
      %v2207 = vunpack.c.l.b16 %v2056
      %v2208 = vunpack.c.h.b16 %v2056
      %v2209 = vunpack.c.l.b16 %v2057
      %v2210 = vunpack.c.h.b16 %v2057
      %v2211 = vunpack.c.l.b16 %v2058
      %v2212 = vunpack.c.h.b16 %v2058
      %v2213 = vunpack.c.l.b16 %v2059
      %v2214 = vunpack.c.h.b16 %v2059
      %v2215 = vunpack.c.l.b16 %v2060
      %v2216 = vunpack.c.h.b16 %v2060
      %v2217 = vunpack.c.l.b16 %v2061
      %v2218 = vunpack.c.h.b16 %v2061
      %v2219 = vunpack.c.l.b16 %v2062
      %v2220 = vunpack.c.h.b16 %v2062
      %v2221 = vunpack.c.l.b16 %v2063
      %v2222 = vunpack.c.h.b16 %v2063
      %v2223 = vunpack.c.l.b16 %v2064
      %v2224 = vunpack.c.h.b16 %v2064
      %v2225 = vunpack.c.l.b16 %v2065
      %v2226 = vunpack.c.h.b16 %v2065
      %v2227 = vunpack.c.l.b16 %v2066
      %v2228 = vunpack.c.h.b16 %v2066
      %v2229 = vunpack.c.l.b16 %v2067
      %v2230 = vunpack.c.h.b16 %v2067
      %v2231 = vunpack.c.l.b16 %v2068
      %v2232 = vunpack.c.h.b16 %v2068
      %v2233 = vunpack.c.l.b16 %v2069
      %v2234 = vunpack.c.h.b16 %v2069
      %v2235 = vunpack.c.l.b16 %v2070
      %v2236 = vunpack.c.h.b16 %v2070
      %v2237 = vunpack.c.l.b16 %v2071
      %v2238 = vunpack.c.h.b16 %v2071
      %v2239 = vunpack.c.l.b16 %v2072
      %v2240 = vunpack.c.h.b16 %v2072
      %v2241 = vunpack.c.l.b16 %v2073
      %v2242 = vunpack.c.h.b16 %v2073
      %v2243 = vunpack.c.l.b16 %v2074
      %v2244 = vunpack.c.h.b16 %v2074
      %v2245 = vpack.c.b16 %v2185, %v2181
      %v2246 = vpack.c.b16 %v2186, %v2182
      %v2247 = vpack.c.b16 %v2187, %v2183
      %v2248 = vpack.c.b16 %v2188, %v2184
      %v2249 = vpack.c.b16 %v2193, %v2189
      %v2250 = vpack.c.b16 %v2194, %v2190
      %v2251 = vpack.c.b16 %v2195, %v2191
      %v2252 = vpack.c.b16 %v2196, %v2192
      %v2253 = vpack.c.b16 %v2201, %v2197
      %v2254 = vpack.c.b16 %v2202, %v2198
      %v2255 = vpack.c.b16 %v2203, %v2199
      %v2256 = vpack.c.b16 %v2204, %v2200
      %v2257 = vpack.c.b16 %v2209, %v2205
      %v2258 = vpack.c.b16 %v2210, %v2206
      %v2259 = vpack.c.b16 %v2211, %v2207
      %v2260 = vpack.c.b16 %v2212, %v2208
      %v2261 = vpack.c.b16 %v2217, %v2213
      %v2262 = vpack.c.b16 %v2218, %v2214
      %v2263 = vpack.c.b16 %v2219, %v2215
      %v2264 = vpack.c.b16 %v2220, %v2216
      %v2265 = vpack.c.b16 %v2225, %v2221
      %v2266 = vpack.c.b16 %v2226, %v2222
      %v2267 = vpack.c.b16 %v2227, %v2223
      %v2268 = vpack.c.b16 %v2228, %v2224
      %v2269 = vpack.c.b16 %v2233, %v2229
      %v2270 = vpack.c.b16 %v2234, %v2230
      %v2271 = vpack.c.b16 %v2235, %v2231
      %v2272 = vpack.c.b16 %v2236, %v2232
      %v2273 = vpack.c.b16 %v2241, %v2237
      %v2274 = vpack.c.b16 %v2242, %v2238
      %v2275 = vpack.c.b16 %v2243, %v2239
      %v2276 = vpack.c.b16 %v2244, %v2240
      %2309 = vmatpush.bf16.msra.mxu0 %v2273
      %2310 = vmatpush.bf16.msra.mxu0 %v2269
      %2311 = vmatpush.bf16.msra.mxu0 %v2265
      %2312 = vmatpush.bf16.msra.mxu0 %v2261
      %2313 = vmatpush.bf16.msra.mxu0 %v2257
      %2314 = vmatpush.bf16.msra.mxu0 %v2253
      %2315 = vmatpush.bf16.msra.mxu0 %v2249
      %2316 = vmatpush.bf16.msra.mxu0 %v2245
      %2317 = vmatmul.bf16.gmra.mxu0 %v2035
      %v2318 = vpop.f32.mrf.mxu0
      %v2319 = vadd.f32 %v2141, %v2318
      %v2320 = vpop.f32.mrf.mxu0
      %v2321 = vadd.f32 %v2141, %v2320
      %2322 = vmatmul.bf16.gmra.mxu0 %v2036
      %v2323 = vpop.f32.mrf.mxu0
      %v2324 = vadd.f32 %v2141, %v2323
      %v2325 = vpop.f32.mrf.mxu0
      %v2326 = vadd.f32 %v2141, %v2325
      %2327 = vmatmul.bf16.gmra.mxu0 %v2037
      %v2328 = vpop.f32.mrf.mxu0
      %v2329 = vadd.f32 %v2141, %v2328
      %v2330 = vpop.f32.mrf.mxu0
      %v2331 = vadd.f32 %v2141, %v2330
      %2332 = vmatmul.bf16.gmra.mxu0 %v2038
      %v2333 = vpop.f32.mrf.mxu0
      %v2334 = vadd.f32 %v2141, %v2333
      %v2335 = vpop.f32.mrf.mxu0
      %v2336 = vadd.f32 %v2141, %v2335
      %2337 = vmatmul.bf16.gmra.mxu0 %v2039
      %v2338 = vpop.f32.mrf.mxu0
      %v2339 = vadd.f32 %v2141, %v2338
      %v2340 = vpop.f32.mrf.mxu0
      %v2341 = vadd.f32 %v2141, %v2340
      %2342 = vmatmul.bf16.gmra.mxu0 %v2040
      %v2343 = vpop.f32.mrf.mxu0
      %v2344 = vadd.f32 %v2141, %v2343
      %v2345 = vpop.f32.mrf.mxu0
      %v2346 = vadd.f32 %v2141, %v2345
      %2347 = vmatmul.bf16.gmra.mxu0 %v2041
      %v2348 = vpop.f32.mrf.mxu0
      %v2349 = vadd.f32 %v2141, %v2348
      %v2350 = vpop.f32.mrf.mxu0
      %v2351 = vadd.f32 %v2141, %v2350
      %2352 = vmatmul.bf16.gmra.mxu0 %v2042
      %v2353 = vpop.f32.mrf.mxu0
      %v2354 = vadd.f32 %v2141, %v2353
      %v2355 = vpop.f32.mrf.mxu0
      %v2356 = vadd.f32 %v2141, %v2355
      %2357 = vdwg.mxu0
      %2358 = vmatpush.bf16.msra.mxu0 %v2274
      %2359 = vmatpush.bf16.msra.mxu0 %v2270
      %2360 = vmatpush.bf16.msra.mxu0 %v2266
      %2361 = vmatpush.bf16.msra.mxu0 %v2262
      %2362 = vmatpush.bf16.msra.mxu0 %v2258
      %2363 = vmatpush.bf16.msra.mxu0 %v2254
      %2364 = vmatpush.bf16.msra.mxu0 %v2250
      %2365 = vmatpush.bf16.msra.mxu0 %v2246
      %2366 = vmatmul.bf16.gmra.mxu0 %v2035
      %v2367 = vpop.f32.mrf.mxu0
      %v2368 = vadd.f32 %v2142, %v2367
      %v2369 = vpop.f32.mrf.mxu0
      %v2370 = vadd.f32 %v2142, %v2369
      %2371 = vmatmul.bf16.gmra.mxu0 %v2036
      %v2372 = vpop.f32.mrf.mxu0
      %v2373 = vadd.f32 %v2142, %v2372
      %v2374 = vpop.f32.mrf.mxu0
      %v2375 = vadd.f32 %v2142, %v2374
      %2376 = vmatmul.bf16.gmra.mxu0 %v2037
      %v2377 = vpop.f32.mrf.mxu0
      %v2378 = vadd.f32 %v2142, %v2377
      %v2379 = vpop.f32.mrf.mxu0
      %v2380 = vadd.f32 %v2142, %v2379
      %2381 = vmatmul.bf16.gmra.mxu0 %v2038
      %v2382 = vpop.f32.mrf.mxu0
      %v2383 = vadd.f32 %v2142, %v2382
      %v2384 = vpop.f32.mrf.mxu0
      %v2385 = vadd.f32 %v2142, %v2384
      %2386 = vmatmul.bf16.gmra.mxu0 %v2039
      %v2387 = vpop.f32.mrf.mxu0
      %v2388 = vadd.f32 %v2142, %v2387
      %v2389 = vpop.f32.mrf.mxu0
      %v2390 = vadd.f32 %v2142, %v2389
      %2391 = vmatmul.bf16.gmra.mxu0 %v2040
      %v2392 = vpop.f32.mrf.mxu0
      %v2393 = vadd.f32 %v2142, %v2392
      %v2394 = vpop.f32.mrf.mxu0
      %v2395 = vadd.f32 %v2142, %v2394
      %2396 = vmatmul.bf16.gmra.mxu0 %v2041
      %v2397 = vpop.f32.mrf.mxu0
      %v2398 = vadd.f32 %v2142, %v2397
      %v2399 = vpop.f32.mrf.mxu0
      %v2400 = vadd.f32 %v2142, %v2399
      %2401 = vmatmul.bf16.gmra.mxu0 %v2042
      %v2402 = vpop.f32.mrf.mxu0
      %v2403 = vadd.f32 %v2142, %v2402
      %v2404 = vpop.f32.mrf.mxu0
      %v2405 = vadd.f32 %v2142, %v2404
      %2406 = vdwg.mxu0
      %2407 = vmatpush.bf16.msra.mxu0 %v2275
      %2408 = vmatpush.bf16.msra.mxu0 %v2271
      %2409 = vmatpush.bf16.msra.mxu0 %v2267
      %2410 = vmatpush.bf16.msra.mxu0 %v2263
      %2411 = vmatpush.bf16.msra.mxu0 %v2259
      %2412 = vmatpush.bf16.msra.mxu0 %v2255
      %2413 = vmatpush.bf16.msra.mxu0 %v2251
      %2414 = vmatpush.bf16.msra.mxu0 %v2247
      %2415 = vmatmul.bf16.gmra.mxu0 %v2035
      %v2416 = vpop.f32.mrf.mxu0
      %v2417 = vadd.f32 %v2143, %v2416
      %v2418 = vpop.f32.mrf.mxu0
      %v2419 = vadd.f32 %v2143, %v2418
      %2420 = vmatmul.bf16.gmra.mxu0 %v2036
      %v2421 = vpop.f32.mrf.mxu0
      %v2422 = vadd.f32 %v2143, %v2421
      %v2423 = vpop.f32.mrf.mxu0
      %v2424 = vadd.f32 %v2143, %v2423
      %2425 = vmatmul.bf16.gmra.mxu0 %v2037
      %v2426 = vpop.f32.mrf.mxu0
      %v2427 = vadd.f32 %v2143, %v2426
      %v2428 = vpop.f32.mrf.mxu0
      %v2429 = vadd.f32 %v2143, %v2428
      %2430 = vmatmul.bf16.gmra.mxu0 %v2038
      %v2431 = vpop.f32.mrf.mxu0
      %v2432 = vadd.f32 %v2143, %v2431
      %v2433 = vpop.f32.mrf.mxu0
      %v2434 = vadd.f32 %v2143, %v2433
      %2435 = vmatmul.bf16.gmra.mxu0 %v2039
      %v2436 = vpop.f32.mrf.mxu0
      %v2437 = vadd.f32 %v2143, %v2436
      %v2438 = vpop.f32.mrf.mxu0
      %v2439 = vadd.f32 %v2143, %v2438
      %2440 = vmatmul.bf16.gmra.mxu0 %v2040
      %v2441 = vpop.f32.mrf.mxu0
      %v2442 = vadd.f32 %v2143, %v2441
      %v2443 = vpop.f32.mrf.mxu0
      %v2444 = vadd.f32 %v2143, %v2443
      %2445 = vmatmul.bf16.gmra.mxu0 %v2041
      %v2446 = vpop.f32.mrf.mxu0
      %v2447 = vadd.f32 %v2143, %v2446
      %v2448 = vpop.f32.mrf.mxu0
      %v2449 = vadd.f32 %v2143, %v2448
      %2450 = vmatmul.bf16.gmra.mxu0 %v2042
      %v2451 = vpop.f32.mrf.mxu0
      %v2452 = vadd.f32 %v2143, %v2451
      %v2453 = vpop.f32.mrf.mxu0
      %v2454 = vadd.f32 %v2143, %v2453
      %2455 = vdwg.mxu0
      %2456 = vmatpush.bf16.msra.mxu0 %v2276
      %2457 = vmatpush.bf16.msra.mxu0 %v2272
      %2458 = vmatpush.bf16.msra.mxu0 %v2268
      %2459 = vmatpush.bf16.msra.mxu0 %v2264
      %2460 = vmatpush.bf16.msra.mxu0 %v2260
      %2461 = vmatpush.bf16.msra.mxu0 %v2256
      %2462 = vmatpush.bf16.msra.mxu0 %v2252
      %2463 = vmatpush.bf16.msra.mxu0 %v2248
      %2464 = vmatmul.bf16.gmra.mxu0 %v2035
      %v2465 = vpop.f32.mrf.mxu0
      %v2466 = vadd.f32 %v2144, %v2465
      %v2467 = vpop.f32.mrf.mxu0
      %v2468 = vadd.f32 %v2144, %v2467
      %2469 = vmatmul.bf16.gmra.mxu0 %v2036
      %v2470 = vpop.f32.mrf.mxu0
      %v2471 = vadd.f32 %v2144, %v2470
      %v2472 = vpop.f32.mrf.mxu0
      %v2473 = vadd.f32 %v2144, %v2472
      %2474 = vmatmul.bf16.gmra.mxu0 %v2037
      %v2475 = vpop.f32.mrf.mxu0
      %v2476 = vadd.f32 %v2144, %v2475
      %v2477 = vpop.f32.mrf.mxu0
      %v2478 = vadd.f32 %v2144, %v2477
      %2479 = vmatmul.bf16.gmra.mxu0 %v2038
      %v2480 = vpop.f32.mrf.mxu0
      %v2481 = vadd.f32 %v2144, %v2480
      %v2482 = vpop.f32.mrf.mxu0
      %v2483 = vadd.f32 %v2144, %v2482
      %2484 = vmatmul.bf16.gmra.mxu0 %v2039
      %v2485 = vpop.f32.mrf.mxu0
      %v2486 = vadd.f32 %v2144, %v2485
      %v2487 = vpop.f32.mrf.mxu0
      %v2488 = vadd.f32 %v2144, %v2487
      %2489 = vmatmul.bf16.gmra.mxu0 %v2040
      %v2490 = vpop.f32.mrf.mxu0
      %v2491 = vadd.f32 %v2144, %v2490
      %v2492 = vpop.f32.mrf.mxu0
      %v2493 = vadd.f32 %v2144, %v2492
      %2494 = vmatmul.bf16.gmra.mxu0 %v2041
      %v2495 = vpop.f32.mrf.mxu0
      %v2496 = vadd.f32 %v2144, %v2495
      %v2497 = vpop.f32.mrf.mxu0
      %v2498 = vadd.f32 %v2144, %v2497
      %2499 = vmatmul.bf16.gmra.mxu0 %v2042
      %v2500 = vpop.f32.mrf.mxu0
      %v2501 = vadd.f32 %v2144, %v2500
      %v2502 = vpop.f32.mrf.mxu0
      %v2503 = vadd.f32 %v2144, %v2502
      %2504 = vdwg.mxu0
      %v2505 = vmax.f32 %v2319, 0.0
      %v2506 = vmax.f32 %v2368, 0.0
      %v2507 = vmax.f32 %v2417, 0.0
      %v2508 = vmax.f32 %v2466, 0.0
      %v2509 = vmax.f32 %v2321, 0.0
      %v2510 = vmax.f32 %v2370, 0.0
      %v2511 = vmax.f32 %v2419, 0.0
      %v2512 = vmax.f32 %v2468, 0.0
      %v2513 = vmax.f32 %v2324, 0.0
      %v2514 = vmax.f32 %v2373, 0.0
      %v2515 = vmax.f32 %v2422, 0.0
      %v2516 = vmax.f32 %v2471, 0.0
      %v2517 = vmax.f32 %v2326, 0.0
      %v2518 = vmax.f32 %v2375, 0.0
      %v2519 = vmax.f32 %v2424, 0.0
      %v2520 = vmax.f32 %v2473, 0.0
      %v2521 = vmax.f32 %v2329, 0.0
      %v2522 = vmax.f32 %v2378, 0.0
      %v2523 = vmax.f32 %v2427, 0.0
      %v2524 = vmax.f32 %v2476, 0.0
      %v2525 = vmax.f32 %v2331, 0.0
      %v2526 = vmax.f32 %v2380, 0.0
      %v2527 = vmax.f32 %v2429, 0.0
      %v2528 = vmax.f32 %v2478, 0.0
      %v2529 = vmax.f32 %v2334, 0.0
      %v2530 = vmax.f32 %v2383, 0.0
      %v2531 = vmax.f32 %v2432, 0.0
      %v2532 = vmax.f32 %v2481, 0.0
      %v2533 = vmax.f32 %v2336, 0.0
      %v2534 = vmax.f32 %v2385, 0.0
      %v2535 = vmax.f32 %v2434, 0.0
      %v2536 = vmax.f32 %v2483, 0.0
      %v2537 = vmax.f32 %v2339, 0.0
      %v2538 = vmax.f32 %v2388, 0.0
      %v2539 = vmax.f32 %v2437, 0.0
      %v2540 = vmax.f32 %v2486, 0.0
      %v2541 = vmax.f32 %v2341, 0.0
      %v2542 = vmax.f32 %v2390, 0.0
      %v2543 = vmax.f32 %v2439, 0.0
      %v2544 = vmax.f32 %v2488, 0.0
      %v2545 = vmax.f32 %v2344, 0.0
      %v2546 = vmax.f32 %v2393, 0.0
      %v2547 = vmax.f32 %v2442, 0.0
      %v2548 = vmax.f32 %v2491, 0.0
      %v2549 = vmax.f32 %v2346, 0.0
      %v2550 = vmax.f32 %v2395, 0.0
      %v2551 = vmax.f32 %v2444, 0.0
      %v2552 = vmax.f32 %v2493, 0.0
      %v2553 = vmax.f32 %v2349, 0.0
      %v2554 = vmax.f32 %v2398, 0.0
      %v2555 = vmax.f32 %v2447, 0.0
      %v2556 = vmax.f32 %v2496, 0.0
      %v2557 = vmax.f32 %v2351, 0.0
      %v2558 = vmax.f32 %v2400, 0.0
      %v2559 = vmax.f32 %v2449, 0.0
      %v2560 = vmax.f32 %v2498, 0.0
      %v2561 = vmax.f32 %v2354, 0.0
      %v2562 = vmax.f32 %v2403, 0.0
      %v2563 = vmax.f32 %v2452, 0.0
      %v2564 = vmax.f32 %v2501, 0.0
      %v2565 = vmax.f32 %v2356, 0.0
      %v2566 = vmax.f32 %v2405, 0.0
      %v2567 = vmax.f32 %v2454, 0.0
      %v2568 = vmax.f32 %v2503, 0.0
      %v2569 = vpack.c.bf16 %v2509, %v2505
      %v2570 = vpack.c.bf16 %v2510, %v2506
      %v2571 = vpack.c.bf16 %v2511, %v2507
      %v2572 = vpack.c.bf16 %v2512, %v2508
      %v2573 = vpack.c.bf16 %v2517, %v2513
      %v2574 = vpack.c.bf16 %v2518, %v2514
      %v2575 = vpack.c.bf16 %v2519, %v2515
      %v2576 = vpack.c.bf16 %v2520, %v2516
      %v2577 = vpack.c.bf16 %v2525, %v2521
      %v2578 = vpack.c.bf16 %v2526, %v2522
      %v2579 = vpack.c.bf16 %v2527, %v2523
      %v2580 = vpack.c.bf16 %v2528, %v2524
      %v2581 = vpack.c.bf16 %v2533, %v2529
      %v2582 = vpack.c.bf16 %v2534, %v2530
      %v2583 = vpack.c.bf16 %v2535, %v2531
      %v2584 = vpack.c.bf16 %v2536, %v2532
      %v2585 = vpack.c.bf16 %v2541, %v2537
      %v2586 = vpack.c.bf16 %v2542, %v2538
      %v2587 = vpack.c.bf16 %v2543, %v2539
      %v2588 = vpack.c.bf16 %v2544, %v2540
      %v2589 = vpack.c.bf16 %v2549, %v2545
      %v2590 = vpack.c.bf16 %v2550, %v2546
      %v2591 = vpack.c.bf16 %v2551, %v2547
      %v2592 = vpack.c.bf16 %v2552, %v2548
      %v2593 = vpack.c.bf16 %v2557, %v2553
      %v2594 = vpack.c.bf16 %v2558, %v2554
      %v2595 = vpack.c.bf16 %v2559, %v2555
      %v2596 = vpack.c.bf16 %v2560, %v2556
      %v2597 = vpack.c.bf16 %v2565, %v2561
      %v2598 = vpack.c.bf16 %v2566, %v2562
      %v2599 = vpack.c.bf16 %v2567, %v2563
      %v2600 = vpack.c.bf16 %v2568, %v2564
      %v2601 = vld [vmem:[%s9 + $0x10] sm:$0xff]
      %v2602 = vld [vmem:[%s9 + $0x18] sm:$0xff]
      %v2603 = vld [vmem:[%s9 + $0x50] sm:$0xff]
      %v2604 = vld [vmem:[%s9 + $0x58] sm:$0xff]
      %v2605 = vld [vmem:[%s9 + $0x90] sm:$0xff]
      %v2606 = vld [vmem:[%s9 + $0x98] sm:$0xff]
      %v2607 = vld [vmem:[%s9 + $0xd0] sm:$0xff]
      %v2608 = vld [vmem:[%s9 + $0xd8] sm:$0xff]
      %v2609 = vld [vmem:[%s9 + $0x110] sm:$0xff]
      %v2610 = vld [vmem:[%s9 + $0x118] sm:$0xff]
      %v2611 = vld [vmem:[%s9 + $0x150] sm:$0xff]
      %v2612 = vld [vmem:[%s9 + $0x158] sm:$0xff]
      %v2613 = vld [vmem:[%s9 + $0x190] sm:$0xff]
      %v2614 = vld [vmem:[%s9 + $0x198] sm:$0xff]
      %v2615 = vld [vmem:[%s9 + $0x1d0] sm:$0xff]
      %v2616 = vld [vmem:[%s9 + $0x1d8] sm:$0xff]
      %v2617 = vld [vmem:[%s9 + $0x210] sm:$0xff]
      %v2618 = vld [vmem:[%s9 + $0x218] sm:$0xff]
      %v2619 = vld [vmem:[%s9 + $0x250] sm:$0xff]
      %v2620 = vld [vmem:[%s9 + $0x258] sm:$0xff]
      %v2621 = vld [vmem:[%s9 + $0x290] sm:$0xff]
      %v2622 = vld [vmem:[%s9 + $0x298] sm:$0xff]
      %v2623 = vld [vmem:[%s9 + $0x2d0] sm:$0xff]
      %v2624 = vld [vmem:[%s9 + $0x2d8] sm:$0xff]
      %v2625 = vld [vmem:[%s9 + $0x310] sm:$0xff]
      %v2626 = vld [vmem:[%s9 + $0x318] sm:$0xff]
      %v2627 = vld [vmem:[%s9 + $0x350] sm:$0xff]
      %v2628 = vld [vmem:[%s9 + $0x358] sm:$0xff]
      %v2629 = vld [vmem:[%s9 + $0x390] sm:$0xff]
      %v2630 = vld [vmem:[%s9 + $0x398] sm:$0xff]
      %v2631 = vld [vmem:[%s9 + $0x3d0] sm:$0xff]
      %v2632 = vld [vmem:[%s9 + $0x3d8] sm:$0xff]
      %v2633 = vld [vmem:[%s10 + $0x4] sm:$0xf]
      %v2634 = vld [vmem:[%s11 + $0x100] sm:$0xf]
      %v2635 = vld [vmem:[%s11 + $0x104] sm:$0xf]
      %v2636 = vld [vmem:[%s11 + $0x108] sm:$0xf]
      %v2637 = vld [vmem:[%s11 + $0x10c] sm:$0xf]
      %v2638 = vld [vmem:[%s11 + $0x110] sm:$0xf]
      %v2639 = vld [vmem:[%s11 + $0x114] sm:$0xf]
      %v2640 = vld [vmem:[%s11 + $0x118] sm:$0xf]
      %v2641 = vld [vmem:[%s11 + $0x11c] sm:$0xf]
      %v2642 = vld [vmem:[%s11 + $0x120] sm:$0xf]
      %v2643 = vld [vmem:[%s11 + $0x124] sm:$0xf]
      %v2644 = vld [vmem:[%s11 + $0x128] sm:$0xf]
      %v2645 = vld [vmem:[%s11 + $0x12c] sm:$0xf]
      %v2646 = vld [vmem:[%s11 + $0x130] sm:$0xf]
      %v2647 = vld [vmem:[%s11 + $0x134] sm:$0xf]
      %v2648 = vld [vmem:[%s11 + $0x138] sm:$0xf]
      %v2649 = vld [vmem:[%s11 + $0x13c] sm:$0xf]
      %v2650 = vld [vmem:[%s11 + $0x140] sm:$0xf]
      %v2651 = vld [vmem:[%s11 + $0x144] sm:$0xf]
      %v2652 = vld [vmem:[%s11 + $0x148] sm:$0xf]
      %v2653 = vld [vmem:[%s11 + $0x14c] sm:$0xf]
      %v2654 = vld [vmem:[%s11 + $0x150] sm:$0xf]
      %v2655 = vld [vmem:[%s11 + $0x154] sm:$0xf]
      %v2656 = vld [vmem:[%s11 + $0x158] sm:$0xf]
      %v2657 = vld [vmem:[%s11 + $0x15c] sm:$0xf]
      %v2658 = vld [vmem:[%s11 + $0x160] sm:$0xf]
      %v2659 = vld [vmem:[%s11 + $0x164] sm:$0xf]
      %v2660 = vld [vmem:[%s11 + $0x168] sm:$0xf]
      %v2661 = vld [vmem:[%s11 + $0x16c] sm:$0xf]
      %v2662 = vld [vmem:[%s11 + $0x170] sm:$0xf]
      %v2663 = vld [vmem:[%s11 + $0x174] sm:$0xf]
      %v2664 = vld [vmem:[%s11 + $0x178] sm:$0xf]
      %v2665 = vld [vmem:[%s11 + $0x17c] sm:$0xf]
      %v2666 = vld [vmem:[%s11 + $0x180] sm:$0xf]
      %v2667 = vld [vmem:[%s11 + $0x184] sm:$0xf]
      %v2668 = vld [vmem:[%s11 + $0x188] sm:$0xf]
      %v2669 = vld [vmem:[%s11 + $0x18c] sm:$0xf]
      %v2670 = vld [vmem:[%s11 + $0x190] sm:$0xf]
      %v2671 = vld [vmem:[%s11 + $0x194] sm:$0xf]
      %v2672 = vld [vmem:[%s11 + $0x198] sm:$0xf]
      %v2673 = vld [vmem:[%s11 + $0x19c] sm:$0xf]
      %v2674 = vld [vmem:[%s11 + $0x1a0] sm:$0xf]
      %v2675 = vld [vmem:[%s11 + $0x1a4] sm:$0xf]
      %v2676 = vld [vmem:[%s11 + $0x1a8] sm:$0xf]
      %v2677 = vld [vmem:[%s11 + $0x1ac] sm:$0xf]
      %v2678 = vld [vmem:[%s11 + $0x1b0] sm:$0xf]
      %v2679 = vld [vmem:[%s11 + $0x1b4] sm:$0xf]
      %v2680 = vld [vmem:[%s11 + $0x1b8] sm:$0xf]
      %v2681 = vld [vmem:[%s11 + $0x1bc] sm:$0xf]
      %v2682 = vld [vmem:[%s11 + $0x1c0] sm:$0xf]
      %v2683 = vld [vmem:[%s11 + $0x1c4] sm:$0xf]
      %v2684 = vld [vmem:[%s11 + $0x1c8] sm:$0xf]
      %v2685 = vld [vmem:[%s11 + $0x1cc] sm:$0xf]
      %v2686 = vld [vmem:[%s11 + $0x1d0] sm:$0xf]
      %v2687 = vld [vmem:[%s11 + $0x1d4] sm:$0xf]
      %v2688 = vld [vmem:[%s11 + $0x1d8] sm:$0xf]
      %v2689 = vld [vmem:[%s11 + $0x1dc] sm:$0xf]
      %v2690 = vld [vmem:[%s11 + $0x1e0] sm:$0xf]
      %v2691 = vld [vmem:[%s11 + $0x1e4] sm:$0xf]
      %v2692 = vld [vmem:[%s11 + $0x1e8] sm:$0xf]
      %v2693 = vld [vmem:[%s11 + $0x1ec] sm:$0xf]
      %v2694 = vld [vmem:[%s11 + $0x1f0] sm:$0xf]
      %v2695 = vld [vmem:[%s11 + $0x1f4] sm:$0xf]
      %v2696 = vld [vmem:[%s11 + $0x1f8] sm:$0xf]
      %v2697 = vld [vmem:[%s11 + $0x1fc] sm:$0xf]
      %v2699 = vperm.slane %v2633, 0
      %v2700 = vperm.slane %v2633, 1
      %v2701 = vperm.slane %v2633, 2
      %v2702 = vperm.slane %v2633, 3
      %v2739 = vunpack.c.l.b16 %v2601
      %v2740 = vunpack.c.h.b16 %v2601
      %v2741 = vunpack.c.l.b16 %v2602
      %v2742 = vunpack.c.h.b16 %v2602
      %v2743 = vunpack.c.l.b16 %v2603
      %v2744 = vunpack.c.h.b16 %v2603
      %v2745 = vunpack.c.l.b16 %v2604
      %v2746 = vunpack.c.h.b16 %v2604
      %v2747 = vunpack.c.l.b16 %v2605
      %v2748 = vunpack.c.h.b16 %v2605
      %v2749 = vunpack.c.l.b16 %v2606
      %v2750 = vunpack.c.h.b16 %v2606
      %v2751 = vunpack.c.l.b16 %v2607
      %v2752 = vunpack.c.h.b16 %v2607
      %v2753 = vunpack.c.l.b16 %v2608
      %v2754 = vunpack.c.h.b16 %v2608
      %v2755 = vunpack.c.l.b16 %v2609
      %v2756 = vunpack.c.h.b16 %v2609
      %v2757 = vunpack.c.l.b16 %v2610
      %v2758 = vunpack.c.h.b16 %v2610
      %v2759 = vunpack.c.l.b16 %v2611
      %v2760 = vunpack.c.h.b16 %v2611
      %v2761 = vunpack.c.l.b16 %v2612
      %v2762 = vunpack.c.h.b16 %v2612
      %v2763 = vunpack.c.l.b16 %v2613
      %v2764 = vunpack.c.h.b16 %v2613
      %v2765 = vunpack.c.l.b16 %v2614
      %v2766 = vunpack.c.h.b16 %v2614
      %v2767 = vunpack.c.l.b16 %v2615
      %v2768 = vunpack.c.h.b16 %v2615
      %v2769 = vunpack.c.l.b16 %v2616
      %v2770 = vunpack.c.h.b16 %v2616
      %v2771 = vunpack.c.l.b16 %v2617
      %v2772 = vunpack.c.h.b16 %v2617
      %v2773 = vunpack.c.l.b16 %v2618
      %v2774 = vunpack.c.h.b16 %v2618
      %v2775 = vunpack.c.l.b16 %v2619
      %v2776 = vunpack.c.h.b16 %v2619
      %v2777 = vunpack.c.l.b16 %v2620
      %v2778 = vunpack.c.h.b16 %v2620
      %v2779 = vunpack.c.l.b16 %v2621
      %v2780 = vunpack.c.h.b16 %v2621
      %v2781 = vunpack.c.l.b16 %v2622
      %v2782 = vunpack.c.h.b16 %v2622
      %v2783 = vunpack.c.l.b16 %v2623
      %v2784 = vunpack.c.h.b16 %v2623
      %v2785 = vunpack.c.l.b16 %v2624
      %v2786 = vunpack.c.h.b16 %v2624
      %v2787 = vunpack.c.l.b16 %v2625
      %v2788 = vunpack.c.h.b16 %v2625
      %v2789 = vunpack.c.l.b16 %v2626
      %v2790 = vunpack.c.h.b16 %v2626
      %v2791 = vunpack.c.l.b16 %v2627
      %v2792 = vunpack.c.h.b16 %v2627
      %v2793 = vunpack.c.l.b16 %v2628
      %v2794 = vunpack.c.h.b16 %v2628
      %v2795 = vunpack.c.l.b16 %v2629
      %v2796 = vunpack.c.h.b16 %v2629
      %v2797 = vunpack.c.l.b16 %v2630
      %v2798 = vunpack.c.h.b16 %v2630
      %v2799 = vunpack.c.l.b16 %v2631
      %v2800 = vunpack.c.h.b16 %v2631
      %v2801 = vunpack.c.l.b16 %v2632
      %v2802 = vunpack.c.h.b16 %v2632
      %v2803 = vpack.c.b16 %v2743, %v2739
      %v2804 = vpack.c.b16 %v2744, %v2740
      %v2805 = vpack.c.b16 %v2745, %v2741
      %v2806 = vpack.c.b16 %v2746, %v2742
      %v2807 = vpack.c.b16 %v2751, %v2747
      %v2808 = vpack.c.b16 %v2752, %v2748
      %v2809 = vpack.c.b16 %v2753, %v2749
      %v2810 = vpack.c.b16 %v2754, %v2750
      %v2811 = vpack.c.b16 %v2759, %v2755
      %v2812 = vpack.c.b16 %v2760, %v2756
      %v2813 = vpack.c.b16 %v2761, %v2757
      %v2814 = vpack.c.b16 %v2762, %v2758
      %v2815 = vpack.c.b16 %v2767, %v2763
      %v2816 = vpack.c.b16 %v2768, %v2764
      %v2817 = vpack.c.b16 %v2769, %v2765
      %v2818 = vpack.c.b16 %v2770, %v2766
      %v2819 = vpack.c.b16 %v2775, %v2771
      %v2820 = vpack.c.b16 %v2776, %v2772
      %v2821 = vpack.c.b16 %v2777, %v2773
      %v2822 = vpack.c.b16 %v2778, %v2774
      %v2823 = vpack.c.b16 %v2783, %v2779
      %v2824 = vpack.c.b16 %v2784, %v2780
      %v2825 = vpack.c.b16 %v2785, %v2781
      %v2826 = vpack.c.b16 %v2786, %v2782
      %v2827 = vpack.c.b16 %v2791, %v2787
      %v2828 = vpack.c.b16 %v2792, %v2788
      %v2829 = vpack.c.b16 %v2793, %v2789
      %v2830 = vpack.c.b16 %v2794, %v2790
      %v2831 = vpack.c.b16 %v2799, %v2795
      %v2832 = vpack.c.b16 %v2800, %v2796
      %v2833 = vpack.c.b16 %v2801, %v2797
      %v2834 = vpack.c.b16 %v2802, %v2798
      %2867 = vmatpush.bf16.msra.mxu0 %v2831
      %2868 = vmatpush.bf16.msra.mxu0 %v2827
      %2869 = vmatpush.bf16.msra.mxu0 %v2823
      %2870 = vmatpush.bf16.msra.mxu0 %v2819
      %2871 = vmatpush.bf16.msra.mxu0 %v2815
      %2872 = vmatpush.bf16.msra.mxu0 %v2811
      %2873 = vmatpush.bf16.msra.mxu0 %v2807
      %2874 = vmatpush.bf16.msra.mxu0 %v2803
      %2875 = vmatmul.bf16.gmra.mxu0 %v2035
      %v2876 = vpop.f32.mrf.mxu0
      %v2877 = vadd.f32 %v2699, %v2876
      %v2878 = vpop.f32.mrf.mxu0
      %v2879 = vadd.f32 %v2699, %v2878
      %2880 = vmatmul.bf16.gmra.mxu0 %v2036
      %v2881 = vpop.f32.mrf.mxu0
      %v2882 = vadd.f32 %v2699, %v2881
      %v2883 = vpop.f32.mrf.mxu0
      %v2884 = vadd.f32 %v2699, %v2883
      %2885 = vmatmul.bf16.gmra.mxu0 %v2037
      %v2886 = vpop.f32.mrf.mxu0
      %v2887 = vadd.f32 %v2699, %v2886
      %v2888 = vpop.f32.mrf.mxu0
      %v2889 = vadd.f32 %v2699, %v2888
      %2890 = vmatmul.bf16.gmra.mxu0 %v2038
      %v2891 = vpop.f32.mrf.mxu0
      %v2892 = vadd.f32 %v2699, %v2891
      %v2893 = vpop.f32.mrf.mxu0
      %v2894 = vadd.f32 %v2699, %v2893
      %2895 = vmatmul.bf16.gmra.mxu0 %v2039
      %v2896 = vpop.f32.mrf.mxu0
      %v2897 = vadd.f32 %v2699, %v2896
      %v2898 = vpop.f32.mrf.mxu0
      %v2899 = vadd.f32 %v2699, %v2898
      %2900 = vmatmul.bf16.gmra.mxu0 %v2040
      %v2901 = vpop.f32.mrf.mxu0
      %v2902 = vadd.f32 %v2699, %v2901
      %v2903 = vpop.f32.mrf.mxu0
      %v2904 = vadd.f32 %v2699, %v2903
      %2905 = vmatmul.bf16.gmra.mxu0 %v2041
      %v2906 = vpop.f32.mrf.mxu0
      %v2907 = vadd.f32 %v2699, %v2906
      %v2908 = vpop.f32.mrf.mxu0
      %v2909 = vadd.f32 %v2699, %v2908
      %2910 = vmatmul.bf16.gmra.mxu0 %v2042
      %v2911 = vpop.f32.mrf.mxu0
      %v2912 = vadd.f32 %v2699, %v2911
      %v2913 = vpop.f32.mrf.mxu0
      %v2914 = vadd.f32 %v2699, %v2913
      %2915 = vdwg.mxu0
      %2916 = vmatpush.bf16.msra.mxu0 %v2832
      %2917 = vmatpush.bf16.msra.mxu0 %v2828
      %2918 = vmatpush.bf16.msra.mxu0 %v2824
      %2919 = vmatpush.bf16.msra.mxu0 %v2820
      %2920 = vmatpush.bf16.msra.mxu0 %v2816
      %2921 = vmatpush.bf16.msra.mxu0 %v2812
      %2922 = vmatpush.bf16.msra.mxu0 %v2808
      %2923 = vmatpush.bf16.msra.mxu0 %v2804
      %2924 = vmatmul.bf16.gmra.mxu0 %v2035
      %v2925 = vpop.f32.mrf.mxu0
      %v2926 = vadd.f32 %v2700, %v2925
      %v2927 = vpop.f32.mrf.mxu0
      %v2928 = vadd.f32 %v2700, %v2927
      %2929 = vmatmul.bf16.gmra.mxu0 %v2036
      %v2930 = vpop.f32.mrf.mxu0
      %v2931 = vadd.f32 %v2700, %v2930
      %v2932 = vpop.f32.mrf.mxu0
      %v2933 = vadd.f32 %v2700, %v2932
      %2934 = vmatmul.bf16.gmra.mxu0 %v2037
      %v2935 = vpop.f32.mrf.mxu0
      %v2936 = vadd.f32 %v2700, %v2935
      %v2937 = vpop.f32.mrf.mxu0
      %v2938 = vadd.f32 %v2700, %v2937
      %2939 = vmatmul.bf16.gmra.mxu0 %v2038
      %v2940 = vpop.f32.mrf.mxu0
      %v2941 = vadd.f32 %v2700, %v2940
      %v2942 = vpop.f32.mrf.mxu0
      %v2943 = vadd.f32 %v2700, %v2942
      %2944 = vmatmul.bf16.gmra.mxu0 %v2039
      %v2945 = vpop.f32.mrf.mxu0
      %v2946 = vadd.f32 %v2700, %v2945
      %v2947 = vpop.f32.mrf.mxu0
      %v2948 = vadd.f32 %v2700, %v2947
      %2949 = vmatmul.bf16.gmra.mxu0 %v2040
      %v2950 = vpop.f32.mrf.mxu0
      %v2951 = vadd.f32 %v2700, %v2950
      %v2952 = vpop.f32.mrf.mxu0
      %v2953 = vadd.f32 %v2700, %v2952
      %2954 = vmatmul.bf16.gmra.mxu0 %v2041
      %v2955 = vpop.f32.mrf.mxu0
      %v2956 = vadd.f32 %v2700, %v2955
      %v2957 = vpop.f32.mrf.mxu0
      %v2958 = vadd.f32 %v2700, %v2957
      %2959 = vmatmul.bf16.gmra.mxu0 %v2042
      %v2960 = vpop.f32.mrf.mxu0
      %v2961 = vadd.f32 %v2700, %v2960
      %v2962 = vpop.f32.mrf.mxu0
      %v2963 = vadd.f32 %v2700, %v2962
      %2964 = vdwg.mxu0
      %2965 = vmatpush.bf16.msra.mxu0 %v2833
      %2966 = vmatpush.bf16.msra.mxu0 %v2829
      %2967 = vmatpush.bf16.msra.mxu0 %v2825
      %2968 = vmatpush.bf16.msra.mxu0 %v2821
      %2969 = vmatpush.bf16.msra.mxu0 %v2817
      %2970 = vmatpush.bf16.msra.mxu0 %v2813
      %2971 = vmatpush.bf16.msra.mxu0 %v2809
      %2972 = vmatpush.bf16.msra.mxu0 %v2805
      %2973 = vmatmul.bf16.gmra.mxu0 %v2035
      %v2974 = vpop.f32.mrf.mxu0
      %v2975 = vadd.f32 %v2701, %v2974
      %v2976 = vpop.f32.mrf.mxu0
      %v2977 = vadd.f32 %v2701, %v2976
      %2978 = vmatmul.bf16.gmra.mxu0 %v2036
      %v2979 = vpop.f32.mrf.mxu0
      %v2980 = vadd.f32 %v2701, %v2979
      %v2981 = vpop.f32.mrf.mxu0
      %v2982 = vadd.f32 %v2701, %v2981
      %2983 = vmatmul.bf16.gmra.mxu0 %v2037
      %v2984 = vpop.f32.mrf.mxu0
      %v2985 = vadd.f32 %v2701, %v2984
      %v2986 = vpop.f32.mrf.mxu0
      %v2987 = vadd.f32 %v2701, %v2986
      %2988 = vmatmul.bf16.gmra.mxu0 %v2038
      %v2989 = vpop.f32.mrf.mxu0
      %v2990 = vadd.f32 %v2701, %v2989
      %v2991 = vpop.f32.mrf.mxu0
      %v2992 = vadd.f32 %v2701, %v2991
      %2993 = vmatmul.bf16.gmra.mxu0 %v2039
      %v2994 = vpop.f32.mrf.mxu0
      %v2995 = vadd.f32 %v2701, %v2994
      %v2996 = vpop.f32.mrf.mxu0
      %v2997 = vadd.f32 %v2701, %v2996
      %2998 = vmatmul.bf16.gmra.mxu0 %v2040
      %v2999 = vpop.f32.mrf.mxu0
      %v3000 = vadd.f32 %v2701, %v2999
      %v3001 = vpop.f32.mrf.mxu0
      %v3002 = vadd.f32 %v2701, %v3001
      %3003 = vmatmul.bf16.gmra.mxu0 %v2041
      %v3004 = vpop.f32.mrf.mxu0
      %v3005 = vadd.f32 %v2701, %v3004
      %v3006 = vpop.f32.mrf.mxu0
      %v3007 = vadd.f32 %v2701, %v3006
      %3008 = vmatmul.bf16.gmra.mxu0 %v2042
      %v3009 = vpop.f32.mrf.mxu0
      %v3010 = vadd.f32 %v2701, %v3009
      %v3011 = vpop.f32.mrf.mxu0
      %v3012 = vadd.f32 %v2701, %v3011
      %3013 = vdwg.mxu0
      %3014 = vmatpush.bf16.msra.mxu0 %v2834
      %3015 = vmatpush.bf16.msra.mxu0 %v2830
      %3016 = vmatpush.bf16.msra.mxu0 %v2826
      %3017 = vmatpush.bf16.msra.mxu0 %v2822
      %3018 = vmatpush.bf16.msra.mxu0 %v2818
      %3019 = vmatpush.bf16.msra.mxu0 %v2814
      %3020 = vmatpush.bf16.msra.mxu0 %v2810
      %3021 = vmatpush.bf16.msra.mxu0 %v2806
      %3022 = vmatmul.bf16.gmra.mxu0 %v2035
      %v3023 = vpop.f32.mrf.mxu0
      %v3024 = vadd.f32 %v2702, %v3023
      %v3025 = vpop.f32.mrf.mxu0
      %v3026 = vadd.f32 %v2702, %v3025
      %3027 = vmatmul.bf16.gmra.mxu0 %v2036
      %v3028 = vpop.f32.mrf.mxu0
      %v3029 = vadd.f32 %v2702, %v3028
      %v3030 = vpop.f32.mrf.mxu0
      %v3031 = vadd.f32 %v2702, %v3030
      %3032 = vmatmul.bf16.gmra.mxu0 %v2037
      %v3033 = vpop.f32.mrf.mxu0
      %v3034 = vadd.f32 %v2702, %v3033
      %v3035 = vpop.f32.mrf.mxu0
      %v3036 = vadd.f32 %v2702, %v3035
      %3037 = vmatmul.bf16.gmra.mxu0 %v2038
      %v3038 = vpop.f32.mrf.mxu0
      %v3039 = vadd.f32 %v2702, %v3038
      %v3040 = vpop.f32.mrf.mxu0
      %v3041 = vadd.f32 %v2702, %v3040
      %3042 = vmatmul.bf16.gmra.mxu0 %v2039
      %v3043 = vpop.f32.mrf.mxu0
      %v3044 = vadd.f32 %v2702, %v3043
      %v3045 = vpop.f32.mrf.mxu0
      %v3046 = vadd.f32 %v2702, %v3045
      %3047 = vmatmul.bf16.gmra.mxu0 %v2040
      %v3048 = vpop.f32.mrf.mxu0
      %v3049 = vadd.f32 %v2702, %v3048
      %v3050 = vpop.f32.mrf.mxu0
      %v3051 = vadd.f32 %v2702, %v3050
      %3052 = vmatmul.bf16.gmra.mxu0 %v2041
      %v3053 = vpop.f32.mrf.mxu0
      %v3054 = vadd.f32 %v2702, %v3053
      %v3055 = vpop.f32.mrf.mxu0
      %v3056 = vadd.f32 %v2702, %v3055
      %3057 = vmatmul.bf16.gmra.mxu0 %v2042
      %v3058 = vpop.f32.mrf.mxu0
      %v3059 = vadd.f32 %v2702, %v3058
      %v3060 = vpop.f32.mrf.mxu0
      %v3061 = vadd.f32 %v2702, %v3060
      %3062 = vdwg.mxu0
      %v3063 = vmax.f32 %v2877, 0.0
      %v3064 = vmax.f32 %v2926, 0.0
      %v3065 = vmax.f32 %v2975, 0.0
      %v3066 = vmax.f32 %v3024, 0.0
      %v3067 = vmax.f32 %v2879, 0.0
      %v3068 = vmax.f32 %v2928, 0.0
      %v3069 = vmax.f32 %v2977, 0.0
      %v3070 = vmax.f32 %v3026, 0.0
      %v3071 = vmax.f32 %v2882, 0.0
      %v3072 = vmax.f32 %v2931, 0.0
      %v3073 = vmax.f32 %v2980, 0.0
      %v3074 = vmax.f32 %v3029, 0.0
      %v3075 = vmax.f32 %v2884, 0.0
      %v3076 = vmax.f32 %v2933, 0.0
      %v3077 = vmax.f32 %v2982, 0.0
      %v3078 = vmax.f32 %v3031, 0.0
      %v3079 = vmax.f32 %v2887, 0.0
      %v3080 = vmax.f32 %v2936, 0.0
      %v3081 = vmax.f32 %v2985, 0.0
      %v3082 = vmax.f32 %v3034, 0.0
      %v3083 = vmax.f32 %v2889, 0.0
      %v3084 = vmax.f32 %v2938, 0.0
      %v3085 = vmax.f32 %v2987, 0.0
      %v3086 = vmax.f32 %v3036, 0.0
      %v3087 = vmax.f32 %v2892, 0.0
      %v3088 = vmax.f32 %v2941, 0.0
      %v3089 = vmax.f32 %v2990, 0.0
      %v3090 = vmax.f32 %v3039, 0.0
      %v3091 = vmax.f32 %v2894, 0.0
      %v3092 = vmax.f32 %v2943, 0.0
      %v3093 = vmax.f32 %v2992, 0.0
      %v3094 = vmax.f32 %v3041, 0.0
      %v3095 = vmax.f32 %v2897, 0.0
      %v3096 = vmax.f32 %v2946, 0.0
      %v3097 = vmax.f32 %v2995, 0.0
      %v3098 = vmax.f32 %v3044, 0.0
      %v3099 = vmax.f32 %v2899, 0.0
      %v3100 = vmax.f32 %v2948, 0.0
      %v3101 = vmax.f32 %v2997, 0.0
      %v3102 = vmax.f32 %v3046, 0.0
      %v3103 = vmax.f32 %v2902, 0.0
      %v3104 = vmax.f32 %v2951, 0.0
      %v3105 = vmax.f32 %v3000, 0.0
      %v3106 = vmax.f32 %v3049, 0.0
      %v3107 = vmax.f32 %v2904, 0.0
      %v3108 = vmax.f32 %v2953, 0.0
      %v3109 = vmax.f32 %v3002, 0.0
      %v3110 = vmax.f32 %v3051, 0.0
      %v3111 = vmax.f32 %v2907, 0.0
      %v3112 = vmax.f32 %v2956, 0.0
      %v3113 = vmax.f32 %v3005, 0.0
      %v3114 = vmax.f32 %v3054, 0.0
      %v3115 = vmax.f32 %v2909, 0.0
      %v3116 = vmax.f32 %v2958, 0.0
      %v3117 = vmax.f32 %v3007, 0.0
      %v3118 = vmax.f32 %v3056, 0.0
      %v3119 = vmax.f32 %v2912, 0.0
      %v3120 = vmax.f32 %v2961, 0.0
      %v3121 = vmax.f32 %v3010, 0.0
      %v3122 = vmax.f32 %v3059, 0.0
      %v3123 = vmax.f32 %v2914, 0.0
      %v3124 = vmax.f32 %v2963, 0.0
      %v3125 = vmax.f32 %v3012, 0.0
      %v3126 = vmax.f32 %v3061, 0.0
      %v3127 = vpack.c.bf16 %v3067, %v3063
      %v3128 = vpack.c.bf16 %v3068, %v3064
      %v3129 = vpack.c.bf16 %v3069, %v3065
      %v3130 = vpack.c.bf16 %v3070, %v3066
      %v3131 = vpack.c.bf16 %v3075, %v3071
      %v3132 = vpack.c.bf16 %v3076, %v3072
      %v3133 = vpack.c.bf16 %v3077, %v3073
      %v3134 = vpack.c.bf16 %v3078, %v3074
      %v3135 = vpack.c.bf16 %v3083, %v3079
      %v3136 = vpack.c.bf16 %v3084, %v3080
      %v3137 = vpack.c.bf16 %v3085, %v3081
      %v3138 = vpack.c.bf16 %v3086, %v3082
      %v3139 = vpack.c.bf16 %v3091, %v3087
      %v3140 = vpack.c.bf16 %v3092, %v3088
      %v3141 = vpack.c.bf16 %v3093, %v3089
      %v3142 = vpack.c.bf16 %v3094, %v3090
      %v3143 = vpack.c.bf16 %v3099, %v3095
      %v3144 = vpack.c.bf16 %v3100, %v3096
      %v3145 = vpack.c.bf16 %v3101, %v3097
      %v3146 = vpack.c.bf16 %v3102, %v3098
      %v3147 = vpack.c.bf16 %v3107, %v3103
      %v3148 = vpack.c.bf16 %v3108, %v3104
      %v3149 = vpack.c.bf16 %v3109, %v3105
      %v3150 = vpack.c.bf16 %v3110, %v3106
      %v3151 = vpack.c.bf16 %v3115, %v3111
      %v3152 = vpack.c.bf16 %v3116, %v3112
      %v3153 = vpack.c.bf16 %v3117, %v3113
      %v3154 = vpack.c.bf16 %v3118, %v3114
      %v3155 = vpack.c.bf16 %v3123, %v3119
      %v3156 = vpack.c.bf16 %v3124, %v3120
      %v3157 = vpack.c.bf16 %v3125, %v3121
      %v3158 = vpack.c.bf16 %v3126, %v3122
      %v3223 = vunpack.c.l.b16 %v2634
      %v3224 = vunpack.c.l.b16 %v2635
      %v3225 = vunpack.c.l.b16 %v2636
      %v3226 = vunpack.c.l.b16 %v2637
      %v3227 = vunpack.c.l.b16 %v2638
      %v3228 = vunpack.c.l.b16 %v2639
      %v3229 = vunpack.c.l.b16 %v2640
      %v3230 = vunpack.c.l.b16 %v2641
      %v3231 = vunpack.c.l.b16 %v2642
      %v3232 = vunpack.c.l.b16 %v2643
      %v3233 = vunpack.c.l.b16 %v2644
      %v3234 = vunpack.c.l.b16 %v2645
      %v3235 = vunpack.c.l.b16 %v2646
      %v3236 = vunpack.c.l.b16 %v2647
      %v3237 = vunpack.c.l.b16 %v2648
      %v3238 = vunpack.c.l.b16 %v2649
      %v3239 = vunpack.c.l.b16 %v2650
      %v3240 = vunpack.c.l.b16 %v2651
      %v3241 = vunpack.c.l.b16 %v2652
      %v3242 = vunpack.c.l.b16 %v2653
      %v3243 = vunpack.c.l.b16 %v2654
      %v3244 = vunpack.c.l.b16 %v2655
      %v3245 = vunpack.c.l.b16 %v2656
      %v3246 = vunpack.c.l.b16 %v2657
      %v3247 = vunpack.c.l.b16 %v2658
      %v3248 = vunpack.c.l.b16 %v2659
      %v3249 = vunpack.c.l.b16 %v2660
      %v3250 = vunpack.c.l.b16 %v2661
      %v3251 = vunpack.c.l.b16 %v2662
      %v3252 = vunpack.c.l.b16 %v2663
      %v3253 = vunpack.c.l.b16 %v2664
      %v3254 = vunpack.c.l.b16 %v2665
      %v3255 = vunpack.c.l.b16 %v2666
      %v3256 = vunpack.c.l.b16 %v2667
      %v3257 = vunpack.c.l.b16 %v2668
      %v3258 = vunpack.c.l.b16 %v2669
      %v3259 = vunpack.c.l.b16 %v2670
      %v3260 = vunpack.c.l.b16 %v2671
      %v3261 = vunpack.c.l.b16 %v2672
      %v3262 = vunpack.c.l.b16 %v2673
      %v3263 = vunpack.c.l.b16 %v2674
      %v3264 = vunpack.c.l.b16 %v2675
      %v3265 = vunpack.c.l.b16 %v2676
      %v3266 = vunpack.c.l.b16 %v2677
      %v3267 = vunpack.c.l.b16 %v2678
      %v3268 = vunpack.c.l.b16 %v2679
      %v3269 = vunpack.c.l.b16 %v2680
      %v3270 = vunpack.c.l.b16 %v2681
      %v3271 = vunpack.c.l.b16 %v2682
      %v3272 = vunpack.c.l.b16 %v2683
      %v3273 = vunpack.c.l.b16 %v2684
      %v3274 = vunpack.c.l.b16 %v2685
      %v3275 = vunpack.c.l.b16 %v2686
      %v3276 = vunpack.c.l.b16 %v2687
      %v3277 = vunpack.c.l.b16 %v2688
      %v3278 = vunpack.c.l.b16 %v2689
      %v3279 = vunpack.c.l.b16 %v2690
      %v3280 = vunpack.c.l.b16 %v2691
      %v3281 = vunpack.c.l.b16 %v2692
      %v3282 = vunpack.c.l.b16 %v2693
      %v3283 = vunpack.c.l.b16 %v2694
      %v3284 = vunpack.c.l.b16 %v2695
      %v3285 = vunpack.c.l.b16 %v2696
      %v3286 = vunpack.c.l.b16 %v2697
      %v3287 = vpack.c.b16 %v3224, %v3223
      %v3288 = vpack.c.b16 %v3226, %v3225
      %v3289 = vpack.c.b16 %v3228, %v3227
      %v3290 = vpack.c.b16 %v3230, %v3229
      %v3291 = vpack.c.b16 %v3232, %v3231
      %v3292 = vpack.c.b16 %v3234, %v3233
      %v3293 = vpack.c.b16 %v3236, %v3235
      %v3294 = vpack.c.b16 %v3238, %v3237
      %v3295 = vpack.c.b16 %v3240, %v3239
      %v3296 = vpack.c.b16 %v3242, %v3241
      %v3297 = vpack.c.b16 %v3244, %v3243
      %v3298 = vpack.c.b16 %v3246, %v3245
      %v3299 = vpack.c.b16 %v3248, %v3247
      %v3300 = vpack.c.b16 %v3250, %v3249
      %v3301 = vpack.c.b16 %v3252, %v3251
      %v3302 = vpack.c.b16 %v3254, %v3253
      %v3303 = vpack.c.b16 %v3256, %v3255
      %v3304 = vpack.c.b16 %v3258, %v3257
      %v3305 = vpack.c.b16 %v3260, %v3259
      %v3306 = vpack.c.b16 %v3262, %v3261
      %v3307 = vpack.c.b16 %v3264, %v3263
      %v3308 = vpack.c.b16 %v3266, %v3265
      %v3309 = vpack.c.b16 %v3268, %v3267
      %v3310 = vpack.c.b16 %v3270, %v3269
      %v3311 = vpack.c.b16 %v3272, %v3271
      %v3312 = vpack.c.b16 %v3274, %v3273
      %v3313 = vpack.c.b16 %v3276, %v3275
      %v3314 = vpack.c.b16 %v3278, %v3277
      %v3315 = vpack.c.b16 %v3280, %v3279
      %v3316 = vpack.c.b16 %v3282, %v3281
      %v3317 = vpack.c.b16 %v3284, %v3283
      %v3318 = vpack.c.b16 %v3286, %v3285
      %3351 = vmatpush.bf16.msra.mxu0 %v3294
      %3352 = vmatpush.bf16.msra.mxu0 %v3293
      %3353 = vmatpush.bf16.msra.mxu0 %v3292
      %3354 = vmatpush.bf16.msra.mxu0 %v3291
      %3355 = vmatpush.bf16.msra.mxu0 %v3290
      %3356 = vmatpush.bf16.msra.mxu0 %v3289
      %3357 = vmatpush.bf16.msra.mxu0 %v3288
      %3358 = vmatpush.bf16.msra.mxu0 %v3287
      %3359 = vmatmul.bf16.gmra.mxu0 %v3127
      %v3360 = vpop.f32.mrf.mxu0
      %v3361 = vadd.f32 0.0, %v3360
      %v3362 = vpop.f32.mrf.mxu0
      %v3363 = vadd.f32 0.0, %v3362
      %3364 = vmatmul.bf16.gmra.mxu0 %v3131
      %v3365 = vpop.f32.mrf.mxu0
      %v3366 = vadd.f32 0.0, %v3365
      %v3367 = vpop.f32.mrf.mxu0
      %v3368 = vadd.f32 0.0, %v3367
      %3369 = vmatmul.bf16.gmra.mxu0 %v3135
      %v3370 = vpop.f32.mrf.mxu0
      %v3371 = vadd.f32 0.0, %v3370
      %v3372 = vpop.f32.mrf.mxu0
      %v3373 = vadd.f32 0.0, %v3372
      %3374 = vmatmul.bf16.gmra.mxu0 %v3139
      %v3375 = vpop.f32.mrf.mxu0
      %v3376 = vadd.f32 0.0, %v3375
      %v3377 = vpop.f32.mrf.mxu0
      %v3378 = vadd.f32 0.0, %v3377
      %3379 = vmatmul.bf16.gmra.mxu0 %v3143
      %v3380 = vpop.f32.mrf.mxu0
      %v3381 = vadd.f32 0.0, %v3380
      %v3382 = vpop.f32.mrf.mxu0
      %v3383 = vadd.f32 0.0, %v3382
      %3384 = vmatmul.bf16.gmra.mxu0 %v3147
      %v3385 = vpop.f32.mrf.mxu0
      %v3386 = vadd.f32 0.0, %v3385
      %v3387 = vpop.f32.mrf.mxu0
      %v3388 = vadd.f32 0.0, %v3387
      %3389 = vmatmul.bf16.gmra.mxu0 %v3151
      %v3390 = vpop.f32.mrf.mxu0
      %v3391 = vadd.f32 0.0, %v3390
      %v3392 = vpop.f32.mrf.mxu0
      %v3393 = vadd.f32 0.0, %v3392
      %3394 = vmatmul.bf16.gmra.mxu0 %v3155
      %v3395 = vpop.f32.mrf.mxu0
      %v3396 = vadd.f32 0.0, %v3395
      %v3397 = vpop.f32.mrf.mxu0
      %v3398 = vadd.f32 0.0, %v3397
      %3399 = vdwg.mxu0
      %3400 = vmatpush.bf16.msra.mxu0 %v3302
      %3401 = vmatpush.bf16.msra.mxu0 %v3301
      %3402 = vmatpush.bf16.msra.mxu0 %v3300
      %3403 = vmatpush.bf16.msra.mxu0 %v3299
      %3404 = vmatpush.bf16.msra.mxu0 %v3298
      %3405 = vmatpush.bf16.msra.mxu0 %v3297
      %3406 = vmatpush.bf16.msra.mxu0 %v3296
      %3407 = vmatpush.bf16.msra.mxu0 %v3295
      %3408 = vmatmul.bf16.gmra.mxu0 %v3128
      %v3409 = vpop.f32.mrf.mxu0
      %v3410 = vadd.f32 %v3361, %v3409
      %v3411 = vpop.f32.mrf.mxu0
      %v3412 = vadd.f32 %v3363, %v3411
      %3413 = vmatmul.bf16.gmra.mxu0 %v3132
      %v3414 = vpop.f32.mrf.mxu0
      %v3415 = vadd.f32 %v3366, %v3414
      %v3416 = vpop.f32.mrf.mxu0
      %v3417 = vadd.f32 %v3368, %v3416
      %3418 = vmatmul.bf16.gmra.mxu0 %v3136
      %v3419 = vpop.f32.mrf.mxu0
      %v3420 = vadd.f32 %v3371, %v3419
      %v3421 = vpop.f32.mrf.mxu0
      %v3422 = vadd.f32 %v3373, %v3421
      %3423 = vmatmul.bf16.gmra.mxu0 %v3140
      %v3424 = vpop.f32.mrf.mxu0
      %v3425 = vadd.f32 %v3376, %v3424
      %v3426 = vpop.f32.mrf.mxu0
      %v3427 = vadd.f32 %v3378, %v3426
      %3428 = vmatmul.bf16.gmra.mxu0 %v3144
      %v3429 = vpop.f32.mrf.mxu0
      %v3430 = vadd.f32 %v3381, %v3429
      %v3431 = vpop.f32.mrf.mxu0
      %v3432 = vadd.f32 %v3383, %v3431
      %3433 = vmatmul.bf16.gmra.mxu0 %v3148
      %v3434 = vpop.f32.mrf.mxu0
      %v3435 = vadd.f32 %v3386, %v3434
      %v3436 = vpop.f32.mrf.mxu0
      %v3437 = vadd.f32 %v3388, %v3436
      %3438 = vmatmul.bf16.gmra.mxu0 %v3152
      %v3439 = vpop.f32.mrf.mxu0
      %v3440 = vadd.f32 %v3391, %v3439
      %v3441 = vpop.f32.mrf.mxu0
      %v3442 = vadd.f32 %v3393, %v3441
      %3443 = vmatmul.bf16.gmra.mxu0 %v3156
      %v3444 = vpop.f32.mrf.mxu0
      %v3445 = vadd.f32 %v3396, %v3444
      %v3446 = vpop.f32.mrf.mxu0
      %v3447 = vadd.f32 %v3398, %v3446
      %3448 = vdwg.mxu0
      %3449 = vmatpush.bf16.msra.mxu0 %v3310
      %3450 = vmatpush.bf16.msra.mxu0 %v3309
      %3451 = vmatpush.bf16.msra.mxu0 %v3308
      %3452 = vmatpush.bf16.msra.mxu0 %v3307
      %3453 = vmatpush.bf16.msra.mxu0 %v3306
      %3454 = vmatpush.bf16.msra.mxu0 %v3305
      %3455 = vmatpush.bf16.msra.mxu0 %v3304
      %3456 = vmatpush.bf16.msra.mxu0 %v3303
      %3457 = vmatmul.bf16.gmra.mxu0 %v3129
      %v3458 = vpop.f32.mrf.mxu0
      %v3459 = vadd.f32 %v3410, %v3458
      %v3460 = vpop.f32.mrf.mxu0
      %v3461 = vadd.f32 %v3412, %v3460
      %3462 = vmatmul.bf16.gmra.mxu0 %v3133
      %v3463 = vpop.f32.mrf.mxu0
      %v3464 = vadd.f32 %v3415, %v3463
      %v3465 = vpop.f32.mrf.mxu0
      %v3466 = vadd.f32 %v3417, %v3465
      %3467 = vmatmul.bf16.gmra.mxu0 %v3137
      %v3468 = vpop.f32.mrf.mxu0
      %v3469 = vadd.f32 %v3420, %v3468
      %v3470 = vpop.f32.mrf.mxu0
      %v3471 = vadd.f32 %v3422, %v3470
      %3472 = vmatmul.bf16.gmra.mxu0 %v3141
      %v3473 = vpop.f32.mrf.mxu0
      %v3474 = vadd.f32 %v3425, %v3473
      %v3475 = vpop.f32.mrf.mxu0
      %v3476 = vadd.f32 %v3427, %v3475
      %3477 = vmatmul.bf16.gmra.mxu0 %v3145
      %v3478 = vpop.f32.mrf.mxu0
      %v3479 = vadd.f32 %v3430, %v3478
      %v3480 = vpop.f32.mrf.mxu0
      %v3481 = vadd.f32 %v3432, %v3480
      %3482 = vmatmul.bf16.gmra.mxu0 %v3149
      %v3483 = vpop.f32.mrf.mxu0
      %v3484 = vadd.f32 %v3435, %v3483
      %v3485 = vpop.f32.mrf.mxu0
      %v3486 = vadd.f32 %v3437, %v3485
      %3487 = vmatmul.bf16.gmra.mxu0 %v3153
      %v3488 = vpop.f32.mrf.mxu0
      %v3489 = vadd.f32 %v3440, %v3488
      %v3490 = vpop.f32.mrf.mxu0
      %v3491 = vadd.f32 %v3442, %v3490
      %3492 = vmatmul.bf16.gmra.mxu0 %v3157
      %v3493 = vpop.f32.mrf.mxu0
      %v3494 = vadd.f32 %v3445, %v3493
      %v3495 = vpop.f32.mrf.mxu0
      %v3496 = vadd.f32 %v3447, %v3495
      %3497 = vdwg.mxu0
      %3498 = vmatpush.bf16.msra.mxu0 %v3318
      %3499 = vmatpush.bf16.msra.mxu0 %v3317
      %3500 = vmatpush.bf16.msra.mxu0 %v3316
      %3501 = vmatpush.bf16.msra.mxu0 %v3315
      %3502 = vmatpush.bf16.msra.mxu0 %v3314
      %3503 = vmatpush.bf16.msra.mxu0 %v3313
      %3504 = vmatpush.bf16.msra.mxu0 %v3312
      %3505 = vmatpush.bf16.msra.mxu0 %v3311
      %3506 = vmatmul.bf16.gmra.mxu0 %v3130
      %v3507 = vpop.f32.mrf.mxu0
      %v3508 = vadd.f32 %v3459, %v3507
      %v3509 = vpop.f32.mrf.mxu0
      %v3510 = vadd.f32 %v3461, %v3509
      %3511 = vmatmul.bf16.gmra.mxu0 %v3134
      %v3512 = vpop.f32.mrf.mxu0
      %v3513 = vadd.f32 %v3464, %v3512
      %v3514 = vpop.f32.mrf.mxu0
      %v3515 = vadd.f32 %v3466, %v3514
      %3516 = vmatmul.bf16.gmra.mxu0 %v3138
      %v3517 = vpop.f32.mrf.mxu0
      %v3518 = vadd.f32 %v3469, %v3517
      %v3519 = vpop.f32.mrf.mxu0
      %v3520 = vadd.f32 %v3471, %v3519
      %3521 = vmatmul.bf16.gmra.mxu0 %v3142
      %v3522 = vpop.f32.mrf.mxu0
      %v3523 = vadd.f32 %v3474, %v3522
      %v3524 = vpop.f32.mrf.mxu0
      %v3525 = vadd.f32 %v3476, %v3524
      %3526 = vmatmul.bf16.gmra.mxu0 %v3146
      %v3527 = vpop.f32.mrf.mxu0
      %v3528 = vadd.f32 %v3479, %v3527
      %v3529 = vpop.f32.mrf.mxu0
      %v3530 = vadd.f32 %v3481, %v3529
      %3531 = vmatmul.bf16.gmra.mxu0 %v3150
      %v3532 = vpop.f32.mrf.mxu0
      %v3533 = vadd.f32 %v3484, %v3532
      %v3534 = vpop.f32.mrf.mxu0
      %v3535 = vadd.f32 %v3486, %v3534
      %3536 = vmatmul.bf16.gmra.mxu0 %v3154
      %v3537 = vpop.f32.mrf.mxu0
      %v3538 = vadd.f32 %v3489, %v3537
      %v3539 = vpop.f32.mrf.mxu0
      %v3540 = vadd.f32 %v3491, %v3539
      %3541 = vmatmul.bf16.gmra.mxu0 %v3158
      %v3542 = vpop.f32.mrf.mxu0
      %v3543 = vadd.f32 %v3494, %v3542
      %v3544 = vpop.f32.mrf.mxu0
      %v3545 = vadd.f32 %v3496, %v3544
      %3546 = vdwg.mxu0
      %v3611 = vunpack.c.l.b16 %v2076
      %v3612 = vunpack.c.l.b16 %v2077
      %v3613 = vunpack.c.l.b16 %v2078
      %v3614 = vunpack.c.l.b16 %v2079
      %v3615 = vunpack.c.l.b16 %v2080
      %v3616 = vunpack.c.l.b16 %v2081
      %v3617 = vunpack.c.l.b16 %v2082
      %v3618 = vunpack.c.l.b16 %v2083
      %v3619 = vunpack.c.l.b16 %v2084
      %v3620 = vunpack.c.l.b16 %v2085
      %v3621 = vunpack.c.l.b16 %v2086
      %v3622 = vunpack.c.l.b16 %v2087
      %v3623 = vunpack.c.l.b16 %v2088
      %v3624 = vunpack.c.l.b16 %v2089
      %v3625 = vunpack.c.l.b16 %v2090
      %v3626 = vunpack.c.l.b16 %v2091
      %v3627 = vunpack.c.l.b16 %v2092
      %v3628 = vunpack.c.l.b16 %v2093
      %v3629 = vunpack.c.l.b16 %v2094
      %v3630 = vunpack.c.l.b16 %v2095
      %v3631 = vunpack.c.l.b16 %v2096
      %v3632 = vunpack.c.l.b16 %v2097
      %v3633 = vunpack.c.l.b16 %v2098
      %v3634 = vunpack.c.l.b16 %v2099
      %v3635 = vunpack.c.l.b16 %v2100
      %v3636 = vunpack.c.l.b16 %v2101
      %v3637 = vunpack.c.l.b16 %v2102
      %v3638 = vunpack.c.l.b16 %v2103
      %v3639 = vunpack.c.l.b16 %v2104
      %v3640 = vunpack.c.l.b16 %v2105
      %v3641 = vunpack.c.l.b16 %v2106
      %v3642 = vunpack.c.l.b16 %v2107
      %v3643 = vunpack.c.l.b16 %v2108
      %v3644 = vunpack.c.l.b16 %v2109
      %v3645 = vunpack.c.l.b16 %v2110
      %v3646 = vunpack.c.l.b16 %v2111
      %v3647 = vunpack.c.l.b16 %v2112
      %v3648 = vunpack.c.l.b16 %v2113
      %v3649 = vunpack.c.l.b16 %v2114
      %v3650 = vunpack.c.l.b16 %v2115
      %v3651 = vunpack.c.l.b16 %v2116
      %v3652 = vunpack.c.l.b16 %v2117
      %v3653 = vunpack.c.l.b16 %v2118
      %v3654 = vunpack.c.l.b16 %v2119
      %v3655 = vunpack.c.l.b16 %v2120
      %v3656 = vunpack.c.l.b16 %v2121
      %v3657 = vunpack.c.l.b16 %v2122
      %v3658 = vunpack.c.l.b16 %v2123
      %v3659 = vunpack.c.l.b16 %v2124
      %v3660 = vunpack.c.l.b16 %v2125
      %v3661 = vunpack.c.l.b16 %v2126
      %v3662 = vunpack.c.l.b16 %v2127
      %v3663 = vunpack.c.l.b16 %v2128
      %v3664 = vunpack.c.l.b16 %v2129
      %v3665 = vunpack.c.l.b16 %v2130
      %v3666 = vunpack.c.l.b16 %v2131
      %v3667 = vunpack.c.l.b16 %v2132
      %v3668 = vunpack.c.l.b16 %v2133
      %v3669 = vunpack.c.l.b16 %v2134
      %v3670 = vunpack.c.l.b16 %v2135
      %v3671 = vunpack.c.l.b16 %v2136
      %v3672 = vunpack.c.l.b16 %v2137
      %v3673 = vunpack.c.l.b16 %v2138
      %v3674 = vunpack.c.l.b16 %v2139
      %v3675 = vpack.c.b16 %v3612, %v3611
      %v3676 = vpack.c.b16 %v3614, %v3613
      %v3677 = vpack.c.b16 %v3616, %v3615
      %v3678 = vpack.c.b16 %v3618, %v3617
      %v3679 = vpack.c.b16 %v3620, %v3619
      %v3680 = vpack.c.b16 %v3622, %v3621
      %v3681 = vpack.c.b16 %v3624, %v3623
      %v3682 = vpack.c.b16 %v3626, %v3625
      %v3683 = vpack.c.b16 %v3628, %v3627
      %v3684 = vpack.c.b16 %v3630, %v3629
      %v3685 = vpack.c.b16 %v3632, %v3631
      %v3686 = vpack.c.b16 %v3634, %v3633
      %v3687 = vpack.c.b16 %v3636, %v3635
      %v3688 = vpack.c.b16 %v3638, %v3637
      %v3689 = vpack.c.b16 %v3640, %v3639
      %v3690 = vpack.c.b16 %v3642, %v3641
      %v3691 = vpack.c.b16 %v3644, %v3643
      %v3692 = vpack.c.b16 %v3646, %v3645
      %v3693 = vpack.c.b16 %v3648, %v3647
      %v3694 = vpack.c.b16 %v3650, %v3649
      %v3695 = vpack.c.b16 %v3652, %v3651
      %v3696 = vpack.c.b16 %v3654, %v3653
      %v3697 = vpack.c.b16 %v3656, %v3655
      %v3698 = vpack.c.b16 %v3658, %v3657
      %v3699 = vpack.c.b16 %v3660, %v3659
      %v3700 = vpack.c.b16 %v3662, %v3661
      %v3701 = vpack.c.b16 %v3664, %v3663
      %v3702 = vpack.c.b16 %v3666, %v3665
      %v3703 = vpack.c.b16 %v3668, %v3667
      %v3704 = vpack.c.b16 %v3670, %v3669
      %v3705 = vpack.c.b16 %v3672, %v3671
      %v3706 = vpack.c.b16 %v3674, %v3673
      %3739 = vmatpush.bf16.msra.mxu0 %v3682
      %3740 = vmatpush.bf16.msra.mxu0 %v3681
      %3741 = vmatpush.bf16.msra.mxu0 %v3680
      %3742 = vmatpush.bf16.msra.mxu0 %v3679
      %3743 = vmatpush.bf16.msra.mxu0 %v3678
      %3744 = vmatpush.bf16.msra.mxu0 %v3677
      %3745 = vmatpush.bf16.msra.mxu0 %v3676
      %3746 = vmatpush.bf16.msra.mxu0 %v3675
      %3747 = vmatmul.bf16.gmra.mxu0 %v2569
      %v3748 = vpop.f32.mrf.mxu0
      %v3749 = vadd.f32 %v3508, %v3748
      %v3750 = vpop.f32.mrf.mxu0
      %v3751 = vadd.f32 %v3510, %v3750
      %3752 = vmatmul.bf16.gmra.mxu0 %v2573
      %v3753 = vpop.f32.mrf.mxu0
      %v3754 = vadd.f32 %v3513, %v3753
      %v3755 = vpop.f32.mrf.mxu0
      %v3756 = vadd.f32 %v3515, %v3755
      %3757 = vmatmul.bf16.gmra.mxu0 %v2577
      %v3758 = vpop.f32.mrf.mxu0
      %v3759 = vadd.f32 %v3518, %v3758
      %v3760 = vpop.f32.mrf.mxu0
      %v3761 = vadd.f32 %v3520, %v3760
      %3762 = vmatmul.bf16.gmra.mxu0 %v2581
      %v3763 = vpop.f32.mrf.mxu0
      %v3764 = vadd.f32 %v3523, %v3763
      %v3765 = vpop.f32.mrf.mxu0
      %v3766 = vadd.f32 %v3525, %v3765
      %3767 = vmatmul.bf16.gmra.mxu0 %v2585
      %v3768 = vpop.f32.mrf.mxu0
      %v3769 = vadd.f32 %v3528, %v3768
      %v3770 = vpop.f32.mrf.mxu0
      %v3771 = vadd.f32 %v3530, %v3770
      %3772 = vmatmul.bf16.gmra.mxu0 %v2589
      %v3773 = vpop.f32.mrf.mxu0
      %v3774 = vadd.f32 %v3533, %v3773
      %v3775 = vpop.f32.mrf.mxu0
      %v3776 = vadd.f32 %v3535, %v3775
      %3777 = vmatmul.bf16.gmra.mxu0 %v2593
      %v3778 = vpop.f32.mrf.mxu0
      %v3779 = vadd.f32 %v3538, %v3778
      %v3780 = vpop.f32.mrf.mxu0
      %v3781 = vadd.f32 %v3540, %v3780
      %3782 = vmatmul.bf16.gmra.mxu0 %v2597
      %v3783 = vpop.f32.mrf.mxu0
      %v3784 = vadd.f32 %v3543, %v3783
      %v3785 = vpop.f32.mrf.mxu0
      %v3786 = vadd.f32 %v3545, %v3785
      %3787 = vdwg.mxu0
      %3788 = vmatpush.bf16.msra.mxu0 %v3690
      %3789 = vmatpush.bf16.msra.mxu0 %v3689
      %3790 = vmatpush.bf16.msra.mxu0 %v3688
      %3791 = vmatpush.bf16.msra.mxu0 %v3687
      %3792 = vmatpush.bf16.msra.mxu0 %v3686
      %3793 = vmatpush.bf16.msra.mxu0 %v3685
      %3794 = vmatpush.bf16.msra.mxu0 %v3684
      %3795 = vmatpush.bf16.msra.mxu0 %v3683
      %3796 = vmatmul.bf16.gmra.mxu0 %v2570
      %v3797 = vpop.f32.mrf.mxu0
      %v3798 = vadd.f32 %v3749, %v3797
      %v3799 = vpop.f32.mrf.mxu0
      %v3800 = vadd.f32 %v3751, %v3799
      %3801 = vmatmul.bf16.gmra.mxu0 %v2574
      %v3802 = vpop.f32.mrf.mxu0
      %v3803 = vadd.f32 %v3754, %v3802
      %v3804 = vpop.f32.mrf.mxu0
      %v3805 = vadd.f32 %v3756, %v3804
      %3806 = vmatmul.bf16.gmra.mxu0 %v2578
      %v3807 = vpop.f32.mrf.mxu0
      %v3808 = vadd.f32 %v3759, %v3807
      %v3809 = vpop.f32.mrf.mxu0
      %v3810 = vadd.f32 %v3761, %v3809
      %3811 = vmatmul.bf16.gmra.mxu0 %v2582
      %v3812 = vpop.f32.mrf.mxu0
      %v3813 = vadd.f32 %v3764, %v3812
      %v3814 = vpop.f32.mrf.mxu0
      %v3815 = vadd.f32 %v3766, %v3814
      %3816 = vmatmul.bf16.gmra.mxu0 %v2586
      %v3817 = vpop.f32.mrf.mxu0
      %v3818 = vadd.f32 %v3769, %v3817
      %v3819 = vpop.f32.mrf.mxu0
      %v3820 = vadd.f32 %v3771, %v3819
      %3821 = vmatmul.bf16.gmra.mxu0 %v2590
      %v3822 = vpop.f32.mrf.mxu0
      %v3823 = vadd.f32 %v3774, %v3822
      %v3824 = vpop.f32.mrf.mxu0
      %v3825 = vadd.f32 %v3776, %v3824
      %3826 = vmatmul.bf16.gmra.mxu0 %v2594
      %v3827 = vpop.f32.mrf.mxu0
      %v3828 = vadd.f32 %v3779, %v3827
      %v3829 = vpop.f32.mrf.mxu0
      %v3830 = vadd.f32 %v3781, %v3829
      %3831 = vmatmul.bf16.gmra.mxu0 %v2598
      %v3832 = vpop.f32.mrf.mxu0
      %v3833 = vadd.f32 %v3784, %v3832
      %v3834 = vpop.f32.mrf.mxu0
      %v3835 = vadd.f32 %v3786, %v3834
      %3836 = vdwg.mxu0
      %3837 = vmatpush.bf16.msra.mxu0 %v3698
      %3838 = vmatpush.bf16.msra.mxu0 %v3697
      %3839 = vmatpush.bf16.msra.mxu0 %v3696
      %3840 = vmatpush.bf16.msra.mxu0 %v3695
      %3841 = vmatpush.bf16.msra.mxu0 %v3694
      %3842 = vmatpush.bf16.msra.mxu0 %v3693
      %3843 = vmatpush.bf16.msra.mxu0 %v3692
      %3844 = vmatpush.bf16.msra.mxu0 %v3691
      %3845 = vmatmul.bf16.gmra.mxu0 %v2571
      %v3846 = vpop.f32.mrf.mxu0
      %v3847 = vadd.f32 %v3798, %v3846
      %v3848 = vpop.f32.mrf.mxu0
      %v3849 = vadd.f32 %v3800, %v3848
      %3850 = vmatmul.bf16.gmra.mxu0 %v2575
      %v3851 = vpop.f32.mrf.mxu0
      %v3852 = vadd.f32 %v3803, %v3851
      %v3853 = vpop.f32.mrf.mxu0
      %v3854 = vadd.f32 %v3805, %v3853
      %3855 = vmatmul.bf16.gmra.mxu0 %v2579
      %v3856 = vpop.f32.mrf.mxu0
      %v3857 = vadd.f32 %v3808, %v3856
      %v3858 = vpop.f32.mrf.mxu0
      %v3859 = vadd.f32 %v3810, %v3858
      %3860 = vmatmul.bf16.gmra.mxu0 %v2583
      %v3861 = vpop.f32.mrf.mxu0
      %v3862 = vadd.f32 %v3813, %v3861
      %v3863 = vpop.f32.mrf.mxu0
      %v3864 = vadd.f32 %v3815, %v3863
      %3865 = vmatmul.bf16.gmra.mxu0 %v2587
      %v3866 = vpop.f32.mrf.mxu0
      %v3867 = vadd.f32 %v3818, %v3866
      %v3868 = vpop.f32.mrf.mxu0
      %v3869 = vadd.f32 %v3820, %v3868
      %3870 = vmatmul.bf16.gmra.mxu0 %v2591
      %v3871 = vpop.f32.mrf.mxu0
      %v3872 = vadd.f32 %v3823, %v3871
      %v3873 = vpop.f32.mrf.mxu0
      %v3874 = vadd.f32 %v3825, %v3873
      %3875 = vmatmul.bf16.gmra.mxu0 %v2595
      %v3876 = vpop.f32.mrf.mxu0
      %v3877 = vadd.f32 %v3828, %v3876
      %v3878 = vpop.f32.mrf.mxu0
      %v3879 = vadd.f32 %v3830, %v3878
      %3880 = vmatmul.bf16.gmra.mxu0 %v2599
      %v3881 = vpop.f32.mrf.mxu0
      %v3882 = vadd.f32 %v3833, %v3881
      %v3883 = vpop.f32.mrf.mxu0
      %v3884 = vadd.f32 %v3835, %v3883
      %3885 = vdwg.mxu0
      %3886 = vmatpush.bf16.msra.mxu0 %v3706
      %3887 = vmatpush.bf16.msra.mxu0 %v3705
      %3888 = vmatpush.bf16.msra.mxu0 %v3704
      %3889 = vmatpush.bf16.msra.mxu0 %v3703
      %3890 = vmatpush.bf16.msra.mxu0 %v3702
      %3891 = vmatpush.bf16.msra.mxu0 %v3701
      %3892 = vmatpush.bf16.msra.mxu0 %v3700
      %3893 = vmatpush.bf16.msra.mxu0 %v3699
      %3894 = vmatmul.bf16.gmra.mxu0 %v2572
      %v3895 = vpop.f32.mrf.mxu0
      %v3896 = vadd.f32 %v3847, %v3895
      %v3897 = vpop.f32.mrf.mxu0
      %v3898 = vadd.f32 %v3849, %v3897
      %3899 = vmatmul.bf16.gmra.mxu0 %v2576
      %v3900 = vpop.f32.mrf.mxu0
      %v3901 = vadd.f32 %v3852, %v3900
      %v3902 = vpop.f32.mrf.mxu0
      %v3903 = vadd.f32 %v3854, %v3902
      %3904 = vmatmul.bf16.gmra.mxu0 %v2580
      %v3905 = vpop.f32.mrf.mxu0
      %v3906 = vadd.f32 %v3857, %v3905
      %v3907 = vpop.f32.mrf.mxu0
      %v3908 = vadd.f32 %v3859, %v3907
      %3909 = vmatmul.bf16.gmra.mxu0 %v2584
      %v3910 = vpop.f32.mrf.mxu0
      %v3911 = vadd.f32 %v3862, %v3910
      %v3912 = vpop.f32.mrf.mxu0
      %v3913 = vadd.f32 %v3864, %v3912
      %3914 = vmatmul.bf16.gmra.mxu0 %v2588
      %v3915 = vpop.f32.mrf.mxu0
      %v3916 = vadd.f32 %v3867, %v3915
      %v3917 = vpop.f32.mrf.mxu0
      %v3918 = vadd.f32 %v3869, %v3917
      %3919 = vmatmul.bf16.gmra.mxu0 %v2592
      %v3920 = vpop.f32.mrf.mxu0
      %v3921 = vadd.f32 %v3872, %v3920
      %v3922 = vpop.f32.mrf.mxu0
      %v3923 = vadd.f32 %v3874, %v3922
      %3924 = vmatmul.bf16.gmra.mxu0 %v2596
      %v3925 = vpop.f32.mrf.mxu0
      %v3926 = vadd.f32 %v3877, %v3925
      %v3927 = vpop.f32.mrf.mxu0
      %v3928 = vadd.f32 %v3879, %v3927
      %3929 = vmatmul.bf16.gmra.mxu0 %v2600
      %v3930 = vpop.f32.mrf.mxu0
      %v3931 = vadd.f32 %v3882, %v3930
      %v3932 = vpop.f32.mrf.mxu0
      %v3933 = vadd.f32 %v3884, %v3932
      %3934 = vdwg.mxu0
      %v3935 = vld [vmem:[%s9 + $0x20] sm:$0xff]
      %v3936 = vld [vmem:[%s9 + $0x28] sm:$0xff]
      %v3937 = vld [vmem:[%s9 + $0x60] sm:$0xff]
      %v3938 = vld [vmem:[%s9 + $0x68] sm:$0xff]
      %v3939 = vld [vmem:[%s9 + $0xa0] sm:$0xff]
      %v3940 = vld [vmem:[%s9 + $0xa8] sm:$0xff]
      %v3941 = vld [vmem:[%s9 + $0xe0] sm:$0xff]
      %v3942 = vld [vmem:[%s9 + $0xe8] sm:$0xff]
      %v3943 = vld [vmem:[%s9 + $0x120] sm:$0xff]
      %v3944 = vld [vmem:[%s9 + $0x128] sm:$0xff]
      %v3945 = vld [vmem:[%s9 + $0x160] sm:$0xff]
      %v3946 = vld [vmem:[%s9 + $0x168] sm:$0xff]
      %v3947 = vld [vmem:[%s9 + $0x1a0] sm:$0xff]
      %v3948 = vld [vmem:[%s9 + $0x1a8] sm:$0xff]
      %v3949 = vld [vmem:[%s9 + $0x1e0] sm:$0xff]
      %v3950 = vld [vmem:[%s9 + $0x1e8] sm:$0xff]
      %v3951 = vld [vmem:[%s9 + $0x220] sm:$0xff]
      %v3952 = vld [vmem:[%s9 + $0x228] sm:$0xff]
      %v3953 = vld [vmem:[%s9 + $0x260] sm:$0xff]
      %v3954 = vld [vmem:[%s9 + $0x268] sm:$0xff]
      %v3955 = vld [vmem:[%s9 + $0x2a0] sm:$0xff]
      %v3956 = vld [vmem:[%s9 + $0x2a8] sm:$0xff]
      %v3957 = vld [vmem:[%s9 + $0x2e0] sm:$0xff]
      %v3958 = vld [vmem:[%s9 + $0x2e8] sm:$0xff]
      %v3959 = vld [vmem:[%s9 + $0x320] sm:$0xff]
      %v3960 = vld [vmem:[%s9 + $0x328] sm:$0xff]
      %v3961 = vld [vmem:[%s9 + $0x360] sm:$0xff]
      %v3962 = vld [vmem:[%s9 + $0x368] sm:$0xff]
      %v3963 = vld [vmem:[%s9 + $0x3a0] sm:$0xff]
      %v3964 = vld [vmem:[%s9 + $0x3a8] sm:$0xff]
      %v3965 = vld [vmem:[%s9 + $0x3e0] sm:$0xff]
      %v3966 = vld [vmem:[%s9 + $0x3e8] sm:$0xff]
      %v3967 = vld [vmem:[%s10 + $0x8] sm:$0xf]
      %v3968 = vld [vmem:[%s11 + $0x200] sm:$0xf]
      %v3969 = vld [vmem:[%s11 + $0x204] sm:$0xf]
      %v3970 = vld [vmem:[%s11 + $0x208] sm:$0xf]
      %v3971 = vld [vmem:[%s11 + $0x20c] sm:$0xf]
      %v3972 = vld [vmem:[%s11 + $0x210] sm:$0xf]
      %v3973 = vld [vmem:[%s11 + $0x214] sm:$0xf]
      %v3974 = vld [vmem:[%s11 + $0x218] sm:$0xf]
      %v3975 = vld [vmem:[%s11 + $0x21c] sm:$0xf]
      %v3976 = vld [vmem:[%s11 + $0x220] sm:$0xf]
      %v3977 = vld [vmem:[%s11 + $0x224] sm:$0xf]
      %v3978 = vld [vmem:[%s11 + $0x228] sm:$0xf]
      %v3979 = vld [vmem:[%s11 + $0x22c] sm:$0xf]
      %v3980 = vld [vmem:[%s11 + $0x230] sm:$0xf]
      %v3981 = vld [vmem:[%s11 + $0x234] sm:$0xf]
      %v3982 = vld [vmem:[%s11 + $0x238] sm:$0xf]
      %v3983 = vld [vmem:[%s11 + $0x23c] sm:$0xf]
      %v3984 = vld [vmem:[%s11 + $0x240] sm:$0xf]
      %v3985 = vld [vmem:[%s11 + $0x244] sm:$0xf]
      %v3986 = vld [vmem:[%s11 + $0x248] sm:$0xf]
      %v3987 = vld [vmem:[%s11 + $0x24c] sm:$0xf]
      %v3988 = vld [vmem:[%s11 + $0x250] sm:$0xf]
      %v3989 = vld [vmem:[%s11 + $0x254] sm:$0xf]
      %v3990 = vld [vmem:[%s11 + $0x258] sm:$0xf]
      %v3991 = vld [vmem:[%s11 + $0x25c] sm:$0xf]
      %v3992 = vld [vmem:[%s11 + $0x260] sm:$0xf]
      %v3993 = vld [vmem:[%s11 + $0x264] sm:$0xf]
      %v3994 = vld [vmem:[%s11 + $0x268] sm:$0xf]
      %v3995 = vld [vmem:[%s11 + $0x26c] sm:$0xf]
      %v3996 = vld [vmem:[%s11 + $0x270] sm:$0xf]
      %v3997 = vld [vmem:[%s11 + $0x274] sm:$0xf]
      %v3998 = vld [vmem:[%s11 + $0x278] sm:$0xf]
      %v3999 = vld [vmem:[%s11 + $0x27c] sm:$0xf]
      %v4000 = vld [vmem:[%s11 + $0x280] sm:$0xf]
      %v4001 = vld [vmem:[%s11 + $0x284] sm:$0xf]
      %v4002 = vld [vmem:[%s11 + $0x288] sm:$0xf]
      %v4003 = vld [vmem:[%s11 + $0x28c] sm:$0xf]
      %v4004 = vld [vmem:[%s11 + $0x290] sm:$0xf]
      %v4005 = vld [vmem:[%s11 + $0x294] sm:$0xf]
      %v4006 = vld [vmem:[%s11 + $0x298] sm:$0xf]
      %v4007 = vld [vmem:[%s11 + $0x29c] sm:$0xf]
      %v4008 = vld [vmem:[%s11 + $0x2a0] sm:$0xf]
      %v4009 = vld [vmem:[%s11 + $0x2a4] sm:$0xf]
      %v4010 = vld [vmem:[%s11 + $0x2a8] sm:$0xf]
      %v4011 = vld [vmem:[%s11 + $0x2ac] sm:$0xf]
      %v4012 = vld [vmem:[%s11 + $0x2b0] sm:$0xf]
      %v4013 = vld [vmem:[%s11 + $0x2b4] sm:$0xf]
      %v4014 = vld [vmem:[%s11 + $0x2b8] sm:$0xf]
      %v4015 = vld [vmem:[%s11 + $0x2bc] sm:$0xf]
      %v4016 = vld [vmem:[%s11 + $0x2c0] sm:$0xf]
      %v4017 = vld [vmem:[%s11 + $0x2c4] sm:$0xf]
      %v4018 = vld [vmem:[%s11 + $0x2c8] sm:$0xf]
      %v4019 = vld [vmem:[%s11 + $0x2cc] sm:$0xf]
      %v4020 = vld [vmem:[%s11 + $0x2d0] sm:$0xf]
      %v4021 = vld [vmem:[%s11 + $0x2d4] sm:$0xf]
      %v4022 = vld [vmem:[%s11 + $0x2d8] sm:$0xf]
      %v4023 = vld [vmem:[%s11 + $0x2dc] sm:$0xf]
      %v4024 = vld [vmem:[%s11 + $0x2e0] sm:$0xf]
      %v4025 = vld [vmem:[%s11 + $0x2e4] sm:$0xf]
      %v4026 = vld [vmem:[%s11 + $0x2e8] sm:$0xf]
      %v4027 = vld [vmem:[%s11 + $0x2ec] sm:$0xf]
      %v4028 = vld [vmem:[%s11 + $0x2f0] sm:$0xf]
      %v4029 = vld [vmem:[%s11 + $0x2f4] sm:$0xf]
      %v4030 = vld [vmem:[%s11 + $0x2f8] sm:$0xf]
      %v4031 = vld [vmem:[%s11 + $0x2fc] sm:$0xf]
      %v4033 = vperm.slane %v3967, 0
      %v4034 = vperm.slane %v3967, 1
      %v4035 = vperm.slane %v3967, 2
      %v4036 = vperm.slane %v3967, 3
      %v4073 = vunpack.c.l.b16 %v3935
      %v4074 = vunpack.c.h.b16 %v3935
      %v4075 = vunpack.c.l.b16 %v3936
      %v4076 = vunpack.c.h.b16 %v3936
      %v4077 = vunpack.c.l.b16 %v3937
      %v4078 = vunpack.c.h.b16 %v3937
      %v4079 = vunpack.c.l.b16 %v3938
      %v4080 = vunpack.c.h.b16 %v3938
      %v4081 = vunpack.c.l.b16 %v3939
      %v4082 = vunpack.c.h.b16 %v3939
      %v4083 = vunpack.c.l.b16 %v3940
      %v4084 = vunpack.c.h.b16 %v3940
      %v4085 = vunpack.c.l.b16 %v3941
      %v4086 = vunpack.c.h.b16 %v3941
      %v4087 = vunpack.c.l.b16 %v3942
      %v4088 = vunpack.c.h.b16 %v3942
      %v4089 = vunpack.c.l.b16 %v3943
      %v4090 = vunpack.c.h.b16 %v3943
      %v4091 = vunpack.c.l.b16 %v3944
      %v4092 = vunpack.c.h.b16 %v3944
      %v4093 = vunpack.c.l.b16 %v3945
      %v4094 = vunpack.c.h.b16 %v3945
      %v4095 = vunpack.c.l.b16 %v3946
      %v4096 = vunpack.c.h.b16 %v3946
      %v4097 = vunpack.c.l.b16 %v3947
      %v4098 = vunpack.c.h.b16 %v3947
      %v4099 = vunpack.c.l.b16 %v3948
      %v4100 = vunpack.c.h.b16 %v3948
      %v4101 = vunpack.c.l.b16 %v3949
      %v4102 = vunpack.c.h.b16 %v3949
      %v4103 = vunpack.c.l.b16 %v3950
      %v4104 = vunpack.c.h.b16 %v3950
      %v4105 = vunpack.c.l.b16 %v3951
      %v4106 = vunpack.c.h.b16 %v3951
      %v4107 = vunpack.c.l.b16 %v3952
      %v4108 = vunpack.c.h.b16 %v3952
      %v4109 = vunpack.c.l.b16 %v3953
      %v4110 = vunpack.c.h.b16 %v3953
      %v4111 = vunpack.c.l.b16 %v3954
      %v4112 = vunpack.c.h.b16 %v3954
      %v4113 = vunpack.c.l.b16 %v3955
      %v4114 = vunpack.c.h.b16 %v3955
      %v4115 = vunpack.c.l.b16 %v3956
      %v4116 = vunpack.c.h.b16 %v3956
      %v4117 = vunpack.c.l.b16 %v3957
      %v4118 = vunpack.c.h.b16 %v3957
      %v4119 = vunpack.c.l.b16 %v3958
      %v4120 = vunpack.c.h.b16 %v3958
      %v4121 = vunpack.c.l.b16 %v3959
      %v4122 = vunpack.c.h.b16 %v3959
      %v4123 = vunpack.c.l.b16 %v3960
      %v4124 = vunpack.c.h.b16 %v3960
      %v4125 = vunpack.c.l.b16 %v3961
      %v4126 = vunpack.c.h.b16 %v3961
      %v4127 = vunpack.c.l.b16 %v3962
      %v4128 = vunpack.c.h.b16 %v3962
      %v4129 = vunpack.c.l.b16 %v3963
      %v4130 = vunpack.c.h.b16 %v3963
      %v4131 = vunpack.c.l.b16 %v3964
      %v4132 = vunpack.c.h.b16 %v3964
      %v4133 = vunpack.c.l.b16 %v3965
      %v4134 = vunpack.c.h.b16 %v3965
      %v4135 = vunpack.c.l.b16 %v3966
      %v4136 = vunpack.c.h.b16 %v3966
      %v4137 = vpack.c.b16 %v4077, %v4073
      %v4138 = vpack.c.b16 %v4078, %v4074
      %v4139 = vpack.c.b16 %v4079, %v4075
      %v4140 = vpack.c.b16 %v4080, %v4076
      %v4141 = vpack.c.b16 %v4085, %v4081
      %v4142 = vpack.c.b16 %v4086, %v4082
      %v4143 = vpack.c.b16 %v4087, %v4083
      %v4144 = vpack.c.b16 %v4088, %v4084
      %v4145 = vpack.c.b16 %v4093, %v4089
      %v4146 = vpack.c.b16 %v4094, %v4090
      %v4147 = vpack.c.b16 %v4095, %v4091
      %v4148 = vpack.c.b16 %v4096, %v4092
      %v4149 = vpack.c.b16 %v4101, %v4097
      %v4150 = vpack.c.b16 %v4102, %v4098
      %v4151 = vpack.c.b16 %v4103, %v4099
      %v4152 = vpack.c.b16 %v4104, %v4100
      %v4153 = vpack.c.b16 %v4109, %v4105
      %v4154 = vpack.c.b16 %v4110, %v4106
      %v4155 = vpack.c.b16 %v4111, %v4107
      %v4156 = vpack.c.b16 %v4112, %v4108
      %v4157 = vpack.c.b16 %v4117, %v4113
      %v4158 = vpack.c.b16 %v4118, %v4114
      %v4159 = vpack.c.b16 %v4119, %v4115
      %v4160 = vpack.c.b16 %v4120, %v4116
      %v4161 = vpack.c.b16 %v4125, %v4121
      %v4162 = vpack.c.b16 %v4126, %v4122
      %v4163 = vpack.c.b16 %v4127, %v4123
      %v4164 = vpack.c.b16 %v4128, %v4124
      %v4165 = vpack.c.b16 %v4133, %v4129
      %v4166 = vpack.c.b16 %v4134, %v4130
      %v4167 = vpack.c.b16 %v4135, %v4131
      %v4168 = vpack.c.b16 %v4136, %v4132
      %4201 = vmatpush.bf16.msra.mxu0 %v4165
      %4202 = vmatpush.bf16.msra.mxu0 %v4161
      %4203 = vmatpush.bf16.msra.mxu0 %v4157
      %4204 = vmatpush.bf16.msra.mxu0 %v4153
      %4205 = vmatpush.bf16.msra.mxu0 %v4149
      %4206 = vmatpush.bf16.msra.mxu0 %v4145
      %4207 = vmatpush.bf16.msra.mxu0 %v4141
      %4208 = vmatpush.bf16.msra.mxu0 %v4137
      %4209 = vmatmul.bf16.gmra.mxu0 %v2035
      %v4210 = vpop.f32.mrf.mxu0
      %v4211 = vadd.f32 %v4033, %v4210
      %v4212 = vpop.f32.mrf.mxu0
      %v4213 = vadd.f32 %v4033, %v4212
      %4214 = vmatmul.bf16.gmra.mxu0 %v2036
      %v4215 = vpop.f32.mrf.mxu0
      %v4216 = vadd.f32 %v4033, %v4215
      %v4217 = vpop.f32.mrf.mxu0
      %v4218 = vadd.f32 %v4033, %v4217
      %4219 = vmatmul.bf16.gmra.mxu0 %v2037
      %v4220 = vpop.f32.mrf.mxu0
      %v4221 = vadd.f32 %v4033, %v4220
      %v4222 = vpop.f32.mrf.mxu0
      %v4223 = vadd.f32 %v4033, %v4222
      %4224 = vmatmul.bf16.gmra.mxu0 %v2038
      %v4225 = vpop.f32.mrf.mxu0
      %v4226 = vadd.f32 %v4033, %v4225
      %v4227 = vpop.f32.mrf.mxu0
      %v4228 = vadd.f32 %v4033, %v4227
      %4229 = vmatmul.bf16.gmra.mxu0 %v2039
      %v4230 = vpop.f32.mrf.mxu0
      %v4231 = vadd.f32 %v4033, %v4230
      %v4232 = vpop.f32.mrf.mxu0
      %v4233 = vadd.f32 %v4033, %v4232
      %4234 = vmatmul.bf16.gmra.mxu0 %v2040
      %v4235 = vpop.f32.mrf.mxu0
      %v4236 = vadd.f32 %v4033, %v4235
      %v4237 = vpop.f32.mrf.mxu0
      %v4238 = vadd.f32 %v4033, %v4237
      %4239 = vmatmul.bf16.gmra.mxu0 %v2041
      %v4240 = vpop.f32.mrf.mxu0
      %v4241 = vadd.f32 %v4033, %v4240
      %v4242 = vpop.f32.mrf.mxu0
      %v4243 = vadd.f32 %v4033, %v4242
      %4244 = vmatmul.bf16.gmra.mxu0 %v2042
      %v4245 = vpop.f32.mrf.mxu0
      %v4246 = vadd.f32 %v4033, %v4245
      %v4247 = vpop.f32.mrf.mxu0
      %v4248 = vadd.f32 %v4033, %v4247
      %4249 = vdwg.mxu0
      %4250 = vmatpush.bf16.msra.mxu0 %v4166
      %4251 = vmatpush.bf16.msra.mxu0 %v4162
      %4252 = vmatpush.bf16.msra.mxu0 %v4158
      %4253 = vmatpush.bf16.msra.mxu0 %v4154
      %4254 = vmatpush.bf16.msra.mxu0 %v4150
      %4255 = vmatpush.bf16.msra.mxu0 %v4146
      %4256 = vmatpush.bf16.msra.mxu0 %v4142
      %4257 = vmatpush.bf16.msra.mxu0 %v4138
      %4258 = vmatmul.bf16.gmra.mxu0 %v2035
      %v4259 = vpop.f32.mrf.mxu0
      %v4260 = vadd.f32 %v4034, %v4259
      %v4261 = vpop.f32.mrf.mxu0
      %v4262 = vadd.f32 %v4034, %v4261
      %4263 = vmatmul.bf16.gmra.mxu0 %v2036
      %v4264 = vpop.f32.mrf.mxu0
      %v4265 = vadd.f32 %v4034, %v4264
      %v4266 = vpop.f32.mrf.mxu0
      %v4267 = vadd.f32 %v4034, %v4266
      %4268 = vmatmul.bf16.gmra.mxu0 %v2037
      %v4269 = vpop.f32.mrf.mxu0
      %v4270 = vadd.f32 %v4034, %v4269
      %v4271 = vpop.f32.mrf.mxu0
      %v4272 = vadd.f32 %v4034, %v4271
      %4273 = vmatmul.bf16.gmra.mxu0 %v2038
      %v4274 = vpop.f32.mrf.mxu0
      %v4275 = vadd.f32 %v4034, %v4274
      %v4276 = vpop.f32.mrf.mxu0
      %v4277 = vadd.f32 %v4034, %v4276
      %4278 = vmatmul.bf16.gmra.mxu0 %v2039
      %v4279 = vpop.f32.mrf.mxu0
      %v4280 = vadd.f32 %v4034, %v4279
      %v4281 = vpop.f32.mrf.mxu0
      %v4282 = vadd.f32 %v4034, %v4281
      %4283 = vmatmul.bf16.gmra.mxu0 %v2040
      %v4284 = vpop.f32.mrf.mxu0
      %v4285 = vadd.f32 %v4034, %v4284
      %v4286 = vpop.f32.mrf.mxu0
      %v4287 = vadd.f32 %v4034, %v4286
      %4288 = vmatmul.bf16.gmra.mxu0 %v2041
      %v4289 = vpop.f32.mrf.mxu0
      %v4290 = vadd.f32 %v4034, %v4289
      %v4291 = vpop.f32.mrf.mxu0
      %v4292 = vadd.f32 %v4034, %v4291
      %4293 = vmatmul.bf16.gmra.mxu0 %v2042
      %v4294 = vpop.f32.mrf.mxu0
      %v4295 = vadd.f32 %v4034, %v4294
      %v4296 = vpop.f32.mrf.mxu0
      %v4297 = vadd.f32 %v4034, %v4296
      %4298 = vdwg.mxu0
      %4299 = vmatpush.bf16.msra.mxu0 %v4167
      %4300 = vmatpush.bf16.msra.mxu0 %v4163
      %4301 = vmatpush.bf16.msra.mxu0 %v4159
      %4302 = vmatpush.bf16.msra.mxu0 %v4155
      %4303 = vmatpush.bf16.msra.mxu0 %v4151
      %4304 = vmatpush.bf16.msra.mxu0 %v4147
      %4305 = vmatpush.bf16.msra.mxu0 %v4143
      %4306 = vmatpush.bf16.msra.mxu0 %v4139
      %4307 = vmatmul.bf16.gmra.mxu0 %v2035
      %v4308 = vpop.f32.mrf.mxu0
      %v4309 = vadd.f32 %v4035, %v4308
      %v4310 = vpop.f32.mrf.mxu0
      %v4311 = vadd.f32 %v4035, %v4310
      %4312 = vmatmul.bf16.gmra.mxu0 %v2036
      %v4313 = vpop.f32.mrf.mxu0
      %v4314 = vadd.f32 %v4035, %v4313
      %v4315 = vpop.f32.mrf.mxu0
      %v4316 = vadd.f32 %v4035, %v4315
      %4317 = vmatmul.bf16.gmra.mxu0 %v2037
      %v4318 = vpop.f32.mrf.mxu0
      %v4319 = vadd.f32 %v4035, %v4318
      %v4320 = vpop.f32.mrf.mxu0
      %v4321 = vadd.f32 %v4035, %v4320
      %4322 = vmatmul.bf16.gmra.mxu0 %v2038
      %v4323 = vpop.f32.mrf.mxu0
      %v4324 = vadd.f32 %v4035, %v4323
      %v4325 = vpop.f32.mrf.mxu0
      %v4326 = vadd.f32 %v4035, %v4325
      %4327 = vmatmul.bf16.gmra.mxu0 %v2039
      %v4328 = vpop.f32.mrf.mxu0
      %v4329 = vadd.f32 %v4035, %v4328
      %v4330 = vpop.f32.mrf.mxu0
      %v4331 = vadd.f32 %v4035, %v4330
      %4332 = vmatmul.bf16.gmra.mxu0 %v2040
      %v4333 = vpop.f32.mrf.mxu0
      %v4334 = vadd.f32 %v4035, %v4333
      %v4335 = vpop.f32.mrf.mxu0
      %v4336 = vadd.f32 %v4035, %v4335
      %4337 = vmatmul.bf16.gmra.mxu0 %v2041
      %v4338 = vpop.f32.mrf.mxu0
      %v4339 = vadd.f32 %v4035, %v4338
      %v4340 = vpop.f32.mrf.mxu0
      %v4341 = vadd.f32 %v4035, %v4340
      %4342 = vmatmul.bf16.gmra.mxu0 %v2042
      %v4343 = vpop.f32.mrf.mxu0
      %v4344 = vadd.f32 %v4035, %v4343
      %v4345 = vpop.f32.mrf.mxu0
      %v4346 = vadd.f32 %v4035, %v4345
      %4347 = vdwg.mxu0
      %4348 = vmatpush.bf16.msra.mxu0 %v4168
      %4349 = vmatpush.bf16.msra.mxu0 %v4164
      %4350 = vmatpush.bf16.msra.mxu0 %v4160
      %4351 = vmatpush.bf16.msra.mxu0 %v4156
      %4352 = vmatpush.bf16.msra.mxu0 %v4152
      %4353 = vmatpush.bf16.msra.mxu0 %v4148
      %4354 = vmatpush.bf16.msra.mxu0 %v4144
      %4355 = vmatpush.bf16.msra.mxu0 %v4140
      %4356 = vmatmul.bf16.gmra.mxu0 %v2035
      %v4357 = vpop.f32.mrf.mxu0
      %v4358 = vadd.f32 %v4036, %v4357
      %v4359 = vpop.f32.mrf.mxu0
      %v4360 = vadd.f32 %v4036, %v4359
      %4361 = vmatmul.bf16.gmra.mxu0 %v2036
      %v4362 = vpop.f32.mrf.mxu0
      %v4363 = vadd.f32 %v4036, %v4362
      %v4364 = vpop.f32.mrf.mxu0
      %v4365 = vadd.f32 %v4036, %v4364
      %4366 = vmatmul.bf16.gmra.mxu0 %v2037
      %v4367 = vpop.f32.mrf.mxu0
      %v4368 = vadd.f32 %v4036, %v4367
      %v4369 = vpop.f32.mrf.mxu0
      %v4370 = vadd.f32 %v4036, %v4369
      %4371 = vmatmul.bf16.gmra.mxu0 %v2038
      %v4372 = vpop.f32.mrf.mxu0
      %v4373 = vadd.f32 %v4036, %v4372
      %v4374 = vpop.f32.mrf.mxu0
      %v4375 = vadd.f32 %v4036, %v4374
      %4376 = vmatmul.bf16.gmra.mxu0 %v2039
      %v4377 = vpop.f32.mrf.mxu0
      %v4378 = vadd.f32 %v4036, %v4377
      %v4379 = vpop.f32.mrf.mxu0
      %v4380 = vadd.f32 %v4036, %v4379
      %4381 = vmatmul.bf16.gmra.mxu0 %v2040
      %v4382 = vpop.f32.mrf.mxu0
      %v4383 = vadd.f32 %v4036, %v4382
      %v4384 = vpop.f32.mrf.mxu0
      %v4385 = vadd.f32 %v4036, %v4384
      %4386 = vmatmul.bf16.gmra.mxu0 %v2041
      %v4387 = vpop.f32.mrf.mxu0
      %v4388 = vadd.f32 %v4036, %v4387
      %v4389 = vpop.f32.mrf.mxu0
      %v4390 = vadd.f32 %v4036, %v4389
      %4391 = vmatmul.bf16.gmra.mxu0 %v2042
      %v4392 = vpop.f32.mrf.mxu0
      %v4393 = vadd.f32 %v4036, %v4392
      %v4394 = vpop.f32.mrf.mxu0
      %v4395 = vadd.f32 %v4036, %v4394
      %4396 = vdwg.mxu0
      %v4397 = vmax.f32 %v4211, 0.0
      %v4398 = vmax.f32 %v4260, 0.0
      %v4399 = vmax.f32 %v4309, 0.0
      %v4400 = vmax.f32 %v4358, 0.0
      %v4401 = vmax.f32 %v4213, 0.0
      %v4402 = vmax.f32 %v4262, 0.0
      %v4403 = vmax.f32 %v4311, 0.0
      %v4404 = vmax.f32 %v4360, 0.0
      %v4405 = vmax.f32 %v4216, 0.0
      %v4406 = vmax.f32 %v4265, 0.0
      %v4407 = vmax.f32 %v4314, 0.0
      %v4408 = vmax.f32 %v4363, 0.0
      %v4409 = vmax.f32 %v4218, 0.0
      %v4410 = vmax.f32 %v4267, 0.0
      %v4411 = vmax.f32 %v4316, 0.0
      %v4412 = vmax.f32 %v4365, 0.0
      %v4413 = vmax.f32 %v4221, 0.0
      %v4414 = vmax.f32 %v4270, 0.0
      %v4415 = vmax.f32 %v4319, 0.0
      %v4416 = vmax.f32 %v4368, 0.0
      %v4417 = vmax.f32 %v4223, 0.0
      %v4418 = vmax.f32 %v4272, 0.0
      %v4419 = vmax.f32 %v4321, 0.0
      %v4420 = vmax.f32 %v4370, 0.0
      %v4421 = vmax.f32 %v4226, 0.0
      %v4422 = vmax.f32 %v4275, 0.0
      %v4423 = vmax.f32 %v4324, 0.0
      %v4424 = vmax.f32 %v4373, 0.0
      %v4425 = vmax.f32 %v4228, 0.0
      %v4426 = vmax.f32 %v4277, 0.0
      %v4427 = vmax.f32 %v4326, 0.0
      %v4428 = vmax.f32 %v4375, 0.0
      %v4429 = vmax.f32 %v4231, 0.0
      %v4430 = vmax.f32 %v4280, 0.0
      %v4431 = vmax.f32 %v4329, 0.0
      %v4432 = vmax.f32 %v4378, 0.0
      %v4433 = vmax.f32 %v4233, 0.0
      %v4434 = vmax.f32 %v4282, 0.0
      %v4435 = vmax.f32 %v4331, 0.0
      %v4436 = vmax.f32 %v4380, 0.0
      %v4437 = vmax.f32 %v4236, 0.0
      %v4438 = vmax.f32 %v4285, 0.0
      %v4439 = vmax.f32 %v4334, 0.0
      %v4440 = vmax.f32 %v4383, 0.0
      %v4441 = vmax.f32 %v4238, 0.0
      %v4442 = vmax.f32 %v4287, 0.0
      %v4443 = vmax.f32 %v4336, 0.0
      %v4444 = vmax.f32 %v4385, 0.0
      %v4445 = vmax.f32 %v4241, 0.0
      %v4446 = vmax.f32 %v4290, 0.0
      %v4447 = vmax.f32 %v4339, 0.0
      %v4448 = vmax.f32 %v4388, 0.0
      %v4449 = vmax.f32 %v4243, 0.0
      %v4450 = vmax.f32 %v4292, 0.0
      %v4451 = vmax.f32 %v4341, 0.0
      %v4452 = vmax.f32 %v4390, 0.0
      %v4453 = vmax.f32 %v4246, 0.0
      %v4454 = vmax.f32 %v4295, 0.0
      %v4455 = vmax.f32 %v4344, 0.0
      %v4456 = vmax.f32 %v4393, 0.0
      %v4457 = vmax.f32 %v4248, 0.0
      %v4458 = vmax.f32 %v4297, 0.0
      %v4459 = vmax.f32 %v4346, 0.0
      %v4460 = vmax.f32 %v4395, 0.0
      %v4461 = vpack.c.bf16 %v4401, %v4397
      %v4462 = vpack.c.bf16 %v4402, %v4398
      %v4463 = vpack.c.bf16 %v4403, %v4399
      %v4464 = vpack.c.bf16 %v4404, %v4400
      %v4465 = vpack.c.bf16 %v4409, %v4405
      %v4466 = vpack.c.bf16 %v4410, %v4406
      %v4467 = vpack.c.bf16 %v4411, %v4407
      %v4468 = vpack.c.bf16 %v4412, %v4408
      %v4469 = vpack.c.bf16 %v4417, %v4413
      %v4470 = vpack.c.bf16 %v4418, %v4414
      %v4471 = vpack.c.bf16 %v4419, %v4415
      %v4472 = vpack.c.bf16 %v4420, %v4416
      %v4473 = vpack.c.bf16 %v4425, %v4421
      %v4474 = vpack.c.bf16 %v4426, %v4422
      %v4475 = vpack.c.bf16 %v4427, %v4423
      %v4476 = vpack.c.bf16 %v4428, %v4424
      %v4477 = vpack.c.bf16 %v4433, %v4429
      %v4478 = vpack.c.bf16 %v4434, %v4430
      %v4479 = vpack.c.bf16 %v4435, %v4431
      %v4480 = vpack.c.bf16 %v4436, %v4432
      %v4481 = vpack.c.bf16 %v4441, %v4437
      %v4482 = vpack.c.bf16 %v4442, %v4438
      %v4483 = vpack.c.bf16 %v4443, %v4439
      %v4484 = vpack.c.bf16 %v4444, %v4440
      %v4485 = vpack.c.bf16 %v4449, %v4445
      %v4486 = vpack.c.bf16 %v4450, %v4446
      %v4487 = vpack.c.bf16 %v4451, %v4447
      %v4488 = vpack.c.bf16 %v4452, %v4448
      %v4489 = vpack.c.bf16 %v4457, %v4453
      %v4490 = vpack.c.bf16 %v4458, %v4454
      %v4491 = vpack.c.bf16 %v4459, %v4455
      %v4492 = vpack.c.bf16 %v4460, %v4456
      %v4557 = vunpack.c.l.b16 %v3968
      %v4558 = vunpack.c.l.b16 %v3969
      %v4559 = vunpack.c.l.b16 %v3970
      %v4560 = vunpack.c.l.b16 %v3971
      %v4561 = vunpack.c.l.b16 %v3972
      %v4562 = vunpack.c.l.b16 %v3973
      %v4563 = vunpack.c.l.b16 %v3974
      %v4564 = vunpack.c.l.b16 %v3975
      %v4565 = vunpack.c.l.b16 %v3976
      %v4566 = vunpack.c.l.b16 %v3977
      %v4567 = vunpack.c.l.b16 %v3978
      %v4568 = vunpack.c.l.b16 %v3979
      %v4569 = vunpack.c.l.b16 %v3980
      %v4570 = vunpack.c.l.b16 %v3981
      %v4571 = vunpack.c.l.b16 %v3982
      %v4572 = vunpack.c.l.b16 %v3983
      %v4573 = vunpack.c.l.b16 %v3984
      %v4574 = vunpack.c.l.b16 %v3985
      %v4575 = vunpack.c.l.b16 %v3986
      %v4576 = vunpack.c.l.b16 %v3987
      %v4577 = vunpack.c.l.b16 %v3988
      %v4578 = vunpack.c.l.b16 %v3989
      %v4579 = vunpack.c.l.b16 %v3990
      %v4580 = vunpack.c.l.b16 %v3991
      %v4581 = vunpack.c.l.b16 %v3992
      %v4582 = vunpack.c.l.b16 %v3993
      %v4583 = vunpack.c.l.b16 %v3994
      %v4584 = vunpack.c.l.b16 %v3995
      %v4585 = vunpack.c.l.b16 %v3996
      %v4586 = vunpack.c.l.b16 %v3997
      %v4587 = vunpack.c.l.b16 %v3998
      %v4588 = vunpack.c.l.b16 %v3999
      %v4589 = vunpack.c.l.b16 %v4000
      %v4590 = vunpack.c.l.b16 %v4001
      %v4591 = vunpack.c.l.b16 %v4002
      %v4592 = vunpack.c.l.b16 %v4003
      %v4593 = vunpack.c.l.b16 %v4004
      %v4594 = vunpack.c.l.b16 %v4005
      %v4595 = vunpack.c.l.b16 %v4006
      %v4596 = vunpack.c.l.b16 %v4007
      %v4597 = vunpack.c.l.b16 %v4008
      %v4598 = vunpack.c.l.b16 %v4009
      %v4599 = vunpack.c.l.b16 %v4010
      %v4600 = vunpack.c.l.b16 %v4011
      %v4601 = vunpack.c.l.b16 %v4012
      %v4602 = vunpack.c.l.b16 %v4013
      %v4603 = vunpack.c.l.b16 %v4014
      %v4604 = vunpack.c.l.b16 %v4015
      %v4605 = vunpack.c.l.b16 %v4016
      %v4606 = vunpack.c.l.b16 %v4017
      %v4607 = vunpack.c.l.b16 %v4018
      %v4608 = vunpack.c.l.b16 %v4019
      %v4609 = vunpack.c.l.b16 %v4020
      %v4610 = vunpack.c.l.b16 %v4021
      %v4611 = vunpack.c.l.b16 %v4022
      %v4612 = vunpack.c.l.b16 %v4023
      %v4613 = vunpack.c.l.b16 %v4024
      %v4614 = vunpack.c.l.b16 %v4025
      %v4615 = vunpack.c.l.b16 %v4026
      %v4616 = vunpack.c.l.b16 %v4027
      %v4617 = vunpack.c.l.b16 %v4028
      %v4618 = vunpack.c.l.b16 %v4029
      %v4619 = vunpack.c.l.b16 %v4030
      %v4620 = vunpack.c.l.b16 %v4031
      %v4621 = vpack.c.b16 %v4558, %v4557
      %v4622 = vpack.c.b16 %v4560, %v4559
      %v4623 = vpack.c.b16 %v4562, %v4561
      %v4624 = vpack.c.b16 %v4564, %v4563
      %v4625 = vpack.c.b16 %v4566, %v4565
      %v4626 = vpack.c.b16 %v4568, %v4567
      %v4627 = vpack.c.b16 %v4570, %v4569
      %v4628 = vpack.c.b16 %v4572, %v4571
      %v4629 = vpack.c.b16 %v4574, %v4573
      %v4630 = vpack.c.b16 %v4576, %v4575
      %v4631 = vpack.c.b16 %v4578, %v4577
      %v4632 = vpack.c.b16 %v4580, %v4579
      %v4633 = vpack.c.b16 %v4582, %v4581
      %v4634 = vpack.c.b16 %v4584, %v4583
      %v4635 = vpack.c.b16 %v4586, %v4585
      %v4636 = vpack.c.b16 %v4588, %v4587
      %v4637 = vpack.c.b16 %v4590, %v4589
      %v4638 = vpack.c.b16 %v4592, %v4591
      %v4639 = vpack.c.b16 %v4594, %v4593
      %v4640 = vpack.c.b16 %v4596, %v4595
      %v4641 = vpack.c.b16 %v4598, %v4597
      %v4642 = vpack.c.b16 %v4600, %v4599
      %v4643 = vpack.c.b16 %v4602, %v4601
      %v4644 = vpack.c.b16 %v4604, %v4603
      %v4645 = vpack.c.b16 %v4606, %v4605
      %v4646 = vpack.c.b16 %v4608, %v4607
      %v4647 = vpack.c.b16 %v4610, %v4609
      %v4648 = vpack.c.b16 %v4612, %v4611
      %v4649 = vpack.c.b16 %v4614, %v4613
      %v4650 = vpack.c.b16 %v4616, %v4615
      %v4651 = vpack.c.b16 %v4618, %v4617
      %v4652 = vpack.c.b16 %v4620, %v4619
      %4685 = vmatpush.bf16.msra.mxu0 %v4628
      %4686 = vmatpush.bf16.msra.mxu0 %v4627
      %4687 = vmatpush.bf16.msra.mxu0 %v4626
      %4688 = vmatpush.bf16.msra.mxu0 %v4625
      %4689 = vmatpush.bf16.msra.mxu0 %v4624
      %4690 = vmatpush.bf16.msra.mxu0 %v4623
      %4691 = vmatpush.bf16.msra.mxu0 %v4622
      %4692 = vmatpush.bf16.msra.mxu0 %v4621
      %4693 = vmatmul.bf16.gmra.mxu0 %v4461
      %v4694 = vpop.f32.mrf.mxu0
      %v4695 = vadd.f32 0.0, %v4694
      %v4696 = vpop.f32.mrf.mxu0
      %v4697 = vadd.f32 0.0, %v4696
      %4698 = vmatmul.bf16.gmra.mxu0 %v4465
      %v4699 = vpop.f32.mrf.mxu0
      %v4700 = vadd.f32 0.0, %v4699
      %v4701 = vpop.f32.mrf.mxu0
      %v4702 = vadd.f32 0.0, %v4701
      %4703 = vmatmul.bf16.gmra.mxu0 %v4469
      %v4704 = vpop.f32.mrf.mxu0
      %v4705 = vadd.f32 0.0, %v4704
      %v4706 = vpop.f32.mrf.mxu0
      %v4707 = vadd.f32 0.0, %v4706
      %4708 = vmatmul.bf16.gmra.mxu0 %v4473
      %v4709 = vpop.f32.mrf.mxu0
      %v4710 = vadd.f32 0.0, %v4709
      %v4711 = vpop.f32.mrf.mxu0
      %v4712 = vadd.f32 0.0, %v4711
      %4713 = vmatmul.bf16.gmra.mxu0 %v4477
      %v4714 = vpop.f32.mrf.mxu0
      %v4715 = vadd.f32 0.0, %v4714
      %v4716 = vpop.f32.mrf.mxu0
      %v4717 = vadd.f32 0.0, %v4716
      %4718 = vmatmul.bf16.gmra.mxu0 %v4481
      %v4719 = vpop.f32.mrf.mxu0
      %v4720 = vadd.f32 0.0, %v4719
      %v4721 = vpop.f32.mrf.mxu0
      %v4722 = vadd.f32 0.0, %v4721
      %4723 = vmatmul.bf16.gmra.mxu0 %v4485
      %v4724 = vpop.f32.mrf.mxu0
      %v4725 = vadd.f32 0.0, %v4724
      %v4726 = vpop.f32.mrf.mxu0
      %v4727 = vadd.f32 0.0, %v4726
      %4728 = vmatmul.bf16.gmra.mxu0 %v4489
      %v4729 = vpop.f32.mrf.mxu0
      %v4730 = vadd.f32 0.0, %v4729
      %v4731 = vpop.f32.mrf.mxu0
      %v4732 = vadd.f32 0.0, %v4731
      %4733 = vdwg.mxu0
      %4734 = vmatpush.bf16.msra.mxu0 %v4636
      %4735 = vmatpush.bf16.msra.mxu0 %v4635
      %4736 = vmatpush.bf16.msra.mxu0 %v4634
      %4737 = vmatpush.bf16.msra.mxu0 %v4633
      %4738 = vmatpush.bf16.msra.mxu0 %v4632
      %4739 = vmatpush.bf16.msra.mxu0 %v4631
      %4740 = vmatpush.bf16.msra.mxu0 %v4630
      %4741 = vmatpush.bf16.msra.mxu0 %v4629
      %4742 = vmatmul.bf16.gmra.mxu0 %v4462
      %v4743 = vpop.f32.mrf.mxu0
      %v4744 = vadd.f32 %v4695, %v4743
      %v4745 = vpop.f32.mrf.mxu0
      %v4746 = vadd.f32 %v4697, %v4745
      %4747 = vmatmul.bf16.gmra.mxu0 %v4466
      %v4748 = vpop.f32.mrf.mxu0
      %v4749 = vadd.f32 %v4700, %v4748
      %v4750 = vpop.f32.mrf.mxu0
      %v4751 = vadd.f32 %v4702, %v4750
      %4752 = vmatmul.bf16.gmra.mxu0 %v4470
      %v4753 = vpop.f32.mrf.mxu0
      %v4754 = vadd.f32 %v4705, %v4753
      %v4755 = vpop.f32.mrf.mxu0
      %v4756 = vadd.f32 %v4707, %v4755
      %4757 = vmatmul.bf16.gmra.mxu0 %v4474
      %v4758 = vpop.f32.mrf.mxu0
      %v4759 = vadd.f32 %v4710, %v4758
      %v4760 = vpop.f32.mrf.mxu0
      %v4761 = vadd.f32 %v4712, %v4760
      %4762 = vmatmul.bf16.gmra.mxu0 %v4478
      %v4763 = vpop.f32.mrf.mxu0
      %v4764 = vadd.f32 %v4715, %v4763
      %v4765 = vpop.f32.mrf.mxu0
      %v4766 = vadd.f32 %v4717, %v4765
      %4767 = vmatmul.bf16.gmra.mxu0 %v4482
      %v4768 = vpop.f32.mrf.mxu0
      %v4769 = vadd.f32 %v4720, %v4768
      %v4770 = vpop.f32.mrf.mxu0
      %v4771 = vadd.f32 %v4722, %v4770
      %4772 = vmatmul.bf16.gmra.mxu0 %v4486
      %v4773 = vpop.f32.mrf.mxu0
      %v4774 = vadd.f32 %v4725, %v4773
      %v4775 = vpop.f32.mrf.mxu0
      %v4776 = vadd.f32 %v4727, %v4775
      %4777 = vmatmul.bf16.gmra.mxu0 %v4490
      %v4778 = vpop.f32.mrf.mxu0
      %v4779 = vadd.f32 %v4730, %v4778
      %v4780 = vpop.f32.mrf.mxu0
      %v4781 = vadd.f32 %v4732, %v4780
      %4782 = vdwg.mxu0
      %4783 = vmatpush.bf16.msra.mxu0 %v4644
      %4784 = vmatpush.bf16.msra.mxu0 %v4643
      %4785 = vmatpush.bf16.msra.mxu0 %v4642
      %4786 = vmatpush.bf16.msra.mxu0 %v4641
      %4787 = vmatpush.bf16.msra.mxu0 %v4640
      %4788 = vmatpush.bf16.msra.mxu0 %v4639
      %4789 = vmatpush.bf16.msra.mxu0 %v4638
      %4790 = vmatpush.bf16.msra.mxu0 %v4637
      %4791 = vmatmul.bf16.gmra.mxu0 %v4463
      %v4792 = vpop.f32.mrf.mxu0
      %v4793 = vadd.f32 %v4744, %v4792
      %v4794 = vpop.f32.mrf.mxu0
      %v4795 = vadd.f32 %v4746, %v4794
      %4796 = vmatmul.bf16.gmra.mxu0 %v4467
      %v4797 = vpop.f32.mrf.mxu0
      %v4798 = vadd.f32 %v4749, %v4797
      %v4799 = vpop.f32.mrf.mxu0
      %v4800 = vadd.f32 %v4751, %v4799
      %4801 = vmatmul.bf16.gmra.mxu0 %v4471
      %v4802 = vpop.f32.mrf.mxu0
      %v4803 = vadd.f32 %v4754, %v4802
      %v4804 = vpop.f32.mrf.mxu0
      %v4805 = vadd.f32 %v4756, %v4804
      %4806 = vmatmul.bf16.gmra.mxu0 %v4475
      %v4807 = vpop.f32.mrf.mxu0
      %v4808 = vadd.f32 %v4759, %v4807
      %v4809 = vpop.f32.mrf.mxu0
      %v4810 = vadd.f32 %v4761, %v4809
      %4811 = vmatmul.bf16.gmra.mxu0 %v4479
      %v4812 = vpop.f32.mrf.mxu0
      %v4813 = vadd.f32 %v4764, %v4812
      %v4814 = vpop.f32.mrf.mxu0
      %v4815 = vadd.f32 %v4766, %v4814
      %4816 = vmatmul.bf16.gmra.mxu0 %v4483
      %v4817 = vpop.f32.mrf.mxu0
      %v4818 = vadd.f32 %v4769, %v4817
      %v4819 = vpop.f32.mrf.mxu0
      %v4820 = vadd.f32 %v4771, %v4819
      %4821 = vmatmul.bf16.gmra.mxu0 %v4487
      %v4822 = vpop.f32.mrf.mxu0
      %v4823 = vadd.f32 %v4774, %v4822
      %v4824 = vpop.f32.mrf.mxu0
      %v4825 = vadd.f32 %v4776, %v4824
      %4826 = vmatmul.bf16.gmra.mxu0 %v4491
      %v4827 = vpop.f32.mrf.mxu0
      %v4828 = vadd.f32 %v4779, %v4827
      %v4829 = vpop.f32.mrf.mxu0
      %v4830 = vadd.f32 %v4781, %v4829
      %4831 = vdwg.mxu0
      %4832 = vmatpush.bf16.msra.mxu0 %v4652
      %4833 = vmatpush.bf16.msra.mxu0 %v4651
      %4834 = vmatpush.bf16.msra.mxu0 %v4650
      %4835 = vmatpush.bf16.msra.mxu0 %v4649
      %4836 = vmatpush.bf16.msra.mxu0 %v4648
      %4837 = vmatpush.bf16.msra.mxu0 %v4647
      %4838 = vmatpush.bf16.msra.mxu0 %v4646
      %4839 = vmatpush.bf16.msra.mxu0 %v4645
      %4840 = vmatmul.bf16.gmra.mxu0 %v4464
      %v4841 = vpop.f32.mrf.mxu0
      %v4842 = vadd.f32 %v4793, %v4841
      %v4843 = vpop.f32.mrf.mxu0
      %v4844 = vadd.f32 %v4795, %v4843
      %4845 = vmatmul.bf16.gmra.mxu0 %v4468
      %v4846 = vpop.f32.mrf.mxu0
      %v4847 = vadd.f32 %v4798, %v4846
      %v4848 = vpop.f32.mrf.mxu0
      %v4849 = vadd.f32 %v4800, %v4848
      %4850 = vmatmul.bf16.gmra.mxu0 %v4472
      %v4851 = vpop.f32.mrf.mxu0
      %v4852 = vadd.f32 %v4803, %v4851
      %v4853 = vpop.f32.mrf.mxu0
      %v4854 = vadd.f32 %v4805, %v4853
      %4855 = vmatmul.bf16.gmra.mxu0 %v4476
      %v4856 = vpop.f32.mrf.mxu0
      %v4857 = vadd.f32 %v4808, %v4856
      %v4858 = vpop.f32.mrf.mxu0
      %v4859 = vadd.f32 %v4810, %v4858
      %4860 = vmatmul.bf16.gmra.mxu0 %v4480
      %v4861 = vpop.f32.mrf.mxu0
      %v4862 = vadd.f32 %v4813, %v4861
      %v4863 = vpop.f32.mrf.mxu0
      %v4864 = vadd.f32 %v4815, %v4863
      %4865 = vmatmul.bf16.gmra.mxu0 %v4484
      %v4866 = vpop.f32.mrf.mxu0
      %v4867 = vadd.f32 %v4818, %v4866
      %v4868 = vpop.f32.mrf.mxu0
      %v4869 = vadd.f32 %v4820, %v4868
      %4870 = vmatmul.bf16.gmra.mxu0 %v4488
      %v4871 = vpop.f32.mrf.mxu0
      %v4872 = vadd.f32 %v4823, %v4871
      %v4873 = vpop.f32.mrf.mxu0
      %v4874 = vadd.f32 %v4825, %v4873
      %4875 = vmatmul.bf16.gmra.mxu0 %v4492
      %v4876 = vpop.f32.mrf.mxu0
      %v4877 = vadd.f32 %v4828, %v4876
      %v4878 = vpop.f32.mrf.mxu0
      %v4879 = vadd.f32 %v4830, %v4878
      %4880 = vdwg.mxu0
      %v4881 = vadd.f32 %v3896, %v4842
      %v4882 = vadd.f32 %v3898, %v4844
      %v4883 = vadd.f32 %v3901, %v4847
      %v4884 = vadd.f32 %v3903, %v4849
      %v4885 = vadd.f32 %v3906, %v4852
      %v4886 = vadd.f32 %v3908, %v4854
      %v4887 = vadd.f32 %v3911, %v4857
      %v4888 = vadd.f32 %v3913, %v4859
      %v4889 = vadd.f32 %v3916, %v4862
      %v4890 = vadd.f32 %v3918, %v4864
      %v4891 = vadd.f32 %v3921, %v4867
      %v4892 = vadd.f32 %v3923, %v4869
      %v4893 = vadd.f32 %v3926, %v4872
      %v4894 = vadd.f32 %v3928, %v4874
      %v4895 = vadd.f32 %v3931, %v4877
      %v4896 = vadd.f32 %v3933, %v4879
      %v4897 = vld [vmem:[%s9 + $0x30] sm:$0xff]
      %v4898 = vld [vmem:[%s9 + $0x38] sm:$0xff]
      %v4899 = vld [vmem:[%s9 + $0x70] sm:$0xff]
      %v4900 = vld [vmem:[%s9 + $0x78] sm:$0xff]
      %v4901 = vld [vmem:[%s9 + $0xb0] sm:$0xff]
      %v4902 = vld [vmem:[%s9 + $0xb8] sm:$0xff]
      %v4903 = vld [vmem:[%s9 + $0xf0] sm:$0xff]
      %v4904 = vld [vmem:[%s9 + $0xf8] sm:$0xff]
      %v4905 = vld [vmem:[%s9 + $0x130] sm:$0xff]
      %v4906 = vld [vmem:[%s9 + $0x138] sm:$0xff]
      %v4907 = vld [vmem:[%s9 + $0x170] sm:$0xff]
      %v4908 = vld [vmem:[%s9 + $0x178] sm:$0xff]
      %v4909 = vld [vmem:[%s9 + $0x1b0] sm:$0xff]
      %v4910 = vld [vmem:[%s9 + $0x1b8] sm:$0xff]
      %v4911 = vld [vmem:[%s9 + $0x1f0] sm:$0xff]
      %v4912 = vld [vmem:[%s9 + $0x1f8] sm:$0xff]
      %v4913 = vld [vmem:[%s9 + $0x230] sm:$0xff]
      %v4914 = vld [vmem:[%s9 + $0x238] sm:$0xff]
      %v4915 = vld [vmem:[%s9 + $0x270] sm:$0xff]
      %v4916 = vld [vmem:[%s9 + $0x278] sm:$0xff]
      %v4917 = vld [vmem:[%s9 + $0x2b0] sm:$0xff]
      %v4918 = vld [vmem:[%s9 + $0x2b8] sm:$0xff]
      %v4919 = vld [vmem:[%s9 + $0x2f0] sm:$0xff]
      %v4920 = vld [vmem:[%s9 + $0x2f8] sm:$0xff]
      %v4921 = vld [vmem:[%s9 + $0x330] sm:$0xff]
      %v4922 = vld [vmem:[%s9 + $0x338] sm:$0xff]
      %v4923 = vld [vmem:[%s9 + $0x370] sm:$0xff]
      %v4924 = vld [vmem:[%s9 + $0x378] sm:$0xff]
      %v4925 = vld [vmem:[%s9 + $0x3b0] sm:$0xff]
      %v4926 = vld [vmem:[%s9 + $0x3b8] sm:$0xff]
      %v4927 = vld [vmem:[%s9 + $0x3f0] sm:$0xff]
      %v4928 = vld [vmem:[%s9 + $0x3f8] sm:$0xff]
      %v4929 = vld [vmem:[%s10 + $0xc] sm:$0xf]
      %v4930 = vld [vmem:[%s11 + $0x300] sm:$0xf]
      %v4931 = vld [vmem:[%s11 + $0x304] sm:$0xf]
      %v4932 = vld [vmem:[%s11 + $0x308] sm:$0xf]
      %v4933 = vld [vmem:[%s11 + $0x30c] sm:$0xf]
      %v4934 = vld [vmem:[%s11 + $0x310] sm:$0xf]
      %v4935 = vld [vmem:[%s11 + $0x314] sm:$0xf]
      %v4936 = vld [vmem:[%s11 + $0x318] sm:$0xf]
      %v4937 = vld [vmem:[%s11 + $0x31c] sm:$0xf]
      %v4938 = vld [vmem:[%s11 + $0x320] sm:$0xf]
      %v4939 = vld [vmem:[%s11 + $0x324] sm:$0xf]
      %v4940 = vld [vmem:[%s11 + $0x328] sm:$0xf]
      %v4941 = vld [vmem:[%s11 + $0x32c] sm:$0xf]
      %v4942 = vld [vmem:[%s11 + $0x330] sm:$0xf]
      %v4943 = vld [vmem:[%s11 + $0x334] sm:$0xf]
      %v4944 = vld [vmem:[%s11 + $0x338] sm:$0xf]
      %v4945 = vld [vmem:[%s11 + $0x33c] sm:$0xf]
      %v4946 = vld [vmem:[%s11 + $0x340] sm:$0xf]
      %v4947 = vld [vmem:[%s11 + $0x344] sm:$0xf]
      %v4948 = vld [vmem:[%s11 + $0x348] sm:$0xf]
      %v4949 = vld [vmem:[%s11 + $0x34c] sm:$0xf]
      %v4950 = vld [vmem:[%s11 + $0x350] sm:$0xf]
      %v4951 = vld [vmem:[%s11 + $0x354] sm:$0xf]
      %v4952 = vld [vmem:[%s11 + $0x358] sm:$0xf]
      %v4953 = vld [vmem:[%s11 + $0x35c] sm:$0xf]
      %v4954 = vld [vmem:[%s11 + $0x360] sm:$0xf]
      %v4955 = vld [vmem:[%s11 + $0x364] sm:$0xf]
      %v4956 = vld [vmem:[%s11 + $0x368] sm:$0xf]
      %v4957 = vld [vmem:[%s11 + $0x36c] sm:$0xf]
      %v4958 = vld [vmem:[%s11 + $0x370] sm:$0xf]
      %v4959 = vld [vmem:[%s11 + $0x374] sm:$0xf]
      %v4960 = vld [vmem:[%s11 + $0x378] sm:$0xf]
      %v4961 = vld [vmem:[%s11 + $0x37c] sm:$0xf]
      %v4962 = vld [vmem:[%s11 + $0x380] sm:$0xf]
      %v4963 = vld [vmem:[%s11 + $0x384] sm:$0xf]
      %v4964 = vld [vmem:[%s11 + $0x388] sm:$0xf]
      %v4965 = vld [vmem:[%s11 + $0x38c] sm:$0xf]
      %v4966 = vld [vmem:[%s11 + $0x390] sm:$0xf]
      %v4967 = vld [vmem:[%s11 + $0x394] sm:$0xf]
      %v4968 = vld [vmem:[%s11 + $0x398] sm:$0xf]
      %v4969 = vld [vmem:[%s11 + $0x39c] sm:$0xf]
      %v4970 = vld [vmem:[%s11 + $0x3a0] sm:$0xf]
      %v4971 = vld [vmem:[%s11 + $0x3a4] sm:$0xf]
      %v4972 = vld [vmem:[%s11 + $0x3a8] sm:$0xf]
      %v4973 = vld [vmem:[%s11 + $0x3ac] sm:$0xf]
      %v4974 = vld [vmem:[%s11 + $0x3b0] sm:$0xf]
      %v4975 = vld [vmem:[%s11 + $0x3b4] sm:$0xf]
      %v4976 = vld [vmem:[%s11 + $0x3b8] sm:$0xf]
      %v4977 = vld [vmem:[%s11 + $0x3bc] sm:$0xf]
      %v4978 = vld [vmem:[%s11 + $0x3c0] sm:$0xf]
      %v4979 = vld [vmem:[%s11 + $0x3c4] sm:$0xf]
      %v4980 = vld [vmem:[%s11 + $0x3c8] sm:$0xf]
      %v4981 = vld [vmem:[%s11 + $0x3cc] sm:$0xf]
      %v4982 = vld [vmem:[%s11 + $0x3d0] sm:$0xf]
      %v4983 = vld [vmem:[%s11 + $0x3d4] sm:$0xf]
      %v4984 = vld [vmem:[%s11 + $0x3d8] sm:$0xf]
      %v4985 = vld [vmem:[%s11 + $0x3dc] sm:$0xf]
      %v4986 = vld [vmem:[%s11 + $0x3e0] sm:$0xf]
      %v4987 = vld [vmem:[%s11 + $0x3e4] sm:$0xf]
      %v4988 = vld [vmem:[%s11 + $0x3e8] sm:$0xf]
      %v4989 = vld [vmem:[%s11 + $0x3ec] sm:$0xf]
      %v4990 = vld [vmem:[%s11 + $0x3f0] sm:$0xf]
      %v4991 = vld [vmem:[%s11 + $0x3f4] sm:$0xf]
      %v4992 = vld [vmem:[%s11 + $0x3f8] sm:$0xf]
      %v4993 = vld [vmem:[%s11 + $0x3fc] sm:$0xf]
      %v4995 = vperm.slane %v4929, 0
      %v4996 = vperm.slane %v4929, 1
      %v4997 = vperm.slane %v4929, 2
      %v4998 = vperm.slane %v4929, 3
      %v5035 = vunpack.c.l.b16 %v4897
      %v5036 = vunpack.c.h.b16 %v4897
      %v5037 = vunpack.c.l.b16 %v4898
      %v5038 = vunpack.c.h.b16 %v4898
      %v5039 = vunpack.c.l.b16 %v4899
      %v5040 = vunpack.c.h.b16 %v4899
      %v5041 = vunpack.c.l.b16 %v4900
      %v5042 = vunpack.c.h.b16 %v4900
      %v5043 = vunpack.c.l.b16 %v4901
      %v5044 = vunpack.c.h.b16 %v4901
      %v5045 = vunpack.c.l.b16 %v4902
      %v5046 = vunpack.c.h.b16 %v4902
      %v5047 = vunpack.c.l.b16 %v4903
      %v5048 = vunpack.c.h.b16 %v4903
      %v5049 = vunpack.c.l.b16 %v4904
      %v5050 = vunpack.c.h.b16 %v4904
      %v5051 = vunpack.c.l.b16 %v4905
      %v5052 = vunpack.c.h.b16 %v4905
      %v5053 = vunpack.c.l.b16 %v4906
      %v5054 = vunpack.c.h.b16 %v4906
      %v5055 = vunpack.c.l.b16 %v4907
      %v5056 = vunpack.c.h.b16 %v4907
      %v5057 = vunpack.c.l.b16 %v4908
      %v5058 = vunpack.c.h.b16 %v4908
      %v5059 = vunpack.c.l.b16 %v4909
      %v5060 = vunpack.c.h.b16 %v4909
      %v5061 = vunpack.c.l.b16 %v4910
      %v5062 = vunpack.c.h.b16 %v4910
      %v5063 = vunpack.c.l.b16 %v4911
      %v5064 = vunpack.c.h.b16 %v4911
      %v5065 = vunpack.c.l.b16 %v4912
      %v5066 = vunpack.c.h.b16 %v4912
      %v5067 = vunpack.c.l.b16 %v4913
      %v5068 = vunpack.c.h.b16 %v4913
      %v5069 = vunpack.c.l.b16 %v4914
      %v5070 = vunpack.c.h.b16 %v4914
      %v5071 = vunpack.c.l.b16 %v4915
      %v5072 = vunpack.c.h.b16 %v4915
      %v5073 = vunpack.c.l.b16 %v4916
      %v5074 = vunpack.c.h.b16 %v4916
      %v5075 = vunpack.c.l.b16 %v4917
      %v5076 = vunpack.c.h.b16 %v4917
      %v5077 = vunpack.c.l.b16 %v4918
      %v5078 = vunpack.c.h.b16 %v4918
      %v5079 = vunpack.c.l.b16 %v4919
      %v5080 = vunpack.c.h.b16 %v4919
      %v5081 = vunpack.c.l.b16 %v4920
      %v5082 = vunpack.c.h.b16 %v4920
      %v5083 = vunpack.c.l.b16 %v4921
      %v5084 = vunpack.c.h.b16 %v4921
      %v5085 = vunpack.c.l.b16 %v4922
      %v5086 = vunpack.c.h.b16 %v4922
      %v5087 = vunpack.c.l.b16 %v4923
      %v5088 = vunpack.c.h.b16 %v4923
      %v5089 = vunpack.c.l.b16 %v4924
      %v5090 = vunpack.c.h.b16 %v4924
      %v5091 = vunpack.c.l.b16 %v4925
      %v5092 = vunpack.c.h.b16 %v4925
      %v5093 = vunpack.c.l.b16 %v4926
      %v5094 = vunpack.c.h.b16 %v4926
      %v5095 = vunpack.c.l.b16 %v4927
      %v5096 = vunpack.c.h.b16 %v4927
      %v5097 = vunpack.c.l.b16 %v4928
      %v5098 = vunpack.c.h.b16 %v4928
      %v5099 = vpack.c.b16 %v5039, %v5035
      %v5100 = vpack.c.b16 %v5040, %v5036
      %v5101 = vpack.c.b16 %v5041, %v5037
      %v5102 = vpack.c.b16 %v5042, %v5038
      %v5103 = vpack.c.b16 %v5047, %v5043
      %v5104 = vpack.c.b16 %v5048, %v5044
      %v5105 = vpack.c.b16 %v5049, %v5045
      %v5106 = vpack.c.b16 %v5050, %v5046
      %v5107 = vpack.c.b16 %v5055, %v5051
      %v5108 = vpack.c.b16 %v5056, %v5052
      %v5109 = vpack.c.b16 %v5057, %v5053
      %v5110 = vpack.c.b16 %v5058, %v5054
      %v5111 = vpack.c.b16 %v5063, %v5059
      %v5112 = vpack.c.b16 %v5064, %v5060
      %v5113 = vpack.c.b16 %v5065, %v5061
      %v5114 = vpack.c.b16 %v5066, %v5062
      %v5115 = vpack.c.b16 %v5071, %v5067
      %v5116 = vpack.c.b16 %v5072, %v5068
      %v5117 = vpack.c.b16 %v5073, %v5069
      %v5118 = vpack.c.b16 %v5074, %v5070
      %v5119 = vpack.c.b16 %v5079, %v5075
      %v5120 = vpack.c.b16 %v5080, %v5076
      %v5121 = vpack.c.b16 %v5081, %v5077
      %v5122 = vpack.c.b16 %v5082, %v5078
      %v5123 = vpack.c.b16 %v5087, %v5083
      %v5124 = vpack.c.b16 %v5088, %v5084
      %v5125 = vpack.c.b16 %v5089, %v5085
      %v5126 = vpack.c.b16 %v5090, %v5086
      %v5127 = vpack.c.b16 %v5095, %v5091
      %v5128 = vpack.c.b16 %v5096, %v5092
      %v5129 = vpack.c.b16 %v5097, %v5093
      %v5130 = vpack.c.b16 %v5098, %v5094
      %5163 = vmatpush.bf16.msra.mxu0 %v5127
      %5164 = vmatpush.bf16.msra.mxu0 %v5123
      %5165 = vmatpush.bf16.msra.mxu0 %v5119
      %5166 = vmatpush.bf16.msra.mxu0 %v5115
      %5167 = vmatpush.bf16.msra.mxu0 %v5111
      %5168 = vmatpush.bf16.msra.mxu0 %v5107
      %5169 = vmatpush.bf16.msra.mxu0 %v5103
      %5170 = vmatpush.bf16.msra.mxu0 %v5099
      %5171 = vmatmul.bf16.gmra.mxu0 %v2035
      %v5172 = vpop.f32.mrf.mxu0
      %v5173 = vadd.f32 %v4995, %v5172
      %v5174 = vpop.f32.mrf.mxu0
      %v5175 = vadd.f32 %v4995, %v5174
      %5176 = vmatmul.bf16.gmra.mxu0 %v2036
      %v5177 = vpop.f32.mrf.mxu0
      %v5178 = vadd.f32 %v4995, %v5177
      %v5179 = vpop.f32.mrf.mxu0
      %v5180 = vadd.f32 %v4995, %v5179
      %5181 = vmatmul.bf16.gmra.mxu0 %v2037
      %v5182 = vpop.f32.mrf.mxu0
      %v5183 = vadd.f32 %v4995, %v5182
      %v5184 = vpop.f32.mrf.mxu0
      %v5185 = vadd.f32 %v4995, %v5184
      %5186 = vmatmul.bf16.gmra.mxu0 %v2038
      %v5187 = vpop.f32.mrf.mxu0
      %v5188 = vadd.f32 %v4995, %v5187
      %v5189 = vpop.f32.mrf.mxu0
      %v5190 = vadd.f32 %v4995, %v5189
      %5191 = vmatmul.bf16.gmra.mxu0 %v2039
      %v5192 = vpop.f32.mrf.mxu0
      %v5193 = vadd.f32 %v4995, %v5192
      %v5194 = vpop.f32.mrf.mxu0
      %v5195 = vadd.f32 %v4995, %v5194
      %5196 = vmatmul.bf16.gmra.mxu0 %v2040
      %v5197 = vpop.f32.mrf.mxu0
      %v5198 = vadd.f32 %v4995, %v5197
      %v5199 = vpop.f32.mrf.mxu0
      %v5200 = vadd.f32 %v4995, %v5199
      %5201 = vmatmul.bf16.gmra.mxu0 %v2041
      %v5202 = vpop.f32.mrf.mxu0
      %v5203 = vadd.f32 %v4995, %v5202
      %v5204 = vpop.f32.mrf.mxu0
      %v5205 = vadd.f32 %v4995, %v5204
      %5206 = vmatmul.bf16.gmra.mxu0 %v2042
      %v5207 = vpop.f32.mrf.mxu0
      %v5208 = vadd.f32 %v4995, %v5207
      %v5209 = vpop.f32.mrf.mxu0
      %v5210 = vadd.f32 %v4995, %v5209
      %5211 = vdwg.mxu0
      %5212 = vmatpush.bf16.msra.mxu0 %v5128
      %5213 = vmatpush.bf16.msra.mxu0 %v5124
      %5214 = vmatpush.bf16.msra.mxu0 %v5120
      %5215 = vmatpush.bf16.msra.mxu0 %v5116
      %5216 = vmatpush.bf16.msra.mxu0 %v5112
      %5217 = vmatpush.bf16.msra.mxu0 %v5108
      %5218 = vmatpush.bf16.msra.mxu0 %v5104
      %5219 = vmatpush.bf16.msra.mxu0 %v5100
      %5220 = vmatmul.bf16.gmra.mxu0 %v2035
      %v5221 = vpop.f32.mrf.mxu0
      %v5222 = vadd.f32 %v4996, %v5221
      %v5223 = vpop.f32.mrf.mxu0
      %v5224 = vadd.f32 %v4996, %v5223
      %5225 = vmatmul.bf16.gmra.mxu0 %v2036
      %v5226 = vpop.f32.mrf.mxu0
      %v5227 = vadd.f32 %v4996, %v5226
      %v5228 = vpop.f32.mrf.mxu0
      %v5229 = vadd.f32 %v4996, %v5228
      %5230 = vmatmul.bf16.gmra.mxu0 %v2037
      %v5231 = vpop.f32.mrf.mxu0
      %v5232 = vadd.f32 %v4996, %v5231
      %v5233 = vpop.f32.mrf.mxu0
      %v5234 = vadd.f32 %v4996, %v5233
      %5235 = vmatmul.bf16.gmra.mxu0 %v2038
      %v5236 = vpop.f32.mrf.mxu0
      %v5237 = vadd.f32 %v4996, %v5236
      %v5238 = vpop.f32.mrf.mxu0
      %v5239 = vadd.f32 %v4996, %v5238
      %5240 = vmatmul.bf16.gmra.mxu0 %v2039
      %v5241 = vpop.f32.mrf.mxu0
      %v5242 = vadd.f32 %v4996, %v5241
      %v5243 = vpop.f32.mrf.mxu0
      %v5244 = vadd.f32 %v4996, %v5243
      %5245 = vmatmul.bf16.gmra.mxu0 %v2040
      %v5246 = vpop.f32.mrf.mxu0
      %v5247 = vadd.f32 %v4996, %v5246
      %v5248 = vpop.f32.mrf.mxu0
      %v5249 = vadd.f32 %v4996, %v5248
      %5250 = vmatmul.bf16.gmra.mxu0 %v2041
      %v5251 = vpop.f32.mrf.mxu0
      %v5252 = vadd.f32 %v4996, %v5251
      %v5253 = vpop.f32.mrf.mxu0
      %v5254 = vadd.f32 %v4996, %v5253
      %5255 = vmatmul.bf16.gmra.mxu0 %v2042
      %v5256 = vpop.f32.mrf.mxu0
      %v5257 = vadd.f32 %v4996, %v5256
      %v5258 = vpop.f32.mrf.mxu0
      %v5259 = vadd.f32 %v4996, %v5258
      %5260 = vdwg.mxu0
      %5261 = vmatpush.bf16.msra.mxu0 %v5129
      %5262 = vmatpush.bf16.msra.mxu0 %v5125
      %5263 = vmatpush.bf16.msra.mxu0 %v5121
      %5264 = vmatpush.bf16.msra.mxu0 %v5117
      %5265 = vmatpush.bf16.msra.mxu0 %v5113
      %5266 = vmatpush.bf16.msra.mxu0 %v5109
      %5267 = vmatpush.bf16.msra.mxu0 %v5105
      %5268 = vmatpush.bf16.msra.mxu0 %v5101
      %5269 = vmatmul.bf16.gmra.mxu0 %v2035
      %v5270 = vpop.f32.mrf.mxu0
      %v5271 = vadd.f32 %v4997, %v5270
      %v5272 = vpop.f32.mrf.mxu0
      %v5273 = vadd.f32 %v4997, %v5272
      %5274 = vmatmul.bf16.gmra.mxu0 %v2036
      %v5275 = vpop.f32.mrf.mxu0
      %v5276 = vadd.f32 %v4997, %v5275
      %v5277 = vpop.f32.mrf.mxu0
      %v5278 = vadd.f32 %v4997, %v5277
      %5279 = vmatmul.bf16.gmra.mxu0 %v2037
      %v5280 = vpop.f32.mrf.mxu0
      %v5281 = vadd.f32 %v4997, %v5280
      %v5282 = vpop.f32.mrf.mxu0
      %v5283 = vadd.f32 %v4997, %v5282
      %5284 = vmatmul.bf16.gmra.mxu0 %v2038
      %v5285 = vpop.f32.mrf.mxu0
      %v5286 = vadd.f32 %v4997, %v5285
      %v5287 = vpop.f32.mrf.mxu0
      %v5288 = vadd.f32 %v4997, %v5287
      %5289 = vmatmul.bf16.gmra.mxu0 %v2039
      %v5290 = vpop.f32.mrf.mxu0
      %v5291 = vadd.f32 %v4997, %v5290
      %v5292 = vpop.f32.mrf.mxu0
      %v5293 = vadd.f32 %v4997, %v5292
      %5294 = vmatmul.bf16.gmra.mxu0 %v2040
      %v5295 = vpop.f32.mrf.mxu0
      %v5296 = vadd.f32 %v4997, %v5295
      %v5297 = vpop.f32.mrf.mxu0
      %v5298 = vadd.f32 %v4997, %v5297
      %5299 = vmatmul.bf16.gmra.mxu0 %v2041
      %v5300 = vpop.f32.mrf.mxu0
      %v5301 = vadd.f32 %v4997, %v5300
      %v5302 = vpop.f32.mrf.mxu0
      %v5303 = vadd.f32 %v4997, %v5302
      %5304 = vmatmul.bf16.gmra.mxu0 %v2042
      %v5305 = vpop.f32.mrf.mxu0
      %v5306 = vadd.f32 %v4997, %v5305
      %v5307 = vpop.f32.mrf.mxu0
      %v5308 = vadd.f32 %v4997, %v5307
      %5309 = vdwg.mxu0
      %5310 = vmatpush.bf16.msra.mxu0 %v5130
      %5311 = vmatpush.bf16.msra.mxu0 %v5126
      %5312 = vmatpush.bf16.msra.mxu0 %v5122
      %5313 = vmatpush.bf16.msra.mxu0 %v5118
      %5314 = vmatpush.bf16.msra.mxu0 %v5114
      %5315 = vmatpush.bf16.msra.mxu0 %v5110
      %5316 = vmatpush.bf16.msra.mxu0 %v5106
      %5317 = vmatpush.bf16.msra.mxu0 %v5102
      %5318 = vmatmul.bf16.gmra.mxu0 %v2035
      %v5319 = vpop.f32.mrf.mxu0
      %v5320 = vadd.f32 %v4998, %v5319
      %v5321 = vpop.f32.mrf.mxu0
      %v5322 = vadd.f32 %v4998, %v5321
      %5323 = vmatmul.bf16.gmra.mxu0 %v2036
      %v5324 = vpop.f32.mrf.mxu0
      %v5325 = vadd.f32 %v4998, %v5324
      %v5326 = vpop.f32.mrf.mxu0
      %v5327 = vadd.f32 %v4998, %v5326
      %5328 = vmatmul.bf16.gmra.mxu0 %v2037
      %v5329 = vpop.f32.mrf.mxu0
      %v5330 = vadd.f32 %v4998, %v5329
      %v5331 = vpop.f32.mrf.mxu0
      %v5332 = vadd.f32 %v4998, %v5331
      %5333 = vmatmul.bf16.gmra.mxu0 %v2038
      %v5334 = vpop.f32.mrf.mxu0
      %v5335 = vadd.f32 %v4998, %v5334
      %v5336 = vpop.f32.mrf.mxu0
      %v5337 = vadd.f32 %v4998, %v5336
      %5338 = vmatmul.bf16.gmra.mxu0 %v2039
      %v5339 = vpop.f32.mrf.mxu0
      %v5340 = vadd.f32 %v4998, %v5339
      %v5341 = vpop.f32.mrf.mxu0
      %v5342 = vadd.f32 %v4998, %v5341
      %5343 = vmatmul.bf16.gmra.mxu0 %v2040
      %v5344 = vpop.f32.mrf.mxu0
      %v5345 = vadd.f32 %v4998, %v5344
      %v5346 = vpop.f32.mrf.mxu0
      %v5347 = vadd.f32 %v4998, %v5346
      %5348 = vmatmul.bf16.gmra.mxu0 %v2041
      %v5349 = vpop.f32.mrf.mxu0
      %v5350 = vadd.f32 %v4998, %v5349
      %v5351 = vpop.f32.mrf.mxu0
      %v5352 = vadd.f32 %v4998, %v5351
      %5353 = vmatmul.bf16.gmra.mxu0 %v2042
      %v5354 = vpop.f32.mrf.mxu0
      %v5355 = vadd.f32 %v4998, %v5354
      %v5356 = vpop.f32.mrf.mxu0
      %v5357 = vadd.f32 %v4998, %v5356
      %5358 = vdwg.mxu0
      %v5359 = vmax.f32 %v5173, 0.0
      %v5360 = vmax.f32 %v5222, 0.0
      %v5361 = vmax.f32 %v5271, 0.0
      %v5362 = vmax.f32 %v5320, 0.0
      %v5363 = vmax.f32 %v5175, 0.0
      %v5364 = vmax.f32 %v5224, 0.0
      %v5365 = vmax.f32 %v5273, 0.0
      %v5366 = vmax.f32 %v5322, 0.0
      %v5367 = vmax.f32 %v5178, 0.0
      %v5368 = vmax.f32 %v5227, 0.0
      %v5369 = vmax.f32 %v5276, 0.0
      %v5370 = vmax.f32 %v5325, 0.0
      %v5371 = vmax.f32 %v5180, 0.0
      %v5372 = vmax.f32 %v5229, 0.0
      %v5373 = vmax.f32 %v5278, 0.0
      %v5374 = vmax.f32 %v5327, 0.0
      %v5375 = vmax.f32 %v5183, 0.0
      %v5376 = vmax.f32 %v5232, 0.0
      %v5377 = vmax.f32 %v5281, 0.0
      %v5378 = vmax.f32 %v5330, 0.0
      %v5379 = vmax.f32 %v5185, 0.0
      %v5380 = vmax.f32 %v5234, 0.0
      %v5381 = vmax.f32 %v5283, 0.0
      %v5382 = vmax.f32 %v5332, 0.0
      %v5383 = vmax.f32 %v5188, 0.0
      %v5384 = vmax.f32 %v5237, 0.0
      %v5385 = vmax.f32 %v5286, 0.0
      %v5386 = vmax.f32 %v5335, 0.0
      %v5387 = vmax.f32 %v5190, 0.0
      %v5388 = vmax.f32 %v5239, 0.0
      %v5389 = vmax.f32 %v5288, 0.0
      %v5390 = vmax.f32 %v5337, 0.0
      %v5391 = vmax.f32 %v5193, 0.0
      %v5392 = vmax.f32 %v5242, 0.0
      %v5393 = vmax.f32 %v5291, 0.0
      %v5394 = vmax.f32 %v5340, 0.0
      %v5395 = vmax.f32 %v5195, 0.0
      %v5396 = vmax.f32 %v5244, 0.0
      %v5397 = vmax.f32 %v5293, 0.0
      %v5398 = vmax.f32 %v5342, 0.0
      %v5399 = vmax.f32 %v5198, 0.0
      %v5400 = vmax.f32 %v5247, 0.0
      %v5401 = vmax.f32 %v5296, 0.0
      %v5402 = vmax.f32 %v5345, 0.0
      %v5403 = vmax.f32 %v5200, 0.0
      %v5404 = vmax.f32 %v5249, 0.0
      %v5405 = vmax.f32 %v5298, 0.0
      %v5406 = vmax.f32 %v5347, 0.0
      %v5407 = vmax.f32 %v5203, 0.0
      %v5408 = vmax.f32 %v5252, 0.0
      %v5409 = vmax.f32 %v5301, 0.0
      %v5410 = vmax.f32 %v5350, 0.0
      %v5411 = vmax.f32 %v5205, 0.0
      %v5412 = vmax.f32 %v5254, 0.0
      %v5413 = vmax.f32 %v5303, 0.0
      %v5414 = vmax.f32 %v5352, 0.0
      %v5415 = vmax.f32 %v5208, 0.0
      %v5416 = vmax.f32 %v5257, 0.0
      %v5417 = vmax.f32 %v5306, 0.0
      %v5418 = vmax.f32 %v5355, 0.0
      %v5419 = vmax.f32 %v5210, 0.0
      %v5420 = vmax.f32 %v5259, 0.0
      %v5421 = vmax.f32 %v5308, 0.0
      %v5422 = vmax.f32 %v5357, 0.0
      %v5423 = vpack.c.bf16 %v5363, %v5359
      %v5424 = vpack.c.bf16 %v5364, %v5360
      %v5425 = vpack.c.bf16 %v5365, %v5361
      %v5426 = vpack.c.bf16 %v5366, %v5362
      %v5427 = vpack.c.bf16 %v5371, %v5367
      %v5428 = vpack.c.bf16 %v5372, %v5368
      %v5429 = vpack.c.bf16 %v5373, %v5369
      %v5430 = vpack.c.bf16 %v5374, %v5370
      %v5431 = vpack.c.bf16 %v5379, %v5375
      %v5432 = vpack.c.bf16 %v5380, %v5376
      %v5433 = vpack.c.bf16 %v5381, %v5377
      %v5434 = vpack.c.bf16 %v5382, %v5378
      %v5435 = vpack.c.bf16 %v5387, %v5383
      %v5436 = vpack.c.bf16 %v5388, %v5384
      %v5437 = vpack.c.bf16 %v5389, %v5385
      %v5438 = vpack.c.bf16 %v5390, %v5386
      %v5439 = vpack.c.bf16 %v5395, %v5391
      %v5440 = vpack.c.bf16 %v5396, %v5392
      %v5441 = vpack.c.bf16 %v5397, %v5393
      %v5442 = vpack.c.bf16 %v5398, %v5394
      %v5443 = vpack.c.bf16 %v5403, %v5399
      %v5444 = vpack.c.bf16 %v5404, %v5400
      %v5445 = vpack.c.bf16 %v5405, %v5401
      %v5446 = vpack.c.bf16 %v5406, %v5402
      %v5447 = vpack.c.bf16 %v5411, %v5407
      %v5448 = vpack.c.bf16 %v5412, %v5408
      %v5449 = vpack.c.bf16 %v5413, %v5409
      %v5450 = vpack.c.bf16 %v5414, %v5410
      %v5451 = vpack.c.bf16 %v5419, %v5415
      %v5452 = vpack.c.bf16 %v5420, %v5416
      %v5453 = vpack.c.bf16 %v5421, %v5417
      %v5454 = vpack.c.bf16 %v5422, %v5418
      %v5519 = vunpack.c.l.b16 %v4930
      %v5520 = vunpack.c.l.b16 %v4931
      %v5521 = vunpack.c.l.b16 %v4932
      %v5522 = vunpack.c.l.b16 %v4933
      %v5523 = vunpack.c.l.b16 %v4934
      %v5524 = vunpack.c.l.b16 %v4935
      %v5525 = vunpack.c.l.b16 %v4936
      %v5526 = vunpack.c.l.b16 %v4937
      %v5527 = vunpack.c.l.b16 %v4938
      %v5528 = vunpack.c.l.b16 %v4939
      %v5529 = vunpack.c.l.b16 %v4940
      %v5530 = vunpack.c.l.b16 %v4941
      %v5531 = vunpack.c.l.b16 %v4942
      %v5532 = vunpack.c.l.b16 %v4943
      %v5533 = vunpack.c.l.b16 %v4944
      %v5534 = vunpack.c.l.b16 %v4945
      %v5535 = vunpack.c.l.b16 %v4946
      %v5536 = vunpack.c.l.b16 %v4947
      %v5537 = vunpack.c.l.b16 %v4948
      %v5538 = vunpack.c.l.b16 %v4949
      %v5539 = vunpack.c.l.b16 %v4950
      %v5540 = vunpack.c.l.b16 %v4951
      %v5541 = vunpack.c.l.b16 %v4952
      %v5542 = vunpack.c.l.b16 %v4953
      %v5543 = vunpack.c.l.b16 %v4954
      %v5544 = vunpack.c.l.b16 %v4955
      %v5545 = vunpack.c.l.b16 %v4956
      %v5546 = vunpack.c.l.b16 %v4957
      %v5547 = vunpack.c.l.b16 %v4958
      %v5548 = vunpack.c.l.b16 %v4959
      %v5549 = vunpack.c.l.b16 %v4960
      %v5550 = vunpack.c.l.b16 %v4961
      %v5551 = vunpack.c.l.b16 %v4962
      %v5552 = vunpack.c.l.b16 %v4963
      %v5553 = vunpack.c.l.b16 %v4964
      %v5554 = vunpack.c.l.b16 %v4965
      %v5555 = vunpack.c.l.b16 %v4966
      %v5556 = vunpack.c.l.b16 %v4967
      %v5557 = vunpack.c.l.b16 %v4968
      %v5558 = vunpack.c.l.b16 %v4969
      %v5559 = vunpack.c.l.b16 %v4970
      %v5560 = vunpack.c.l.b16 %v4971
      %v5561 = vunpack.c.l.b16 %v4972
      %v5562 = vunpack.c.l.b16 %v4973
      %v5563 = vunpack.c.l.b16 %v4974
      %v5564 = vunpack.c.l.b16 %v4975
      %v5565 = vunpack.c.l.b16 %v4976
      %v5566 = vunpack.c.l.b16 %v4977
      %v5567 = vunpack.c.l.b16 %v4978
      %v5568 = vunpack.c.l.b16 %v4979
      %v5569 = vunpack.c.l.b16 %v4980
      %v5570 = vunpack.c.l.b16 %v4981
      %v5571 = vunpack.c.l.b16 %v4982
      %v5572 = vunpack.c.l.b16 %v4983
      %v5573 = vunpack.c.l.b16 %v4984
      %v5574 = vunpack.c.l.b16 %v4985
      %v5575 = vunpack.c.l.b16 %v4986
      %v5576 = vunpack.c.l.b16 %v4987
      %v5577 = vunpack.c.l.b16 %v4988
      %v5578 = vunpack.c.l.b16 %v4989
      %v5579 = vunpack.c.l.b16 %v4990
      %v5580 = vunpack.c.l.b16 %v4991
      %v5581 = vunpack.c.l.b16 %v4992
      %v5582 = vunpack.c.l.b16 %v4993
      %v5583 = vpack.c.b16 %v5520, %v5519
      %v5584 = vpack.c.b16 %v5522, %v5521
      %v5585 = vpack.c.b16 %v5524, %v5523
      %v5586 = vpack.c.b16 %v5526, %v5525
      %v5587 = vpack.c.b16 %v5528, %v5527
      %v5588 = vpack.c.b16 %v5530, %v5529
      %v5589 = vpack.c.b16 %v5532, %v5531
      %v5590 = vpack.c.b16 %v5534, %v5533
      %v5591 = vpack.c.b16 %v5536, %v5535
      %v5592 = vpack.c.b16 %v5538, %v5537
      %v5593 = vpack.c.b16 %v5540, %v5539
      %v5594 = vpack.c.b16 %v5542, %v5541
      %v5595 = vpack.c.b16 %v5544, %v5543
      %v5596 = vpack.c.b16 %v5546, %v5545
      %v5597 = vpack.c.b16 %v5548, %v5547
      %v5598 = vpack.c.b16 %v5550, %v5549
      %v5599 = vpack.c.b16 %v5552, %v5551
      %v5600 = vpack.c.b16 %v5554, %v5553
      %v5601 = vpack.c.b16 %v5556, %v5555
      %v5602 = vpack.c.b16 %v5558, %v5557
      %v5603 = vpack.c.b16 %v5560, %v5559
      %v5604 = vpack.c.b16 %v5562, %v5561
      %v5605 = vpack.c.b16 %v5564, %v5563
      %v5606 = vpack.c.b16 %v5566, %v5565
      %v5607 = vpack.c.b16 %v5568, %v5567
      %v5608 = vpack.c.b16 %v5570, %v5569
      %v5609 = vpack.c.b16 %v5572, %v5571
      %v5610 = vpack.c.b16 %v5574, %v5573
      %v5611 = vpack.c.b16 %v5576, %v5575
      %v5612 = vpack.c.b16 %v5578, %v5577
      %v5613 = vpack.c.b16 %v5580, %v5579
      %v5614 = vpack.c.b16 %v5582, %v5581
      %5647 = vmatpush.bf16.msra.mxu0 %v5590
      %5648 = vmatpush.bf16.msra.mxu0 %v5589
      %5649 = vmatpush.bf16.msra.mxu0 %v5588
      %5650 = vmatpush.bf16.msra.mxu0 %v5587
      %5651 = vmatpush.bf16.msra.mxu0 %v5586
      %5652 = vmatpush.bf16.msra.mxu0 %v5585
      %5653 = vmatpush.bf16.msra.mxu0 %v5584
      %5654 = vmatpush.bf16.msra.mxu0 %v5583
      %5655 = vmatmul.bf16.gmra.mxu0 %v5423
      %v5656 = vpop.f32.mrf.mxu0
      %v5657 = vadd.f32 0.0, %v5656
      %v5658 = vpop.f32.mrf.mxu0
      %v5659 = vadd.f32 0.0, %v5658
      %5660 = vmatmul.bf16.gmra.mxu0 %v5427
      %v5661 = vpop.f32.mrf.mxu0
      %v5662 = vadd.f32 0.0, %v5661
      %v5663 = vpop.f32.mrf.mxu0
      %v5664 = vadd.f32 0.0, %v5663
      %5665 = vmatmul.bf16.gmra.mxu0 %v5431
      %v5666 = vpop.f32.mrf.mxu0
      %v5667 = vadd.f32 0.0, %v5666
      %v5668 = vpop.f32.mrf.mxu0
      %v5669 = vadd.f32 0.0, %v5668
      %5670 = vmatmul.bf16.gmra.mxu0 %v5435
      %v5671 = vpop.f32.mrf.mxu0
      %v5672 = vadd.f32 0.0, %v5671
      %v5673 = vpop.f32.mrf.mxu0
      %v5674 = vadd.f32 0.0, %v5673
      %5675 = vmatmul.bf16.gmra.mxu0 %v5439
      %v5676 = vpop.f32.mrf.mxu0
      %v5677 = vadd.f32 0.0, %v5676
      %v5678 = vpop.f32.mrf.mxu0
      %v5679 = vadd.f32 0.0, %v5678
      %5680 = vmatmul.bf16.gmra.mxu0 %v5443
      %v5681 = vpop.f32.mrf.mxu0
      %v5682 = vadd.f32 0.0, %v5681
      %v5683 = vpop.f32.mrf.mxu0
      %v5684 = vadd.f32 0.0, %v5683
      %5685 = vmatmul.bf16.gmra.mxu0 %v5447
      %v5686 = vpop.f32.mrf.mxu0
      %v5687 = vadd.f32 0.0, %v5686
      %v5688 = vpop.f32.mrf.mxu0
      %v5689 = vadd.f32 0.0, %v5688
      %5690 = vmatmul.bf16.gmra.mxu0 %v5451
      %v5691 = vpop.f32.mrf.mxu0
      %v5692 = vadd.f32 0.0, %v5691
      %v5693 = vpop.f32.mrf.mxu0
      %v5694 = vadd.f32 0.0, %v5693
      %5695 = vdwg.mxu0
      %5696 = vmatpush.bf16.msra.mxu0 %v5598
      %5697 = vmatpush.bf16.msra.mxu0 %v5597
      %5698 = vmatpush.bf16.msra.mxu0 %v5596
      %5699 = vmatpush.bf16.msra.mxu0 %v5595
      %5700 = vmatpush.bf16.msra.mxu0 %v5594
      %5701 = vmatpush.bf16.msra.mxu0 %v5593
      %5702 = vmatpush.bf16.msra.mxu0 %v5592
      %5703 = vmatpush.bf16.msra.mxu0 %v5591
      %5704 = vmatmul.bf16.gmra.mxu0 %v5424
      %v5705 = vpop.f32.mrf.mxu0
      %v5706 = vadd.f32 %v5657, %v5705
      %v5707 = vpop.f32.mrf.mxu0
      %v5708 = vadd.f32 %v5659, %v5707
      %5709 = vmatmul.bf16.gmra.mxu0 %v5428
      %v5710 = vpop.f32.mrf.mxu0
      %v5711 = vadd.f32 %v5662, %v5710
      %v5712 = vpop.f32.mrf.mxu0
      %v5713 = vadd.f32 %v5664, %v5712
      %5714 = vmatmul.bf16.gmra.mxu0 %v5432
      %v5715 = vpop.f32.mrf.mxu0
      %v5716 = vadd.f32 %v5667, %v5715
      %v5717 = vpop.f32.mrf.mxu0
      %v5718 = vadd.f32 %v5669, %v5717
      %5719 = vmatmul.bf16.gmra.mxu0 %v5436
      %v5720 = vpop.f32.mrf.mxu0
      %v5721 = vadd.f32 %v5672, %v5720
      %v5722 = vpop.f32.mrf.mxu0
      %v5723 = vadd.f32 %v5674, %v5722
      %5724 = vmatmul.bf16.gmra.mxu0 %v5440
      %v5725 = vpop.f32.mrf.mxu0
      %v5726 = vadd.f32 %v5677, %v5725
      %v5727 = vpop.f32.mrf.mxu0
      %v5728 = vadd.f32 %v5679, %v5727
      %5729 = vmatmul.bf16.gmra.mxu0 %v5444
      %v5730 = vpop.f32.mrf.mxu0
      %v5731 = vadd.f32 %v5682, %v5730
      %v5732 = vpop.f32.mrf.mxu0
      %v5733 = vadd.f32 %v5684, %v5732
      %5734 = vmatmul.bf16.gmra.mxu0 %v5448
      %v5735 = vpop.f32.mrf.mxu0
      %v5736 = vadd.f32 %v5687, %v5735
      %v5737 = vpop.f32.mrf.mxu0
      %v5738 = vadd.f32 %v5689, %v5737
      %5739 = vmatmul.bf16.gmra.mxu0 %v5452
      %v5740 = vpop.f32.mrf.mxu0
      %v5741 = vadd.f32 %v5692, %v5740
      %v5742 = vpop.f32.mrf.mxu0
      %v5743 = vadd.f32 %v5694, %v5742
      %5744 = vdwg.mxu0
      %5745 = vmatpush.bf16.msra.mxu0 %v5606
      %5746 = vmatpush.bf16.msra.mxu0 %v5605
      %5747 = vmatpush.bf16.msra.mxu0 %v5604
      %5748 = vmatpush.bf16.msra.mxu0 %v5603
      %5749 = vmatpush.bf16.msra.mxu0 %v5602
      %5750 = vmatpush.bf16.msra.mxu0 %v5601
      %5751 = vmatpush.bf16.msra.mxu0 %v5600
      %5752 = vmatpush.bf16.msra.mxu0 %v5599
      %5753 = vmatmul.bf16.gmra.mxu0 %v5425
      %v5754 = vpop.f32.mrf.mxu0
      %v5755 = vadd.f32 %v5706, %v5754
      %v5756 = vpop.f32.mrf.mxu0
      %v5757 = vadd.f32 %v5708, %v5756
      %5758 = vmatmul.bf16.gmra.mxu0 %v5429
      %v5759 = vpop.f32.mrf.mxu0
      %v5760 = vadd.f32 %v5711, %v5759
      %v5761 = vpop.f32.mrf.mxu0
      %v5762 = vadd.f32 %v5713, %v5761
      %5763 = vmatmul.bf16.gmra.mxu0 %v5433
      %v5764 = vpop.f32.mrf.mxu0
      %v5765 = vadd.f32 %v5716, %v5764
      %v5766 = vpop.f32.mrf.mxu0
      %v5767 = vadd.f32 %v5718, %v5766
      %5768 = vmatmul.bf16.gmra.mxu0 %v5437
      %v5769 = vpop.f32.mrf.mxu0
      %v5770 = vadd.f32 %v5721, %v5769
      %v5771 = vpop.f32.mrf.mxu0
      %v5772 = vadd.f32 %v5723, %v5771
      %5773 = vmatmul.bf16.gmra.mxu0 %v5441
      %v5774 = vpop.f32.mrf.mxu0
      %v5775 = vadd.f32 %v5726, %v5774
      %v5776 = vpop.f32.mrf.mxu0
      %v5777 = vadd.f32 %v5728, %v5776
      %5778 = vmatmul.bf16.gmra.mxu0 %v5445
      %v5779 = vpop.f32.mrf.mxu0
      %v5780 = vadd.f32 %v5731, %v5779
      %v5781 = vpop.f32.mrf.mxu0
      %v5782 = vadd.f32 %v5733, %v5781
      %5783 = vmatmul.bf16.gmra.mxu0 %v5449
      %v5784 = vpop.f32.mrf.mxu0
      %v5785 = vadd.f32 %v5736, %v5784
      %v5786 = vpop.f32.mrf.mxu0
      %v5787 = vadd.f32 %v5738, %v5786
      %5788 = vmatmul.bf16.gmra.mxu0 %v5453
      %v5789 = vpop.f32.mrf.mxu0
      %v5790 = vadd.f32 %v5741, %v5789
      %v5791 = vpop.f32.mrf.mxu0
      %v5792 = vadd.f32 %v5743, %v5791
      %5793 = vdwg.mxu0
      %5794 = vmatpush.bf16.msra.mxu0 %v5614
      %5795 = vmatpush.bf16.msra.mxu0 %v5613
      %5796 = vmatpush.bf16.msra.mxu0 %v5612
      %5797 = vmatpush.bf16.msra.mxu0 %v5611
      %5798 = vmatpush.bf16.msra.mxu0 %v5610
      %5799 = vmatpush.bf16.msra.mxu0 %v5609
      %5800 = vmatpush.bf16.msra.mxu0 %v5608
      %5801 = vmatpush.bf16.msra.mxu0 %v5607
      %5802 = vmatmul.bf16.gmra.mxu0 %v5426
      %v5803 = vpop.f32.mrf.mxu0
      %v5804 = vadd.f32 %v5755, %v5803
      %v5805 = vpop.f32.mrf.mxu0
      %v5806 = vadd.f32 %v5757, %v5805
      %5807 = vmatmul.bf16.gmra.mxu0 %v5430
      %v5808 = vpop.f32.mrf.mxu0
      %v5809 = vadd.f32 %v5760, %v5808
      %v5810 = vpop.f32.mrf.mxu0
      %v5811 = vadd.f32 %v5762, %v5810
      %5812 = vmatmul.bf16.gmra.mxu0 %v5434
      %v5813 = vpop.f32.mrf.mxu0
      %v5814 = vadd.f32 %v5765, %v5813
      %v5815 = vpop.f32.mrf.mxu0
      %v5816 = vadd.f32 %v5767, %v5815
      %5817 = vmatmul.bf16.gmra.mxu0 %v5438
      %v5818 = vpop.f32.mrf.mxu0
      %v5819 = vadd.f32 %v5770, %v5818
      %v5820 = vpop.f32.mrf.mxu0
      %v5821 = vadd.f32 %v5772, %v5820
      %5822 = vmatmul.bf16.gmra.mxu0 %v5442
      %v5823 = vpop.f32.mrf.mxu0
      %v5824 = vadd.f32 %v5775, %v5823
      %v5825 = vpop.f32.mrf.mxu0
      %v5826 = vadd.f32 %v5777, %v5825
      %5827 = vmatmul.bf16.gmra.mxu0 %v5446
      %v5828 = vpop.f32.mrf.mxu0
      %v5829 = vadd.f32 %v5780, %v5828
      %v5830 = vpop.f32.mrf.mxu0
      %v5831 = vadd.f32 %v5782, %v5830
      %5832 = vmatmul.bf16.gmra.mxu0 %v5450
      %v5833 = vpop.f32.mrf.mxu0
      %v5834 = vadd.f32 %v5785, %v5833
      %v5835 = vpop.f32.mrf.mxu0
      %v5836 = vadd.f32 %v5787, %v5835
      %5837 = vmatmul.bf16.gmra.mxu0 %v5454
      %v5838 = vpop.f32.mrf.mxu0
      %v5839 = vadd.f32 %v5790, %v5838
      %v5840 = vpop.f32.mrf.mxu0
      %v5841 = vadd.f32 %v5792, %v5840
      %5842 = vdwg.mxu0
      %v5843 = vadd.f32 %v4881, %v5804
      %v5844 = vadd.f32 %v4882, %v5806
      %v5845 = vadd.f32 %v4883, %v5809
      %v5846 = vadd.f32 %v4884, %v5811
      %v5847 = vadd.f32 %v4885, %v5814
      %v5848 = vadd.f32 %v4886, %v5816
      %v5849 = vadd.f32 %v4887, %v5819
      %v5850 = vadd.f32 %v4888, %v5821
      %v5851 = vadd.f32 %v4889, %v5824
      %v5852 = vadd.f32 %v4890, %v5826
      %v5853 = vadd.f32 %v4891, %v5829
      %v5854 = vadd.f32 %v4892, %v5831
      %v5855 = vadd.f32 %v4893, %v5834
      %v5856 = vadd.f32 %v4894, %v5836
      %v5857 = vadd.f32 %v4895, %v5839
      %v5858 = vadd.f32 %v4896, %v5841
      %v5859 = vld [vmem:[%s12] sm:$0x1]
      %v5861 = vperm.slane %v5859, 0
      %v5863 = vadd.f32 %v5843, %v5861
      %v5864 = vadd.f32 %v5844, %v5861
      %v5865 = vadd.f32 %v5845, %v5861
      %v5866 = vadd.f32 %v5846, %v5861
      %v5867 = vadd.f32 %v5847, %v5861
      %v5868 = vadd.f32 %v5848, %v5861
      %v5869 = vadd.f32 %v5849, %v5861
      %v5870 = vadd.f32 %v5850, %v5861
      %v5871 = vadd.f32 %v5851, %v5861
      %v5872 = vadd.f32 %v5852, %v5861
      %v5873 = vadd.f32 %v5853, %v5861
      %v5874 = vadd.f32 %v5854, %v5861
      %v5875 = vadd.f32 %v5855, %v5861
      %v5876 = vadd.f32 %v5856, %v5861
      %v5877 = vadd.f32 %v5857, %v5861
      %v5878 = vadd.f32 %v5858, %v5861
      %v5879 = vadd.f32 %v2019, %v5863
      %v5880 = vadd.f32 %v2020, %v5864
      %v5881 = vadd.f32 %v2021, %v5865
      %v5882 = vadd.f32 %v2022, %v5866
      %v5883 = vadd.f32 %v2023, %v5867
      %v5884 = vadd.f32 %v2024, %v5868
      %v5885 = vadd.f32 %v2025, %v5869
      %v5886 = vadd.f32 %v2026, %v5870
      %v5887 = vadd.f32 %v2027, %v5871
      %v5888 = vadd.f32 %v2028, %v5872
      %v5889 = vadd.f32 %v2029, %v5873
      %v5890 = vadd.f32 %v2030, %v5874
      %v5891 = vadd.f32 %v2031, %v5875
      %v5892 = vadd.f32 %v2032, %v5876
      %v5893 = vadd.f32 %v2033, %v5877
      %v5894 = vadd.f32 %v2034, %v5878
      %v5895 = vld [vmem:[%s13] sm:$0x1]
      %v5896 = vld [vmem:[%s14] sm:$0x1]
      %5897 = vadd.xlane.f32.xlu0 %v5879
      %v5898 = vpop.xlane.xlu0 %5897
      %5899 = vadd.xlane.f32.xlu0 %v5880
      %v5900 = vpop.xlane.xlu0 %5899
      %5901 = vadd.xlane.f32.xlu0 %v5881
      %v5902 = vpop.xlane.xlu0 %5901
      %5903 = vadd.xlane.f32.xlu0 %v5882
      %v5904 = vpop.xlane.xlu0 %5903
      %5905 = vadd.xlane.f32.xlu0 %v5883
      %v5906 = vpop.xlane.xlu0 %5905
      %5907 = vadd.xlane.f32.xlu0 %v5884
      %v5908 = vpop.xlane.xlu0 %5907
      %5909 = vadd.xlane.f32.xlu0 %v5885
      %v5910 = vpop.xlane.xlu0 %5909
      %5911 = vadd.xlane.f32.xlu0 %v5886
      %v5912 = vpop.xlane.xlu0 %5911
      %5913 = vadd.xlane.f32.xlu0 %v5887
      %v5914 = vpop.xlane.xlu0 %5913
      %5915 = vadd.xlane.f32.xlu0 %v5888
      %v5916 = vpop.xlane.xlu0 %5915
      %5917 = vadd.xlane.f32.xlu0 %v5889
      %v5918 = vpop.xlane.xlu0 %5917
      %5919 = vadd.xlane.f32.xlu0 %v5890
      %v5920 = vpop.xlane.xlu0 %5919
      %5921 = vadd.xlane.f32.xlu0 %v5891
      %v5922 = vpop.xlane.xlu0 %5921
      %5923 = vadd.xlane.f32.xlu0 %v5892
      %v5924 = vpop.xlane.xlu0 %5923
      %5925 = vadd.xlane.f32.xlu0 %v5893
      %v5926 = vpop.xlane.xlu0 %5925
      %5927 = vadd.xlane.f32.xlu0 %v5894
      %v5928 = vpop.xlane.xlu0 %5927
      %v5929 = vmul.f32 %v5898, %v1708
      %v5930 = vmul.f32 %v5900, %v1708
      %v5931 = vmul.f32 %v5902, %v1708
      %v5932 = vmul.f32 %v5904, %v1708
      %v5933 = vmul.f32 %v5906, %v1708
      %v5934 = vmul.f32 %v5908, %v1708
      %v5935 = vmul.f32 %v5910, %v1708
      %v5936 = vmul.f32 %v5912, %v1708
      %v5937 = vmul.f32 %v5914, %v1708
      %v5938 = vmul.f32 %v5916, %v1708
      %v5939 = vmul.f32 %v5918, %v1708
      %v5940 = vmul.f32 %v5920, %v1708
      %v5941 = vmul.f32 %v5922, %v1708
      %v5942 = vmul.f32 %v5924, %v1708
      %v5943 = vmul.f32 %v5926, %v1708
      %v5944 = vmul.f32 %v5928, %v1708
      %v5945 = vsub.f32 %v5879, %v5929
      %v5946 = vsub.f32 %v5880, %v5930
      %v5947 = vsub.f32 %v5881, %v5931
      %v5948 = vsub.f32 %v5882, %v5932
      %v5949 = vsub.f32 %v5883, %v5933
      %v5950 = vsub.f32 %v5884, %v5934
      %v5951 = vsub.f32 %v5885, %v5935
      %v5952 = vsub.f32 %v5886, %v5936
      %v5953 = vsub.f32 %v5887, %v5937
      %v5954 = vsub.f32 %v5888, %v5938
      %v5955 = vsub.f32 %v5889, %v5939
      %v5956 = vsub.f32 %v5890, %v5940
      %v5957 = vsub.f32 %v5891, %v5941
      %v5958 = vsub.f32 %v5892, %v5942
      %v5959 = vsub.f32 %v5893, %v5943
      %v5960 = vsub.f32 %v5894, %v5944
      %v5961 = vmul.f32 %v5945, %v5945
      %v5962 = vmul.f32 %v5946, %v5946
      %v5963 = vmul.f32 %v5947, %v5947
      %v5964 = vmul.f32 %v5948, %v5948
      %v5965 = vmul.f32 %v5949, %v5949
      %v5966 = vmul.f32 %v5950, %v5950
      %v5967 = vmul.f32 %v5951, %v5951
      %v5968 = vmul.f32 %v5952, %v5952
      %v5969 = vmul.f32 %v5953, %v5953
      %v5970 = vmul.f32 %v5954, %v5954
      %v5971 = vmul.f32 %v5955, %v5955
      %v5972 = vmul.f32 %v5956, %v5956
      %v5973 = vmul.f32 %v5957, %v5957
      %v5974 = vmul.f32 %v5958, %v5958
      %v5975 = vmul.f32 %v5959, %v5959
      %v5976 = vmul.f32 %v5960, %v5960
      %5977 = vadd.xlane.f32.xlu0 %v5961
      %v5978 = vpop.xlane.xlu0 %5977
      %5979 = vadd.xlane.f32.xlu0 %v5962
      %v5980 = vpop.xlane.xlu0 %5979
      %5981 = vadd.xlane.f32.xlu0 %v5963
      %v5982 = vpop.xlane.xlu0 %5981
      %5983 = vadd.xlane.f32.xlu0 %v5964
      %v5984 = vpop.xlane.xlu0 %5983
      %5985 = vadd.xlane.f32.xlu0 %v5965
      %v5986 = vpop.xlane.xlu0 %5985
      %5987 = vadd.xlane.f32.xlu0 %v5966
      %v5988 = vpop.xlane.xlu0 %5987
      %5989 = vadd.xlane.f32.xlu0 %v5967
      %v5990 = vpop.xlane.xlu0 %5989
      %5991 = vadd.xlane.f32.xlu0 %v5968
      %v5992 = vpop.xlane.xlu0 %5991
      %5993 = vadd.xlane.f32.xlu0 %v5969
      %v5994 = vpop.xlane.xlu0 %5993
      %5995 = vadd.xlane.f32.xlu0 %v5970
      %v5996 = vpop.xlane.xlu0 %5995
      %5997 = vadd.xlane.f32.xlu0 %v5971
      %v5998 = vpop.xlane.xlu0 %5997
      %5999 = vadd.xlane.f32.xlu0 %v5972
      %v6000 = vpop.xlane.xlu0 %5999
      %6001 = vadd.xlane.f32.xlu0 %v5973
      %v6002 = vpop.xlane.xlu0 %6001
      %6003 = vadd.xlane.f32.xlu0 %v5974
      %v6004 = vpop.xlane.xlu0 %6003
      %6005 = vadd.xlane.f32.xlu0 %v5975
      %v6006 = vpop.xlane.xlu0 %6005
      %6007 = vadd.xlane.f32.xlu0 %v5976
      %v6008 = vpop.xlane.xlu0 %6007
      %v6009 = vmul.f32 %v5978, %v1708
      %v6010 = vmul.f32 %v5980, %v1708
      %v6011 = vmul.f32 %v5982, %v1708
      %v6012 = vmul.f32 %v5984, %v1708
      %v6013 = vmul.f32 %v5986, %v1708
      %v6014 = vmul.f32 %v5988, %v1708
      %v6015 = vmul.f32 %v5990, %v1708
      %v6016 = vmul.f32 %v5992, %v1708
      %v6017 = vmul.f32 %v5994, %v1708
      %v6018 = vmul.f32 %v5996, %v1708
      %v6019 = vmul.f32 %v5998, %v1708
      %v6020 = vmul.f32 %v6000, %v1708
      %v6021 = vmul.f32 %v6002, %v1708
      %v6022 = vmul.f32 %v6004, %v1708
      %v6023 = vmul.f32 %v6006, %v1708
      %v6024 = vmul.f32 %v6008, %v1708
      %v6025 = vadd.f32 %v6009, 1e-05
      %v6026 = vadd.f32 %v6010, 1e-05
      %v6027 = vadd.f32 %v6011, 1e-05
      %v6028 = vadd.f32 %v6012, 1e-05
      %v6029 = vadd.f32 %v6013, 1e-05
      %v6030 = vadd.f32 %v6014, 1e-05
      %v6031 = vadd.f32 %v6015, 1e-05
      %v6032 = vadd.f32 %v6016, 1e-05
      %v6033 = vadd.f32 %v6017, 1e-05
      %v6034 = vadd.f32 %v6018, 1e-05
      %v6035 = vadd.f32 %v6019, 1e-05
      %v6036 = vadd.f32 %v6020, 1e-05
      %v6037 = vadd.f32 %v6021, 1e-05
      %v6038 = vadd.f32 %v6022, 1e-05
      %v6039 = vadd.f32 %v6023, 1e-05
      %v6040 = vadd.f32 %v6024, 1e-05
      %v6041 = vrsqrt.pop %v6025
      %v6042 = vmul.f32 %v6041, %v6025
      %v6043 = vmul.f32 %v6042, %v6041
      %v6044 = vmul.f32 0.5, %v6043
      %v6045 = vsub.f32 1.5, %v6044
      %v6046 = vmul.f32 %v6041, %v6045
      %vm6047 = vweird.f32 %v6025
      %vm6048 = vweird.f32 %v6041
      %vm6049 = vmor %vm6047, %vm6048
      %v6050 = vsel %vm6049, %v6041, %v6046
      %v6051 = vrsqrt.pop %v6026
      %v6052 = vmul.f32 %v6051, %v6026
      %v6053 = vmul.f32 %v6052, %v6051
      %v6054 = vmul.f32 0.5, %v6053
      %v6055 = vsub.f32 1.5, %v6054
      %v6056 = vmul.f32 %v6051, %v6055
      %vm6057 = vweird.f32 %v6026
      %vm6058 = vweird.f32 %v6051
      %vm6059 = vmor %vm6057, %vm6058
      %v6060 = vsel %vm6059, %v6051, %v6056
      %v6061 = vrsqrt.pop %v6027
      %v6062 = vmul.f32 %v6061, %v6027
      %v6063 = vmul.f32 %v6062, %v6061
      %v6064 = vmul.f32 0.5, %v6063
      %v6065 = vsub.f32 1.5, %v6064
      %v6066 = vmul.f32 %v6061, %v6065
      %vm6067 = vweird.f32 %v6027
      %vm6068 = vweird.f32 %v6061
      %vm6069 = vmor %vm6067, %vm6068
      %v6070 = vsel %vm6069, %v6061, %v6066
      %v6071 = vrsqrt.pop %v6028
      %v6072 = vmul.f32 %v6071, %v6028
      %v6073 = vmul.f32 %v6072, %v6071
      %v6074 = vmul.f32 0.5, %v6073
      %v6075 = vsub.f32 1.5, %v6074
      %v6076 = vmul.f32 %v6071, %v6075
      %vm6077 = vweird.f32 %v6028
      %vm6078 = vweird.f32 %v6071
      %vm6079 = vmor %vm6077, %vm6078
      %v6080 = vsel %vm6079, %v6071, %v6076
      %v6081 = vrsqrt.pop %v6029
      %v6082 = vmul.f32 %v6081, %v6029
      %v6083 = vmul.f32 %v6082, %v6081
      %v6084 = vmul.f32 0.5, %v6083
      %v6085 = vsub.f32 1.5, %v6084
      %v6086 = vmul.f32 %v6081, %v6085
      %vm6087 = vweird.f32 %v6029
      %vm6088 = vweird.f32 %v6081
      %vm6089 = vmor %vm6087, %vm6088
      %v6090 = vsel %vm6089, %v6081, %v6086
      %v6091 = vrsqrt.pop %v6030
      %v6092 = vmul.f32 %v6091, %v6030
      %v6093 = vmul.f32 %v6092, %v6091
      %v6094 = vmul.f32 0.5, %v6093
      %v6095 = vsub.f32 1.5, %v6094
      %v6096 = vmul.f32 %v6091, %v6095
      %vm6097 = vweird.f32 %v6030
      %vm6098 = vweird.f32 %v6091
      %vm6099 = vmor %vm6097, %vm6098
      %v6100 = vsel %vm6099, %v6091, %v6096
      %v6101 = vrsqrt.pop %v6031
      %v6102 = vmul.f32 %v6101, %v6031
      %v6103 = vmul.f32 %v6102, %v6101
      %v6104 = vmul.f32 0.5, %v6103
      %v6105 = vsub.f32 1.5, %v6104
      %v6106 = vmul.f32 %v6101, %v6105
      %vm6107 = vweird.f32 %v6031
      %vm6108 = vweird.f32 %v6101
      %vm6109 = vmor %vm6107, %vm6108
      %v6110 = vsel %vm6109, %v6101, %v6106
      %v6111 = vrsqrt.pop %v6032
      %v6112 = vmul.f32 %v6111, %v6032
      %v6113 = vmul.f32 %v6112, %v6111
      %v6114 = vmul.f32 0.5, %v6113
      %v6115 = vsub.f32 1.5, %v6114
      %v6116 = vmul.f32 %v6111, %v6115
      %vm6117 = vweird.f32 %v6032
      %vm6118 = vweird.f32 %v6111
      %vm6119 = vmor %vm6117, %vm6118
      %v6120 = vsel %vm6119, %v6111, %v6116
      %v6121 = vrsqrt.pop %v6033
      %v6122 = vmul.f32 %v6121, %v6033
      %v6123 = vmul.f32 %v6122, %v6121
      %v6124 = vmul.f32 0.5, %v6123
      %v6125 = vsub.f32 1.5, %v6124
      %v6126 = vmul.f32 %v6121, %v6125
      %vm6127 = vweird.f32 %v6033
      %vm6128 = vweird.f32 %v6121
      %vm6129 = vmor %vm6127, %vm6128
      %v6130 = vsel %vm6129, %v6121, %v6126
      %v6131 = vrsqrt.pop %v6034
      %v6132 = vmul.f32 %v6131, %v6034
      %v6133 = vmul.f32 %v6132, %v6131
      %v6134 = vmul.f32 0.5, %v6133
      %v6135 = vsub.f32 1.5, %v6134
      %v6136 = vmul.f32 %v6131, %v6135
      %vm6137 = vweird.f32 %v6034
      %vm6138 = vweird.f32 %v6131
      %vm6139 = vmor %vm6137, %vm6138
      %v6140 = vsel %vm6139, %v6131, %v6136
      %v6141 = vrsqrt.pop %v6035
      %v6142 = vmul.f32 %v6141, %v6035
      %v6143 = vmul.f32 %v6142, %v6141
      %v6144 = vmul.f32 0.5, %v6143
      %v6145 = vsub.f32 1.5, %v6144
      %v6146 = vmul.f32 %v6141, %v6145
      %vm6147 = vweird.f32 %v6035
      %vm6148 = vweird.f32 %v6141
      %vm6149 = vmor %vm6147, %vm6148
      %v6150 = vsel %vm6149, %v6141, %v6146
      %v6151 = vrsqrt.pop %v6036
      %v6152 = vmul.f32 %v6151, %v6036
      %v6153 = vmul.f32 %v6152, %v6151
      %v6154 = vmul.f32 0.5, %v6153
      %v6155 = vsub.f32 1.5, %v6154
      %v6156 = vmul.f32 %v6151, %v6155
      %vm6157 = vweird.f32 %v6036
      %vm6158 = vweird.f32 %v6151
      %vm6159 = vmor %vm6157, %vm6158
      %v6160 = vsel %vm6159, %v6151, %v6156
      %v6161 = vrsqrt.pop %v6037
      %v6162 = vmul.f32 %v6161, %v6037
      %v6163 = vmul.f32 %v6162, %v6161
      %v6164 = vmul.f32 0.5, %v6163
      %v6165 = vsub.f32 1.5, %v6164
      %v6166 = vmul.f32 %v6161, %v6165
      %vm6167 = vweird.f32 %v6037
      %vm6168 = vweird.f32 %v6161
      %vm6169 = vmor %vm6167, %vm6168
      %v6170 = vsel %vm6169, %v6161, %v6166
      %v6171 = vrsqrt.pop %v6038
      %v6172 = vmul.f32 %v6171, %v6038
      %v6173 = vmul.f32 %v6172, %v6171
      %v6174 = vmul.f32 0.5, %v6173
      %v6175 = vsub.f32 1.5, %v6174
      %v6176 = vmul.f32 %v6171, %v6175
      %vm6177 = vweird.f32 %v6038
      %vm6178 = vweird.f32 %v6171
      %vm6179 = vmor %vm6177, %vm6178
      %v6180 = vsel %vm6179, %v6171, %v6176
      %v6181 = vrsqrt.pop %v6039
      %v6182 = vmul.f32 %v6181, %v6039
      %v6183 = vmul.f32 %v6182, %v6181
      %v6184 = vmul.f32 0.5, %v6183
      %v6185 = vsub.f32 1.5, %v6184
      %v6186 = vmul.f32 %v6181, %v6185
      %vm6187 = vweird.f32 %v6039
      %vm6188 = vweird.f32 %v6181
      %vm6189 = vmor %vm6187, %vm6188
      %v6190 = vsel %vm6189, %v6181, %v6186
      %v6191 = vrsqrt.pop %v6040
      %v6192 = vmul.f32 %v6191, %v6040
      %v6193 = vmul.f32 %v6192, %v6191
      %v6194 = vmul.f32 0.5, %v6193
      %v6195 = vsub.f32 1.5, %v6194
      %v6196 = vmul.f32 %v6191, %v6195
      %vm6197 = vweird.f32 %v6040
      %vm6198 = vweird.f32 %v6191
      %vm6199 = vmor %vm6197, %vm6198
      %v6200 = vsel %vm6199, %v6191, %v6196
      %v6201 = vmul.f32 %v5945, %v6050
      %v6202 = vmul.f32 %v5946, %v6060
      %v6203 = vmul.f32 %v5947, %v6070
      %v6204 = vmul.f32 %v5948, %v6080
      %v6205 = vmul.f32 %v5949, %v6090
      %v6206 = vmul.f32 %v5950, %v6100
      %v6207 = vmul.f32 %v5951, %v6110
      %v6208 = vmul.f32 %v5952, %v6120
      %v6209 = vmul.f32 %v5953, %v6130
      %v6210 = vmul.f32 %v5954, %v6140
      %v6211 = vmul.f32 %v5955, %v6150
      %v6212 = vmul.f32 %v5956, %v6160
      %v6213 = vmul.f32 %v5957, %v6170
      %v6214 = vmul.f32 %v5958, %v6180
      %v6215 = vmul.f32 %v5959, %v6190
      %v6216 = vmul.f32 %v5960, %v6200
      %v6218 = vperm.slane %v5895, 0
      %v6220 = vmul.f32 %v6201, %v6218
      %v6221 = vmul.f32 %v6202, %v6218
      %v6222 = vmul.f32 %v6203, %v6218
      %v6223 = vmul.f32 %v6204, %v6218
      %v6224 = vmul.f32 %v6205, %v6218
      %v6225 = vmul.f32 %v6206, %v6218
      %v6226 = vmul.f32 %v6207, %v6218
      %v6227 = vmul.f32 %v6208, %v6218
      %v6228 = vmul.f32 %v6209, %v6218
      %v6229 = vmul.f32 %v6210, %v6218
      %v6230 = vmul.f32 %v6211, %v6218
      %v6231 = vmul.f32 %v6212, %v6218
      %v6232 = vmul.f32 %v6213, %v6218
      %v6233 = vmul.f32 %v6214, %v6218
      %v6234 = vmul.f32 %v6215, %v6218
      %v6235 = vmul.f32 %v6216, %v6218
      %v6237 = vperm.slane %v5896, 0
      %v6239 = vadd.f32 %v6220, %v6237
      %v6240 = vadd.f32 %v6221, %v6237
      %v6241 = vadd.f32 %v6222, %v6237
      %v6242 = vadd.f32 %v6223, %v6237
      %v6243 = vadd.f32 %v6224, %v6237
      %v6244 = vadd.f32 %v6225, %v6237
      %v6245 = vadd.f32 %v6226, %v6237
      %v6246 = vadd.f32 %v6227, %v6237
      %v6247 = vadd.f32 %v6228, %v6237
      %v6248 = vadd.f32 %v6229, %v6237
      %v6249 = vadd.f32 %v6230, %v6237
      %v6250 = vadd.f32 %v6231, %v6237
      %v6251 = vadd.f32 %v6232, %v6237
      %v6252 = vadd.f32 %v6233, %v6237
      %v6253 = vadd.f32 %v6234, %v6237
      %v6254 = vadd.f32 %v6235, %v6237
      %v6255 = vld [vmem:[%s15] sm:$0xf]
      %v6256 = vld [vmem:[%s15 + $0x4] sm:$0xf]
      %v6257 = vld [vmem:[%s15 + $0x8] sm:$0xf]
      %v6258 = vld [vmem:[%s15 + $0xc] sm:$0xf]
      %v6259 = vld [vmem:[%s15 + $0x10] sm:$0xf]
      %v6260 = vld [vmem:[%s15 + $0x14] sm:$0xf]
      %v6261 = vld [vmem:[%s15 + $0x18] sm:$0xf]
      %v6262 = vld [vmem:[%s15 + $0x1c] sm:$0xf]
      %v6263 = vld [vmem:[%s15 + $0x20] sm:$0xf]
      %v6264 = vld [vmem:[%s15 + $0x24] sm:$0xf]
      %v6265 = vld [vmem:[%s15 + $0x28] sm:$0xf]
      %v6266 = vld [vmem:[%s15 + $0x2c] sm:$0xf]
      %v6267 = vld [vmem:[%s15 + $0x30] sm:$0xf]
      %v6268 = vld [vmem:[%s15 + $0x34] sm:$0xf]
      %v6269 = vld [vmem:[%s15 + $0x38] sm:$0xf]
      %v6270 = vld [vmem:[%s15 + $0x3c] sm:$0xf]
      %v6271 = vpack.c.bf16 %v6240, %v6239
      %v6272 = vpack.c.bf16 %v6242, %v6241
      %v6273 = vpack.c.bf16 %v6244, %v6243
      %v6274 = vpack.c.bf16 %v6246, %v6245
      %v6275 = vpack.c.bf16 %v6248, %v6247
      %v6276 = vpack.c.bf16 %v6250, %v6249
      %v6277 = vpack.c.bf16 %v6252, %v6251
      %v6278 = vpack.c.bf16 %v6254, %v6253
      %v6279 = vld [vmem:[%s16] sm:$0x1]
      %v6281 = vperm.slane %v6279, 0
      %v6299 = vunpack.c.l.b16 %v6255
      %v6300 = vunpack.c.l.b16 %v6256
      %v6301 = vunpack.c.l.b16 %v6257
      %v6302 = vunpack.c.l.b16 %v6258
      %v6303 = vunpack.c.l.b16 %v6259
      %v6304 = vunpack.c.l.b16 %v6260
      %v6305 = vunpack.c.l.b16 %v6261
      %v6306 = vunpack.c.l.b16 %v6262
      %v6307 = vunpack.c.l.b16 %v6263
      %v6308 = vunpack.c.l.b16 %v6264
      %v6309 = vunpack.c.l.b16 %v6265
      %v6310 = vunpack.c.l.b16 %v6266
      %v6311 = vunpack.c.l.b16 %v6267
      %v6312 = vunpack.c.l.b16 %v6268
      %v6313 = vunpack.c.l.b16 %v6269
      %v6314 = vunpack.c.l.b16 %v6270
      %v6315 = vpack.c.b16 %v6300, %v6299
      %v6316 = vpack.c.b16 %v6302, %v6301
      %v6317 = vpack.c.b16 %v6304, %v6303
      %v6318 = vpack.c.b16 %v6306, %v6305
      %v6319 = vpack.c.b16 %v6308, %v6307
      %v6320 = vpack.c.b16 %v6310, %v6309
      %v6321 = vpack.c.b16 %v6312, %v6311
      %v6322 = vpack.c.b16 %v6314, %v6313
      %6331 = vmatpush.bf16.msra.mxu0 %v6322
      %6332 = vmatpush.bf16.msra.mxu0 %v6321
      %6333 = vmatpush.bf16.msra.mxu0 %v6320
      %6334 = vmatpush.bf16.msra.mxu0 %v6319
      %6335 = vmatpush.bf16.msra.mxu0 %v6318
      %6336 = vmatpush.bf16.msra.mxu0 %v6317
      %6337 = vmatpush.bf16.msra.mxu0 %v6316
      %6338 = vmatpush.bf16.msra.mxu0 %v6315
      %6339 = vmatmul.bf16.gmra.mxu0 %v6271
      %v6340 = vpop.f32.mrf.mxu0
      %v6341 = vadd.f32 %v6281, %v6340
      %v6342 = vpop.f32.mrf.mxu0
      %v6343 = vadd.f32 %v6281, %v6342
      %6344 = vmatmul.bf16.gmra.mxu0 %v6272
      %v6345 = vpop.f32.mrf.mxu0
      %v6346 = vadd.f32 %v6281, %v6345
      %v6347 = vpop.f32.mrf.mxu0
      %v6348 = vadd.f32 %v6281, %v6347
      %6349 = vmatmul.bf16.gmra.mxu0 %v6273
      %v6350 = vpop.f32.mrf.mxu0
      %v6351 = vadd.f32 %v6281, %v6350
      %v6352 = vpop.f32.mrf.mxu0
      %v6353 = vadd.f32 %v6281, %v6352
      %6354 = vmatmul.bf16.gmra.mxu0 %v6274
      %v6355 = vpop.f32.mrf.mxu0
      %v6356 = vadd.f32 %v6281, %v6355
      %v6357 = vpop.f32.mrf.mxu0
      %v6358 = vadd.f32 %v6281, %v6357
      %6359 = vmatmul.bf16.gmra.mxu0 %v6275
      %v6360 = vpop.f32.mrf.mxu0
      %v6361 = vadd.f32 %v6281, %v6360
      %v6362 = vpop.f32.mrf.mxu0
      %v6363 = vadd.f32 %v6281, %v6362
      %6364 = vmatmul.bf16.gmra.mxu0 %v6276
      %v6365 = vpop.f32.mrf.mxu0
      %v6366 = vadd.f32 %v6281, %v6365
      %v6367 = vpop.f32.mrf.mxu0
      %v6368 = vadd.f32 %v6281, %v6367
      %6369 = vmatmul.bf16.gmra.mxu0 %v6277
      %v6370 = vpop.f32.mrf.mxu0
      %v6371 = vadd.f32 %v6281, %v6370
      %v6372 = vpop.f32.mrf.mxu0
      %v6373 = vadd.f32 %v6281, %v6372
      %6374 = vmatmul.bf16.gmra.mxu0 %v6278
      %v6375 = vpop.f32.mrf.mxu0
      %v6376 = vadd.f32 %v6281, %v6375
      %v6377 = vpop.f32.mrf.mxu0
      %v6378 = vadd.f32 %v6281, %v6377
      %6379 = vdwg.mxu0
      %6380 = vst [vmem:[%s548] sm:$0xff] %v6341
      %6381 = vst [vmem:[%s548 + $0x8] sm:$0xff] %v6343
      %6382 = vst [vmem:[%s548 + $0x10] sm:$0xff] %v6346
      %6383 = vst [vmem:[%s548 + $0x18] sm:$0xff] %v6348
      %6384 = vst [vmem:[%s548 + $0x20] sm:$0xff] %v6351
      %6385 = vst [vmem:[%s548 + $0x28] sm:$0xff] %v6353
      %6386 = vst [vmem:[%s548 + $0x30] sm:$0xff] %v6356
      %6387 = vst [vmem:[%s548 + $0x38] sm:$0xff] %v6358
      %6388 = vst [vmem:[%s548 + $0x40] sm:$0xff] %v6361
      %6389 = vst [vmem:[%s548 + $0x48] sm:$0xff] %v6363
      %6390 = vst [vmem:[%s548 + $0x50] sm:$0xff] %v6366
      %6391 = vst [vmem:[%s548 + $0x58] sm:$0xff] %v6368
      %6392 = vst [vmem:[%s548 + $0x60] sm:$0xff] %v6371
      %6393 = vst [vmem:[%s548 + $0x68] sm:$0xff] %v6373
      %6394 = vst [vmem:[%s548 + $0x70] sm:$0xff] %v6376
      %6395 = vst [vmem:[%s548 + $0x78] sm:$0xff] %v6378
      %p6396 = scmp.lt.s32.totalorder %s28, 1
      %s6397 = scalar_select %p6396, %s28, 1
      %s6398 = smul.addr %s6397, 16
      %s6399 = smul.addr %s6398, 8
      %s6400 = scalar_lea.vmem %s17, %s6399
      // Predicated region
      $region89: #{transformer_forward.1} parent=87 // pred_check
        %p6401 = pneg %p408
      $region90: #{transformer_forward.1} parent=87 // pred_check_branch
        %6403 = sbr.rel (%p6401) target = $region92
      $region91: #{transformer_forward.1} parent=87 // pred_region
        _
      $region92: #{transformer_forward.1} parent=87 // pred_fallthru
        _
    $region88: #{transformer_forward.1} parent=5 // pred_fallthru
      _
    %p6404 = scmp.le.s32.totalorder 2, %s23
    // Predicated region
    $region93: #{transformer_forward.1} parent=5 // pred_check
      %p6405 = pneg %p6404
    $region94: #{transformer_forward.1} parent=5 // pred_check_branch
      %6407 = sbr.rel (%p6405) target = $region96
    $region95: #{transformer_forward.1} parent=5 // pred_region
      %s6408 = ssub.s32 %s23, 2
      // Predicated region
      $region97: #{transformer_forward.1} parent=95 // pred_check
        %p6409 = pneg %p414
      $region98: #{transformer_forward.1} parent=95 // pred_check_branch
        %6411 = sbr.rel (%p6409) target = $region100
      $region99: #{transformer_forward.1} parent=95 // pred_region
        %p6412 = scmp.lt.s32.totalorder %s29, 1
        %s6413 = scalar_select %p6412, %s29, 1
        %s6414 = smul.addr %s6413, 16
        %s6415 = smul.addr %s6414, 8
        %s6416 = scalar_lea.vmem %s17, %s6415
      $region100: #{transformer_forward.1} parent=95 // pred_fallthru
        _
    $region96: #{transformer_forward.1} parent=5 // pred_fallthru
      _
  $region6: #{transformer_forward.1} parent=0 // loop_footer
    %s27 = sadd.s32 1, %s23
  $region7: #{transformer_forward.1} parent=0 // loop_footer_branch
    %22 = sbr.rel target = $region3
  $region8: #{transformer_forward.1} parent=0 // loop_exit
    _

</llo_original>
